<compile_context>
chip_gen: v7x
topology: tpu7x:2x2x1
jax: 0.10.0
libtpu: 0.0.40
codegen_flags: <defaults>
</compile_context>

<pallas_src>
from functools import partial

import jax
import jax.numpy as jnp
from jax import lax
from jax.experimental import pallas as pl
from jax.experimental.pallas import tpu as pltpu

EPS = 1e-5


# ------------------------------ helpers -------------------------------------

def _fold_bn(gamma, beta, mean, var):
    scale = gamma / jnp.sqrt(var + EPS)
    bias = beta - mean * scale
    return scale, bias


def _phase_block(x_nhwc, stride):
    """Zero-pad by 1 (conv padding) and rearrange into stride-phase blocks.

    Returns xb such that
        xb[n, a*Hq + i, b*Wq + j, c] == xpad[n, stride*i + a, stride*j + b, c]
    so every 3x3 tap at stride `stride` becomes a *contiguous* slice of xb.
    For stride == 1 this is just the zero-padded input.
    """
    N, H, W, C = x_nhwc.shape
    eh = (-(H + 2)) % stride
    ew = (-(W + 2)) % stride
    xp = jnp.pad(x_nhwc, ((0, 0), (1, 1 + eh), (1, 1 + ew), (0, 0)))
    Hq = (H + 2 + eh) // stride
    Wq = (W + 2 + ew) // stride
    xb = xp.reshape(N, Hq, stride, Wq, stride, C)
    xb = xb.transpose(0, 2, 1, 4, 3, 5).reshape(N, stride * Hq, stride * Wq, C)
    return xb, Hq, Wq


# ------------------------------ fused kernel ---------------------------------

def _make_kernel(H, W, Cin, planes, stride, Ho, Wo, Hq, Wq, has_proj):
    taps = [(dh, dw) for dh in range(3) for dw in range(3)]

    def kernel(*refs):
        if has_proj:
            (xb_ref, m_ref, s1_ref, b1_ref, s2_ref, b2_ref,
             w1_ref, w2_ref, ws_ref, o_ref, h1_ref, h2_ref) = refs
        else:
            (xb_ref, m_ref, s1_ref, b1_ref, s2_ref, b2_ref,
             w1_ref, w2_ref, o_ref, h1_ref, h2_ref) = refs
            ws_ref = None

        xb = xb_ref[0]                                    # (Sh, Sw, Cin) f32

        # ---- BN1 + ReLU prologue (fused); mask keeps conv zero-padding ------
        h1 = jnp.maximum(xb * s1_ref[...] + b1_ref[...], 0.0) * m_ref[...]
        h1_ref[...] = h1

        # ---- conv1: 3x3 / stride as 9 MXU tap-matmuls (bf16, f32 acc) -------
        acc1 = jnp.zeros((Ho * Wo, planes), jnp.float32)
        sc = None
        for t, (dh, dw) in enumerate(taps):
            r0 = (dh % stride) * Hq + dh // stride
            c0 = (dw % stride) * Wq + dw // stride
            a = h1_ref[r0:r0 + Ho, c0:c0 + Wo, :]
            a = a.reshape(Ho * Wo, Cin).astype(jnp.bfloat16)
            acc1 = acc1 + jnp.dot(a, w1_ref[t],
                                  preferred_element_type=jnp.float32)
            if has_proj and dh == 1 and dw == 1:
                # 1x1 projection shortcut reuses the centre-tap A tile.
                sc = jnp.dot(a, ws_ref[...],
                             preferred_element_type=jnp.float32)
        if not has_proj:
            # Identity shortcut: raw (pre-BN) input.  Here stride == 1,
            # Cin == planes, Ho == H, Wo == W and xb is the zero-padded input.
            sc = xb[1:H + 1, 1:W + 1, :].reshape(Ho * Wo, planes)

        # ---- BN2 + ReLU epilogue, staged into zero-padded scratch for conv2 -
        h2 = jnp.maximum(acc1 * s2_ref[...] + b2_ref[...], 0.0)
        h2_ref[...] = jnp.zeros_like(h2_ref)
        h2_ref[1:Ho + 1, 1:Wo + 1, :] = h2.reshape(Ho, Wo, planes)

        # ---- conv2: 3x3 stride 1, then residual add --------------------------
        acc2 = jnp.zeros((Ho * Wo, planes), jnp.float32)
        for t, (dh, dw) in enumerate(taps):
            a = h2_ref[dh:dh + Ho, dw:dw + Wo, :]
            a = a.reshape(Ho * Wo, planes).astype(jnp.bfloat16)
            acc2 = acc2 + jnp.dot(a, w2_ref[t],
                                  preferred_element_type=jnp.float32)

        o_ref[0] = acc2 + sc

    return kernel


# ------------------------------ forward wrapper ------------------------------

@partial(jax.jit, static_argnums=(2, 3, 4))
def basic_block_forward(x_nchw, params, stride, in_planes, planes):
    """Pallas implementation of BasicBlock.forward (eval mode)."""
    x = jnp.transpose(x_nchw, (0, 2, 3, 1)).astype(jnp.float32)  # NCHW -> NHWC
    N, H, W, Cin = x.shape
    has_proj = (stride != 1) or (in_planes != planes)
    Ho = (H - 1) // stride + 1
    Wo = (W - 1) // stride + 1

    xb, Hq, Wq = _phase_block(x, stride)
    mask, _, _ = _phase_block(jnp.ones((1, H, W, 1), jnp.float32), stride)
    mask = mask[0]                                               # (Sh, Sw, 1)
    Sh, Sw = stride * Hq, stride * Wq

    s1, b1 = _fold_bn(params['bn1_gamma'], params['bn1_beta'],
                      params['bn1_mean'], params['bn1_var'])
    s2, b2 = _fold_bn(params['bn2_gamma'], params['bn2_beta'],
                      params['bn2_mean'], params['bn2_var'])

    # conv weights -> (tap, in, out), bf16 for the MXU
    w1 = params['conv1_w'].transpose(2, 3, 1, 0).reshape(9, Cin, planes)
    w2 = params['conv2_w'].transpose(2, 3, 1, 0).reshape(9, planes, planes)

    inputs = [xb, mask,
              s1.reshape(1, 1, Cin), b1.reshape(1, 1, Cin),
              s2.reshape(1, planes), b2.reshape(1, planes),
              w1.astype(jnp.bfloat16), w2.astype(jnp.bfloat16)]
    in_specs = [
        pl.BlockSpec((1, Sh, Sw, Cin), lambda n: (n, 0, 0, 0)),
        pl.BlockSpec((Sh, Sw, 1), lambda n: (0, 0, 0)),
        pl.BlockSpec((1, 1, Cin), lambda n: (0, 0, 0)),
        pl.BlockSpec((1, 1, Cin), lambda n: (0, 0, 0)),
        pl.BlockSpec((1, planes), lambda n: (0, 0)),
        pl.BlockSpec((1, planes), lambda n: (0, 0)),
        pl.BlockSpec((9, Cin, planes), lambda n: (0, 0, 0)),
        pl.BlockSpec((9, planes, planes), lambda n: (0, 0, 0)),
    ]
    if has_proj:
        ws = params['convs_w'].reshape(planes, Cin).T.astype(jnp.bfloat16)
        inputs.append(ws)
        in_specs.append(pl.BlockSpec((Cin, planes), lambda n: (0, 0)))

    kernel = _make_kernel(H, W, Cin, planes, stride, Ho, Wo, Hq, Wq, has_proj)

    out = pl.pallas_call(
        kernel,
        out_shape=jax.ShapeDtypeStruct((N, Ho * Wo, planes), jnp.float32),
        grid=(N,),
        in_specs=in_specs,
        out_specs=pl.BlockSpec((1, Ho * Wo, planes), lambda n: (n, 0, 0)),
        scratch_shapes=[
            pltpu.VMEM((Sh, Sw, Cin), jnp.float32),           # BN1+ReLU(x), padded
            pltpu.VMEM((Ho + 2, Wo + 2, planes), jnp.float32),  # BN2+ReLU(y1), padded
        ],
        compiler_params=pltpu.CompilerParams(
            dimension_semantics=("parallel",),
            vmem_limit_bytes=64 * 1024 * 1024),
    )(*inputs)

    out = out.reshape(N, Ho, Wo, planes)
    return jnp.transpose(out, (0, 3, 1, 2))                  # NHWC -> NCHW


# ------------------------------ reference ------------------------------------

def ref_forward(x, p, stride, in_planes, planes):
    def bn(z, g, b, m, v):
        s = g / jnp.sqrt(v + EPS)
        return z * s[None, :, None, None] + (b - m * s)[None, :, None, None]

    dn = ('NCHW', 'OIHW', 'NCHW')
    h1 = jnp.maximum(bn(x, p['bn1_gamma'], p['bn1_beta'],
                        p['bn1_mean'], p['bn1_var']), 0.0)
    y1 = lax.conv_general_dilated(h1, p['conv1_w'], (stride, stride),
                                  ((1, 1), (1, 1)), dimension_numbers=dn)
    h2 = jnp.maximum(bn(y1, p['bn2_gamma'], p['bn2_beta'],
                        p['bn2_mean'], p['bn2_var']), 0.0)
    y2 = lax.conv_general_dilated(h2, p['conv2_w'], (1, 1),
                                  ((1, 1), (1, 1)), dimension_numbers=dn)
    if stride != 1 or in_planes != planes:
        sc = lax.conv_general_dilated(h1, p['convs_w'], (stride, stride),
                                      ((0, 0), (0, 0)), dimension_numbers=dn)
    else:
        sc = x
    return y2 + sc


# ------------------------------ param init -----------------------------------

def make_params(key, in_planes, planes):
    ks = jax.random.split(key, 11)
    f32 = jnp.float32
    return {
        'bn1_gamma': jax.random.uniform(ks[0], (in_planes,), f32, 0.5, 1.5),
        'bn1_beta':  0.1 * jax.random.normal(ks[1], (in_planes,), f32),
        'bn1_mean':  0.1 * jax.random.normal(ks[2], (in_planes,), f32),
        'bn1_var':   jax.random.uniform(ks[3], (in_planes,), f32, 0.5, 1.5),
        'conv1_w':   0.1 * jax.random.normal(ks[4], (planes, in_planes, 3, 3), f32),
        'bn2_gamma': jax.random.uniform(ks[5], (planes,), f32, 0.5, 1.5),
        'bn2_beta':  0.1 * jax.random.normal(ks[6], (planes,), f32),
        'bn2_mean':  0.1 * jax.random.normal(ks[7], (planes,), f32),
        'bn2_var':   jax.random.uniform(ks[8], (planes,), f32, 0.5, 1.5),
        'conv2_w':   0.1 * jax.random.normal(ks[9], (planes, planes, 3, 3), f32),
        'convs_w':   0.1 * jax.random.normal(ks[10], (planes, in_planes, 1, 1), f32),
    }


if __name__ == "__main__":
    key = jax.random.PRNGKey(0)
    k_x1, k_p1, k_x2, k_p2 = jax.random.split(key, 4)

    # Config A: projection shortcut (stride=2, in_planes != planes)
    x_a = jax.random.normal(k_x1, (2, 4, 16, 16), jnp.float32)
    p_a = make_params(k_p1, in_planes=4, planes=8)
    out_a = jax.block_until_ready(basic_block_forward(x_a, p_a, 2, 4, 8))
    ref_a = ref_forward(x_a, p_a, 2, 4, 8)
    assert out_a.shape == (2, 8, 8, 8), out_a.shape
    # bf16 MXU operands -> tolerance loosened vs pure-f32 reference
    assert jnp.allclose(out_a, ref_a, rtol=2e-2, atol=2e-2), (
        "config A mismatch", float(jnp.max(jnp.abs(out_a - ref_a))))

    # Config B: identity shortcut (stride=1, in_planes == planes)
    x_b = jax.random.normal(k_x2, (2, 8, 16, 16), jnp.float32)
    p_b = make_params(k_p2, in_planes=8, planes=8)
    out_b = jax.block_until_ready(basic_block_forward(x_b, p_b, 1, 8, 8))
    ref_b = ref_forward(x_b, p_b, 1, 8, 8)
    assert out_b.shape == (2, 8, 16, 16), out_b.shape
    assert jnp.allclose(out_b, ref_b, rtol=2e-2, atol=2e-2), (
        "config B mismatch", float(jnp.max(jnp.abs(out_b - ref_b))))

    print("KERNEL_OK")
</pallas_src>

<mosaic_0001>
module attributes {stable_mosaic.version = 11 : i64} {
  func.func @kernel(%arg0: i32, %arg1: memref<1x18x18x4xf32, #tpu.memory_space<vmem>>, %arg2: memref<18x18x1xf32, #tpu.memory_space<vmem>>, %arg3: memref<1x1x4xf32, #tpu.memory_space<vmem>>, %arg4: memref<1x1x4xf32, #tpu.memory_space<vmem>>, %arg5: memref<1x8xf32, #tpu.memory_space<vmem>>, %arg6: memref<1x8xf32, #tpu.memory_space<vmem>>, %arg7: memref<9x4x8xbf16, #tpu.memory_space<vmem>>, %arg8: memref<9x8x8xbf16, #tpu.memory_space<vmem>>, %arg9: memref<4x8xbf16, #tpu.memory_space<vmem>>, %arg10: memref<1x64x8xf32, #tpu.memory_space<vmem>>, %arg11: memref<18x18x4xf32, #tpu.memory_space<vmem>>, %arg12: memref<10x10x8xf32, #tpu.memory_space<vmem>>) attributes {dimension_semantics = [#tpu.dimension_semantics<parallel>], iteration_bounds = array<i64: 2>, scalar_prefetch = 0 : i64, scratch_operands = 2 : i64, tpu.core_type = #tpu.core_type<tc>, window_params = [{transform_indices = @transform_0, window_bounds = array<i64: 1, 18, 18, 4>}, {pipeline_mode = #tpu.pipeline_mode<synchronous>, transform_indices = @transform_1, window_bounds = array<i64: 18, 18, 1>}, {pipeline_mode = #tpu.pipeline_mode<synchronous>, transform_indices = @transform_2, window_bounds = array<i64: 1, 1, 4>}, {pipeline_mode = #tpu.pipeline_mode<synchronous>, transform_indices = @transform_3, window_bounds = array<i64: 1, 1, 4>}, {pipeline_mode = #tpu.pipeline_mode<synchronous>, transform_indices = @transform_4, window_bounds = array<i64: 1, 8>}, {pipeline_mode = #tpu.pipeline_mode<synchronous>, transform_indices = @transform_5, window_bounds = array<i64: 1, 8>}, {pipeline_mode = #tpu.pipeline_mode<synchronous>, transform_indices = @transform_6, window_bounds = array<i64: 9, 4, 8>}, {pipeline_mode = #tpu.pipeline_mode<synchronous>, transform_indices = @transform_7, window_bounds = array<i64: 9, 8, 8>}, {pipeline_mode = #tpu.pipeline_mode<synchronous>, transform_indices = @transform_8, window_bounds = array<i64: 4, 8>}, {transform_indices = @transform_9, window_bounds = array<i64: 1, 64, 8>}]} {
    %c0 = arith.constant 0 : index
    %c0_0 = arith.constant 0 : index
    %c0_1 = arith.constant 0 : index
    %c0_2 = arith.constant 0 : index
    %0 = vector.load %arg1[%c0, %c0_0, %c0_1, %c0_2] : memref<1x18x18x4xf32, #tpu.memory_space<vmem>>, vector<1x18x18x4xf32>
    %1 = vector.shape_cast %0 : vector<1x18x18x4xf32> to vector<18x18x4xf32>
    %c0_3 = arith.constant 0 : index
    %c0_4 = arith.constant 0 : index
    %c0_5 = arith.constant 0 : index
    %2 = vector.load %arg3[%c0_3, %c0_4, %c0_5] : memref<1x1x4xf32, #tpu.memory_space<vmem>>, vector<1x1x4xf32>
    %3 = vector.broadcast %2 : vector<1x1x4xf32> to vector<18x18x4xf32>
    %4 = arith.mulf %1, %3 : vector<18x18x4xf32>
    %c0_6 = arith.constant 0 : index
    %c0_7 = arith.constant 0 : index
    %c0_8 = arith.constant 0 : index
    %5 = vector.load %arg4[%c0_6, %c0_7, %c0_8] : memref<1x1x4xf32, #tpu.memory_space<vmem>>, vector<1x1x4xf32>
    %6 = vector.broadcast %5 : vector<1x1x4xf32> to vector<18x18x4xf32>
    %7 = arith.addf %4, %6 : vector<18x18x4xf32>
    %cst = arith.constant 0.000000e+00 : f32
    %8 = vector.broadcast %cst : f32 to vector<18x18x4xf32>
    %9 = arith.maximumf %7, %8 : vector<18x18x4xf32>
    %c0_9 = arith.constant 0 : index
    %c0_10 = arith.constant 0 : index
    %c0_11 = arith.constant 0 : index
    %10 = vector.load %arg2[%c0_9, %c0_10, %c0_11] : memref<18x18x1xf32, #tpu.memory_space<vmem>>, vector<18x18x1xf32>
    %11 = vector.broadcast %10 : vector<18x18x1xf32> to vector<18x18x4xf32>
    %12 = arith.mulf %9, %11 : vector<18x18x4xf32>
    %c0_12 = arith.constant 0 : index
    %c0_13 = arith.constant 0 : index
    %c0_14 = arith.constant 0 : index
    %13 = vector.load %arg11[%c0_12, %c0_13, %c0_14] : memref<18x18x4xf32, #tpu.memory_space<vmem>>, vector<18x18x4xf32>
    tpu.vector_store %arg11[%c0_12, %c0_13, %c0_14], %12 {strides = array<i32>} : memref<18x18x4xf32, #tpu.memory_space<vmem>>, vector<18x18x4xf32>,
    %cst_15 = arith.constant 0.000000e+00 : f32
    %14 = vector.broadcast %cst_15 : f32 to vector<64x8xf32>
    %c0_16 = arith.constant 0 : index
    %c0_17 = arith.constant 0 : index
    %c0_18 = arith.constant 0 : index
    %15 = vector.load %arg11[%c0_16, %c0_17, %c0_18] : memref<18x18x4xf32, #tpu.memory_space<vmem>>, vector<8x8x4xf32>
    %16 = vector.shape_cast %15 : vector<8x8x4xf32> to vector<64x4xf32>
    %17 = arith.truncf %16 : vector<64x4xf32> to vector<64x4xbf16>
    %c0_19 = arith.constant 0 : index
    %c0_20 = arith.constant 0 : index
    %c0_21 = arith.constant 0 : index
    %18 = vector.load %arg7[%c0_19, %c0_20, %c0_21] : memref<9x4x8xbf16, #tpu.memory_space<vmem>>, vector<1x4x8xbf16>
    %19 = vector.shape_cast %18 : vector<1x4x8xbf16> to vector<4x8xbf16>
    %cst_22 = arith.constant dense<0.000000e+00> : vector<64x8xf32>
    %20 = tpu.matmul %17, %19, %cst_22 {dimension_numbers = #tpu.dot_dimension_numbers<[1], [0], [0], [1], [0, 0, 1, 1], [], []>} : vector<64x4xbf16>, vector<4x8xbf16>, vector<64x8xf32> -> vector<64x8xf32>
    %21 = arith.addf %14, %20 : vector<64x8xf32>
    %c0_23 = arith.constant 0 : index
    %c9 = arith.constant 9 : index
    %c0_24 = arith.constant 0 : index
    %22 = vector.load %arg11[%c0_23, %c9, %c0_24] : memref<18x18x4xf32, #tpu.memory_space<vmem>>, vector<8x8x4xf32>
    %23 = vector.shape_cast %22 : vector<8x8x4xf32> to vector<64x4xf32>
    %24 = arith.truncf %23 : vector<64x4xf32> to vector<64x4xbf16>
    %c1 = arith.constant 1 : index
    %c0_25 = arith.constant 0 : index
    %c0_26 = arith.constant 0 : index
    %25 = vector.load %arg7[%c1, %c0_25, %c0_26] : memref<9x4x8xbf16, #tpu.memory_space<vmem>>, vector<1x4x8xbf16>
    %26 = vector.shape_cast %25 : vector<1x4x8xbf16> to vector<4x8xbf16>
    %cst_27 = arith.constant dense<0.000000e+00> : vector<64x8xf32>
    %27 = tpu.matmul %24, %26, %cst_27 {dimension_numbers = #tpu.dot_dimension_numbers<[1], [0], [0], [1], [0, 0, 1, 1], [], []>} : vector<64x4xbf16>, vector<4x8xbf16>, vector<64x8xf32> -> vector<64x8xf32>
    %28 = arith.addf %21, %27 : vector<64x8xf32>
    %c0_28 = arith.constant 0 : index
    %c1_29 = arith.constant 1 : index
    %c0_30 = arith.constant 0 : index
    %29 = vector.load %arg11[%c0_28, %c1_29, %c0_30] : memref<18x18x4xf32, #tpu.memory_space<vmem>>, vector<8x8x4xf32>
    %30 = vector.shape_cast %29 : vector<8x8x4xf32> to vector<64x4xf32>
    %31 = arith.truncf %30 : vector<64x4xf32> to vector<64x4xbf16>
    %c2 = arith.constant 2 : index
    %c0_31 = arith.constant 0 : index
    %c0_32 = arith.constant 0 : index
    %32 = vector.load %arg7[%c2, %c0_31, %c0_32] : memref<9x4x8xbf16, #tpu.memory_space<vmem>>, vector<1x4x8xbf16>
    %33 = vector.shape_cast %32 : vector<1x4x8xbf16> to vector<4x8xbf16>
    %cst_33 = arith.constant dense<0.000000e+00> : vector<64x8xf32>
    %34 = tpu.matmul %31, %33, %cst_33 {dimension_numbers = #tpu.dot_dimension_numbers<[1], [0], [0], [1], [0, 0, 1, 1], [], []>} : vector<64x4xbf16>, vector<4x8xbf16>, vector<64x8xf32> -> vector<64x8xf32>
    %35 = arith.addf %28, %34 : vector<64x8xf32>
    %c9_34 = arith.constant 9 : index
    %c0_35 = arith.constant 0 : index
    %c0_36 = arith.constant 0 : index
    %36 = vector.load %arg11[%c9_34, %c0_35, %c0_36] : memref<18x18x4xf32, #tpu.memory_space<vmem>>, vector<8x8x4xf32>
    %37 = vector.shape_cast %36 : vector<8x8x4xf32> to vector<64x4xf32>
    %38 = arith.truncf %37 : vector<64x4xf32> to vector<64x4xbf16>
    %c3 = arith.constant 3 : index
    %c0_37 = arith.constant 0 : index
    %c0_38 = arith.constant 0 : index
    %39 = vector.load %arg7[%c3, %c0_37, %c0_38] : memref<9x4x8xbf16, #tpu.memory_space<vmem>>, vector<1x4x8xbf16>
    %40 = vector.shape_cast %39 : vector<1x4x8xbf16> to vector<4x8xbf16>
    %cst_39 = arith.constant dense<0.000000e+00> : vector<64x8xf32>
    %41 = tpu.matmul %38, %40, %cst_39 {dimension_numbers = #tpu.dot_dimension_numbers<[1], [0], [0], [1], [0, 0, 1, 1], [], []>} : vector<64x4xbf16>, vector<4x8xbf16>, vector<64x8xf32> -> vector<64x8xf32>
    %42 = arith.addf %35, %41 : vector<64x8xf32>
    %c9_40 = arith.constant 9 : index
    %c9_41 = arith.constant 9 : index
    %c0_42 = arith.constant 0 : index
    %43 = vector.load %arg11[%c9_40, %c9_41, %c0_42] : memref<18x18x4xf32, #tpu.memory_space<vmem>>, vector<8x8x4xf32>
    %44 = vector.shape_cast %43 : vector<8x8x4xf32> to vector<64x4xf32>
    %45 = arith.truncf %44 : vector<64x4xf32> to vector<64x4xbf16>
    %c4 = arith.constant 4 : index
    %c0_43 = arith.constant 0 : index
    %c0_44 = arith.constant 0 : index
    %46 = vector.load %arg7[%c4, %c0_43, %c0_44] : memref<9x4x8xbf16, #tpu.memory_space<vmem>>, vector<1x4x8xbf16>
    %47 = vector.shape_cast %46 : vector<1x4x8xbf16> to vector<4x8xbf16>
    %cst_45 = arith.constant dense<0.000000e+00> : vector<64x8xf32>
    %48 = tpu.matmul %45, %47, %cst_45 {dimension_numbers = #tpu.dot_dimension_numbers<[1], [0], [0], [1], [0, 0, 1, 1], [], []>} : vector<64x4xbf16>, vector<4x8xbf16>, vector<64x8xf32> -> vector<64x8xf32>
    %49 = arith.addf %42, %48 : vector<64x8xf32>
    %c0_46 = arith.constant 0 : index
    %c0_47 = arith.constant 0 : index
    %50 = vector.load %arg9[%c0_46, %c0_47] : memref<4x8xbf16, #tpu.memory_space<vmem>>, vector<4x8xbf16>
    %cst_48 = arith.constant dense<0.000000e+00> : vector<64x8xf32>
    %51 = tpu.matmul %45, %50, %cst_48 {dimension_numbers = #tpu.dot_dimension_numbers<[1], [0], [0], [1], [0, 0, 1, 1], [], []>} : vector<64x4xbf16>, vector<4x8xbf16>, vector<64x8xf32> -> vector<64x8xf32>
    %c9_49 = arith.constant 9 : index
    %c1_50 = arith.constant 1 : index
    %c0_51 = arith.constant 0 : index
    %52 = vector.load %arg11[%c9_49, %c1_50, %c0_51] : memref<18x18x4xf32, #tpu.memory_space<vmem>>, vector<8x8x4xf32>
    %53 = vector.shape_cast %52 : vector<8x8x4xf32> to vector<64x4xf32>
    %54 = arith.truncf %53 : vector<64x4xf32> to vector<64x4xbf16>
    %c5 = arith.constant 5 : index
    %c0_52 = arith.constant 0 : index
    %c0_53 = arith.constant 0 : index
    %55 = vector.load %arg7[%c5, %c0_52, %c0_53] : memref<9x4x8xbf16, #tpu.memory_space<vmem>>, vector<1x4x8xbf16>
    %56 = vector.shape_cast %55 : vector<1x4x8xbf16> to vector<4x8xbf16>
    %cst_54 = arith.constant dense<0.000000e+00> : vector<64x8xf32>
    %57 = tpu.matmul %54, %56, %cst_54 {dimension_numbers = #tpu.dot_dimension_numbers<[1], [0], [0], [1], [0, 0, 1, 1], [], []>} : vector<64x4xbf16>, vector<4x8xbf16>, vector<64x8xf32> -> vector<64x8xf32>
    %58 = arith.addf %49, %57 : vector<64x8xf32>
    %c1_55 = arith.constant 1 : index
    %c0_56 = arith.constant 0 : index
    %c0_57 = arith.constant 0 : index
    %59 = vector.load %arg11[%c1_55, %c0_56, %c0_57] : memref<18x18x4xf32, #tpu.memory_space<vmem>>, vector<8x8x4xf32>
    %60 = vector.shape_cast %59 : vector<8x8x4xf32> to vector<64x4xf32>
    %61 = arith.truncf %60 : vector<64x4xf32> to vector<64x4xbf16>
    %c6 = arith.constant 6 : index
    %c0_58 = arith.constant 0 : index
    %c0_59 = arith.constant 0 : index
    %62 = vector.load %arg7[%c6, %c0_58, %c0_59] : memref<9x4x8xbf16, #tpu.memory_space<vmem>>, vector<1x4x8xbf16>
    %63 = vector.shape_cast %62 : vector<1x4x8xbf16> to vector<4x8xbf16>
    %cst_60 = arith.constant dense<0.000000e+00> : vector<64x8xf32>
    %64 = tpu.matmul %61, %63, %cst_60 {dimension_numbers = #tpu.dot_dimension_numbers<[1], [0], [0], [1], [0, 0, 1, 1], [], []>} : vector<64x4xbf16>, vector<4x8xbf16>, vector<64x8xf32> -> vector<64x8xf32>
    %65 = arith.addf %58, %64 : vector<64x8xf32>
    %c1_61 = arith.constant 1 : index
    %c9_62 = arith.constant 9 : index
    %c0_63 = arith.constant 0 : index
    %66 = vector.load %arg11[%c1_61, %c9_62, %c0_63] : memref<18x18x4xf32, #tpu.memory_space<vmem>>, vector<8x8x4xf32>
    %67 = vector.shape_cast %66 : vector<8x8x4xf32> to vector<64x4xf32>
    %68 = arith.truncf %67 : vector<64x4xf32> to vector<64x4xbf16>
    %c7 = arith.constant 7 : index
    %c0_64 = arith.constant 0 : index
    %c0_65 = arith.constant 0 : index
    %69 = vector.load %arg7[%c7, %c0_64, %c0_65] : memref<9x4x8xbf16, #tpu.memory_space<vmem>>, vector<1x4x8xbf16>
    %70 = vector.shape_cast %69 : vector<1x4x8xbf16> to vector<4x8xbf16>
    %cst_66 = arith.constant dense<0.000000e+00> : vector<64x8xf32>
    %71 = tpu.matmul %68, %70, %cst_66 {dimension_numbers = #tpu.dot_dimension_numbers<[1], [0], [0], [1], [0, 0, 1, 1], [], []>} : vector<64x4xbf16>, vector<4x8xbf16>, vector<64x8xf32> -> vector<64x8xf32>
    %72 = arith.addf %65, %71 : vector<64x8xf32>
    %c1_67 = arith.constant 1 : index
    %c1_68 = arith.constant 1 : index
    %c0_69 = arith.constant 0 : index
    %73 = vector.load %arg11[%c1_67, %c1_68, %c0_69] : memref<18x18x4xf32, #tpu.memory_space<vmem>>, vector<8x8x4xf32>
    %74 = vector.shape_cast %73 : vector<8x8x4xf32> to vector<64x4xf32>
    %75 = arith.truncf %74 : vector<64x4xf32> to vector<64x4xbf16>
    %c8 = arith.constant 8 : index
    %c0_70 = arith.constant 0 : index
    %c0_71 = arith.constant 0 : index
    %76 = vector.load %arg7[%c8, %c0_70, %c0_71] : memref<9x4x8xbf16, #tpu.memory_space<vmem>>, vector<1x4x8xbf16>
    %77 = vector.shape_cast %76 : vector<1x4x8xbf16> to vector<4x8xbf16>
    %cst_72 = arith.constant dense<0.000000e+00> : vector<64x8xf32>
    %78 = tpu.matmul %75, %77, %cst_72 {dimension_numbers = #tpu.dot_dimension_numbers<[1], [0], [0], [1], [0, 0, 1, 1], [], []>} : vector<64x4xbf16>, vector<4x8xbf16>, vector<64x8xf32> -> vector<64x8xf32>
    %79 = arith.addf %72, %78 : vector<64x8xf32>
    %c0_73 = arith.constant 0 : index
    %c0_74 = arith.constant 0 : index
    %80 = vector.load %arg5[%c0_73, %c0_74] : memref<1x8xf32, #tpu.memory_space<vmem>>, vector<1x8xf32>
    %81 = vector.broadcast %80 : vector<1x8xf32> to vector<64x8xf32>
    %82 = arith.mulf %79, %81 : vector<64x8xf32>
    %c0_75 = arith.constant 0 : index
    %c0_76 = arith.constant 0 : index
    %83 = vector.load %arg6[%c0_75, %c0_76] : memref<1x8xf32, #tpu.memory_space<vmem>>, vector<1x8xf32>
    %84 = vector.broadcast %83 : vector<1x8xf32> to vector<64x8xf32>
    %85 = arith.addf %82, %84 : vector<64x8xf32>
    %cst_77 = arith.constant 0.000000e+00 : f32
    %86 = vector.broadcast %cst_77 : f32 to vector<64x8xf32>
    %87 = arith.maximumf %85, %86 : vector<64x8xf32>
    %cst_78 = arith.constant 0.000000e+00 : f32
    %88 = vector.broadcast %cst_78 : f32 to vector<10x10x8xf32>
    %c0_79 = arith.constant 0 : index
    %c0_80 = arith.constant 0 : index
    %c0_81 = arith.constant 0 : index
    %89 = vector.load %arg12[%c0_79, %c0_80, %c0_81] : memref<10x10x8xf32, #tpu.memory_space<vmem>>, vector<10x10x8xf32>
    tpu.vector_store %arg12[%c0_79, %c0_80, %c0_81], %88 {strides = array<i32>} : memref<10x10x8xf32, #tpu.memory_space<vmem>>, vector<10x10x8xf32>,
    %90 = vector.shape_cast %87 : vector<64x8xf32> to vector<8x8x8xf32>
    %c1_82 = arith.constant 1 : index
    %c1_83 = arith.constant 1 : index
    %c0_84 = arith.constant 0 : index
    %91 = vector.load %arg12[%c1_82, %c1_83, %c0_84] : memref<10x10x8xf32, #tpu.memory_space<vmem>>, vector<8x8x8xf32>
    tpu.vector_store %arg12[%c1_82, %c1_83, %c0_84], %90 {strides = array<i32>} : memref<10x10x8xf32, #tpu.memory_space<vmem>>, vector<8x8x8xf32>,
    %cst_85 = arith.constant 0.000000e+00 : f32
    %92 = vector.broadcast %cst_85 : f32 to vector<64x8xf32>
    %c0_86 = arith.constant 0 : index
    %c0_87 = arith.constant 0 : index
    %c0_88 = arith.constant 0 : index
    %93 = vector.load %arg12[%c0_86, %c0_87, %c0_88] : memref<10x10x8xf32, #tpu.memory_space<vmem>>, vector<8x8x8xf32>
    %94 = vector.shape_cast %93 : vector<8x8x8xf32> to vector<64x8xf32>
    %95 = arith.truncf %94 : vector<64x8xf32> to vector<64x8xbf16>
    %c0_89 = arith.constant 0 : index
    %c0_90 = arith.constant 0 : index
    %c0_91 = arith.constant 0 : index
    %96 = vector.load %arg8[%c0_89, %c0_90, %c0_91] : memref<9x8x8xbf16, #tpu.memory_space<vmem>>, vector<1x8x8xbf16>
    %97 = vector.shape_cast %96 : vector<1x8x8xbf16> to vector<8x8xbf16>
    %cst_92 = arith.constant dense<0.000000e+00> : vector<64x8xf32>
    %98 = tpu.matmul %95, %97, %cst_92 {dimension_numbers = #tpu.dot_dimension_numbers<[1], [0], [0], [1], [0, 0, 1, 1], [], []>} : vector<64x8xbf16>, vector<8x8xbf16>, vector<64x8xf32> -> vector<64x8xf32>
    %99 = arith.addf %92, %98 : vector<64x8xf32>
    %c0_93 = arith.constant 0 : index
    %c1_94 = arith.constant 1 : index
    %c0_95 = arith.constant 0 : index
    %100 = vector.load %arg12[%c0_93, %c1_94, %c0_95] : memref<10x10x8xf32, #tpu.memory_space<vmem>>, vector<8x8x8xf32>
    %101 = vector.shape_cast %100 : vector<8x8x8xf32> to vector<64x8xf32>
    %102 = arith.truncf %101 : vector<64x8xf32> to vector<64x8xbf16>
    %c1_96 = arith.constant 1 : index
    %c0_97 = arith.constant 0 : index
    %c0_98 = arith.constant 0 : index
    %103 = vector.load %arg8[%c1_96, %c0_97, %c0_98] : memref<9x8x8xbf16, #tpu.memory_space<vmem>>, vector<1x8x8xbf16>
    %104 = vector.shape_cast %103 : vector<1x8x8xbf16> to vector<8x8xbf16>
    %cst_99 = arith.constant dense<0.000000e+00> : vector<64x8xf32>
    %105 = tpu.matmul %102, %104, %cst_99 {dimension_numbers = #tpu.dot_dimension_numbers<[1], [0], [0], [1], [0, 0, 1, 1], [], []>} : vector<64x8xbf16>, vector<8x8xbf16>, vector<64x8xf32> -> vector<64x8xf32>
    %106 = arith.addf %99, %105 : vector<64x8xf32>
    %c0_100 = arith.constant 0 : index
    %c2_101 = arith.constant 2 : index
    %c0_102 = arith.constant 0 : index
    %107 = vector.load %arg12[%c0_100, %c2_101, %c0_102] : memref<10x10x8xf32, #tpu.memory_space<vmem>>, vector<8x8x8xf32>
    %108 = vector.shape_cast %107 : vector<8x8x8xf32> to vector<64x8xf32>
    %109 = arith.truncf %108 : vector<64x8xf32> to vector<64x8xbf16>
    %c2_103 = arith.constant 2 : index
    %c0_104 = arith.constant 0 : index
    %c0_105 = arith.constant 0 : index
    %110 = vector.load %arg8[%c2_103, %c0_104, %c0_105] : memref<9x8x8xbf16, #tpu.memory_space<vmem>>, vector<1x8x8xbf16>
    %111 = vector.shape_cast %110 : vector<1x8x8xbf16> to vector<8x8xbf16>
    %cst_106 = arith.constant dense<0.000000e+00> : vector<64x8xf32>
    %112 = tpu.matmul %109, %111, %cst_106 {dimension_numbers = #tpu.dot_dimension_numbers<[1], [0], [0], [1], [0, 0, 1, 1], [], []>} : vector<64x8xbf16>, vector<8x8xbf16>, vector<64x8xf32> -> vector<64x8xf32>
    %113 = arith.addf %106, %112 : vector<64x8xf32>
    %c1_107 = arith.constant 1 : index
    %c0_108 = arith.constant 0 : index
    %c0_109 = arith.constant 0 : index
    %114 = vector.load %arg12[%c1_107, %c0_108, %c0_109] : memref<10x10x8xf32, #tpu.memory_space<vmem>>, vector<8x8x8xf32>
    %115 = vector.shape_cast %114 : vector<8x8x8xf32> to vector<64x8xf32>
    %116 = arith.truncf %115 : vector<64x8xf32> to vector<64x8xbf16>
    %c3_110 = arith.constant 3 : index
    %c0_111 = arith.constant 0 : index
    %c0_112 = arith.constant 0 : index
    %117 = vector.load %arg8[%c3_110, %c0_111, %c0_112] : memref<9x8x8xbf16, #tpu.memory_space<vmem>>, vector<1x8x8xbf16>
    %118 = vector.shape_cast %117 : vector<1x8x8xbf16> to vector<8x8xbf16>
    %cst_113 = arith.constant dense<0.000000e+00> : vector<64x8xf32>
    %119 = tpu.matmul %116, %118, %cst_113 {dimension_numbers = #tpu.dot_dimension_numbers<[1], [0], [0], [1], [0, 0, 1, 1], [], []>} : vector<64x8xbf16>, vector<8x8xbf16>, vector<64x8xf32> -> vector<64x8xf32>
    %120 = arith.addf %113, %119 : vector<64x8xf32>
    %c1_114 = arith.constant 1 : index
    %c1_115 = arith.constant 1 : index
    %c0_116 = arith.constant 0 : index
    %121 = vector.load %arg12[%c1_114, %c1_115, %c0_116] : memref<10x10x8xf32, #tpu.memory_space<vmem>>, vector<8x8x8xf32>
    %122 = vector.shape_cast %121 : vector<8x8x8xf32> to vector<64x8xf32>
    %123 = arith.truncf %122 : vector<64x8xf32> to vector<64x8xbf16>
    %c4_117 = arith.constant 4 : index
    %c0_118 = arith.constant 0 : index
    %c0_119 = arith.constant 0 : index
    %124 = vector.load %arg8[%c4_117, %c0_118, %c0_119] : memref<9x8x8xbf16, #tpu.memory_space<vmem>>, vector<1x8x8xbf16>
    %125 = vector.shape_cast %124 : vector<1x8x8xbf16> to vector<8x8xbf16>
    %cst_120 = arith.constant dense<0.000000e+00> : vector<64x8xf32>
    %126 = tpu.matmul %123, %125, %cst_120 {dimension_numbers = #tpu.dot_dimension_numbers<[1], [0], [0], [1], [0, 0, 1, 1], [], []>} : vector<64x8xbf16>, vector<8x8xbf16>, vector<64x8xf32> -> vector<64x8xf32>
    %127 = arith.addf %120, %126 : vector<64x8xf32>
    %c1_121 = arith.constant 1 : index
    %c2_122 = arith.constant 2 : index
    %c0_123 = arith.constant 0 : index
    %128 = vector.load %arg12[%c1_121, %c2_122, %c0_123] : memref<10x10x8xf32, #tpu.memory_space<vmem>>, vector<8x8x8xf32>
    %129 = vector.shape_cast %128 : vector<8x8x8xf32> to vector<64x8xf32>
    %130 = arith.truncf %129 : vector<64x8xf32> to vector<64x8xbf16>
    %c5_124 = arith.constant 5 : index
    %c0_125 = arith.constant 0 : index
    %c0_126 = arith.constant 0 : index
    %131 = vector.load %arg8[%c5_124, %c0_125, %c0_126] : memref<9x8x8xbf16, #tpu.memory_space<vmem>>, vector<1x8x8xbf16>
    %132 = vector.shape_cast %131 : vector<1x8x8xbf16> to vector<8x8xbf16>
    %cst_127 = arith.constant dense<0.000000e+00> : vector<64x8xf32>
    %133 = tpu.matmul %130, %132, %cst_127 {dimension_numbers = #tpu.dot_dimension_numbers<[1], [0], [0], [1], [0, 0, 1, 1], [], []>} : vector<64x8xbf16>, vector<8x8xbf16>, vector<64x8xf32> -> vector<64x8xf32>
    %134 = arith.addf %127, %133 : vector<64x8xf32>
    %c2_128 = arith.constant 2 : index
    %c0_129 = arith.constant 0 : index
    %c0_130 = arith.constant 0 : index
    %135 = vector.load %arg12[%c2_128, %c0_129, %c0_130] : memref<10x10x8xf32, #tpu.memory_space<vmem>>, vector<8x8x8xf32>
    %136 = vector.shape_cast %135 : vector<8x8x8xf32> to vector<64x8xf32>
    %137 = arith.truncf %136 : vector<64x8xf32> to vector<64x8xbf16>
    %c6_131 = arith.constant 6 : index
    %c0_132 = arith.constant 0 : index
    %c0_133 = arith.constant 0 : index
    %138 = vector.load %arg8[%c6_131, %c0_132, %c0_133] : memref<9x8x8xbf16, #tpu.memory_space<vmem>>, vector<1x8x8xbf16>
    %139 = vector.shape_cast %138 : vector<1x8x8xbf16> to vector<8x8xbf16>
    %cst_134 = arith.constant dense<0.000000e+00> : vector<64x8xf32>
    %140 = tpu.matmul %137, %139, %cst_134 {dimension_numbers = #tpu.dot_dimension_numbers<[1], [0], [0], [1], [0, 0, 1, 1], [], []>} : vector<64x8xbf16>, vector<8x8xbf16>, vector<64x8xf32> -> vector<64x8xf32>
    %141 = arith.addf %134, %140 : vector<64x8xf32>
    %c2_135 = arith.constant 2 : index
    %c1_136 = arith.constant 1 : index
    %c0_137 = arith.constant 0 : index
    %142 = vector.load %arg12[%c2_135, %c1_136, %c0_137] : memref<10x10x8xf32, #tpu.memory_space<vmem>>, vector<8x8x8xf32>
    %143 = vector.shape_cast %142 : vector<8x8x8xf32> to vector<64x8xf32>
    %144 = arith.truncf %143 : vector<64x8xf32> to vector<64x8xbf16>
    %c7_138 = arith.constant 7 : index
    %c0_139 = arith.constant 0 : index
    %c0_140 = arith.constant 0 : index
    %145 = vector.load %arg8[%c7_138, %c0_139, %c0_140] : memref<9x8x8xbf16, #tpu.memory_space<vmem>>, vector<1x8x8xbf16>
    %146 = vector.shape_cast %145 : vector<1x8x8xbf16> to vector<8x8xbf16>
    %cst_141 = arith.constant dense<0.000000e+00> : vector<64x8xf32>
    %147 = tpu.matmul %144, %146, %cst_141 {dimension_numbers = #tpu.dot_dimension_numbers<[1], [0], [0], [1], [0, 0, 1, 1], [], []>} : vector<64x8xbf16>, vector<8x8xbf16>, vector<64x8xf32> -> vector<64x8xf32>
    %148 = arith.addf %141, %147 : vector<64x8xf32>
    %c2_142 = arith.constant 2 : index
    %c2_143 = arith.constant 2 : index
    %c0_144 = arith.constant 0 : index
    %149 = vector.load %arg12[%c2_142, %c2_143, %c0_144] : memref<10x10x8xf32, #tpu.memory_space<vmem>>, vector<8x8x8xf32>
    %150 = vector.shape_cast %149 : vector<8x8x8xf32> to vector<64x8xf32>
    %151 = arith.truncf %150 : vector<64x8xf32> to vector<64x8xbf16>
    %c8_145 = arith.constant 8 : index
    %c0_146 = arith.constant 0 : index
    %c0_147 = arith.constant 0 : index
    %152 = vector.load %arg8[%c8_145, %c0_146, %c0_147] : memref<9x8x8xbf16, #tpu.memory_space<vmem>>, vector<1x8x8xbf16>
    %153 = vector.shape_cast %152 : vector<1x8x8xbf16> to vector<8x8xbf16>
    %cst_148 = arith.constant dense<0.000000e+00> : vector<64x8xf32>
    %154 = tpu.matmul %151, %153, %cst_148 {dimension_numbers = #tpu.dot_dimension_numbers<[1], [0], [0], [1], [0, 0, 1, 1], [], []>} : vector<64x8xbf16>, vector<8x8xbf16>, vector<64x8xf32> -> vector<64x8xf32>
    %155 = arith.addf %148, %154 : vector<64x8xf32>
    %156 = arith.addf %155, %51 : vector<64x8xf32>
    %c0_149 = arith.constant 0 : index
    %c0_150 = arith.constant 0 : index
    %c0_151 = arith.constant 0 : index
    %157 = vector.load %arg10[%c0_149, %c0_150, %c0_151] : memref<1x64x8xf32, #tpu.memory_space<vmem>>, vector<1x64x8xf32>
    %158 = vector.shape_cast %157 : vector<1x64x8xf32> to vector<64x8xf32>
    %159 = vector.shape_cast %156 : vector<64x8xf32> to vector<1x64x8xf32>
    tpu.vector_store %arg10[%c0_149, %c0_150, %c0_151], %159 {strides = array<i32>} : memref<1x64x8xf32, #tpu.memory_space<vmem>>, vector<1x64x8xf32>,
    return
  }
  func.func @transform_0(%arg0: i32) -> (i32, i32, i32, i32) {
    %c0_i32 = arith.constant 0 : i32
    %c0_i32_0 = arith.constant 0 : i32
    %c0_i32_1 = arith.constant 0 : i32
    %c0_i32_2 = arith.constant 0 : i32
    return %arg0, %c0_i32, %c0_i32_0, %c0_i32_1 : i32, i32, i32, i32
  }
  func.func @transform_1(%arg0: i32) -> (i32, i32, i32) {
    %c0_i32 = arith.constant 0 : i32
    %c0_i32_0 = arith.constant 0 : i32
    %c0_i32_1 = arith.constant 0 : i32
    %c0_i32_2 = arith.constant 0 : i32
    return %c0_i32, %c0_i32_0, %c0_i32_1 : i32, i32, i32
  }
  func.func @transform_2(%arg0: i32) -> (i32, i32, i32) {
    %c0_i32 = arith.constant 0 : i32
    %c0_i32_0 = arith.constant 0 : i32
    %c0_i32_1 = arith.constant 0 : i32
    %c0_i32_2 = arith.constant 0 : i32
    return %c0_i32, %c0_i32_0, %c0_i32_1 : i32, i32, i32
  }
  func.func @transform_3(%arg0: i32) -> (i32, i32, i32) {
    %c0_i32 = arith.constant 0 : i32
    %c0_i32_0 = arith.constant 0 : i32
    %c0_i32_1 = arith.constant 0 : i32
    %c0_i32_2 = arith.constant 0 : i32
    return %c0_i32, %c0_i32_0, %c0_i32_1 : i32, i32, i32
  }
  func.func @transform_4(%arg0: i32) -> (i32, i32) {
    %c0_i32 = arith.constant 0 : i32
    %c0_i32_0 = arith.constant 0 : i32
    %c0_i32_1 = arith.constant 0 : i32
    return %c0_i32, %c0_i32_0 : i32, i32
  }
  func.func @transform_5(%arg0: i32) -> (i32, i32) {
    %c0_i32 = arith.constant 0 : i32
    %c0_i32_0 = arith.constant 0 : i32
    %c0_i32_1 = arith.constant 0 : i32
    return %c0_i32, %c0_i32_0 : i32, i32
  }
  func.func @transform_6(%arg0: i32) -> (i32, i32, i32) {
    %c0_i32 = arith.constant 0 : i32
    %c0_i32_0 = arith.constant 0 : i32
    %c0_i32_1 = arith.constant 0 : i32
    %c0_i32_2 = arith.constant 0 : i32
    return %c0_i32, %c0_i32_0, %c0_i32_1 : i32, i32, i32
  }
  func.func @transform_7(%arg0: i32) -> (i32, i32, i32) {
    %c0_i32 = arith.constant 0 : i32
    %c0_i32_0 = arith.constant 0 : i32
    %c0_i32_1 = arith.constant 0 : i32
    %c0_i32_2 = arith.constant 0 : i32
    return %c0_i32, %c0_i32_0, %c0_i32_1 : i32, i32, i32
  }
  func.func @transform_8(%arg0: i32) -> (i32, i32) {
    %c0_i32 = arith.constant 0 : i32
    %c0_i32_0 = arith.constant 0 : i32
    %c0_i32_1 = arith.constant 0 : i32
    return %c0_i32, %c0_i32_0 : i32, i32
  }
  func.func @transform_9(%arg0: i32) -> (i32, i32, i32) {
    %c0_i32 = arith.constant 0 : i32
    %c0_i32_0 = arith.constant 0 : i32
    %c0_i32_1 = arith.constant 0 : i32
    return %arg0, %c0_i32, %c0_i32_0 : i32, i32, i32
  }
}

</mosaic_0001>

<llo_original>
// kernel: basic_block_forward.1
$region0: #{basic_block_forward.1}
  #allocation0 [shape = 'u32[]', space=smem, size = 0x4, offset = 0x4, fixed_abs, tag = 'smem constant byte address 0x4 - core index']
  #allocation1 [shape = 'u32[144,128]{1,0:T(1,128)}', space=vmem, size = 0x12000, scoped, tag = 'internal scratch']
  #allocation2 [shape = 'f32[18,18,4]{2,1,0:T(8,128)}', space=vmem, size = 0x36000, scoped, tag = 'scratch operand']
  #allocation3 [shape = 'f32[10,10,8]{2,1,0:T(8,128)}', space=vmem, size = 0x14000, scoped, tag = 'scratch operand']
  %s0 = inlined_call_operand.hbm [shape: f32[2,18,18,4], index: 0, kind: input, shape index: {}]
  %s1 = inlined_call_operand.hbm [shape: f32[18,18,1], index: 1, kind: input, shape index: {}]
  %s2 = inlined_call_operand.hbm [shape: f32[1,1,4], index: 2, kind: input, shape index: {}]
  %s3 = inlined_call_operand.hbm [shape: f32[1,1,4], index: 3, kind: input, shape index: {}]
  %s4 = inlined_call_operand.hbm [shape: f32[1,8], index: 4, kind: input, shape index: {}]
  %s5 = inlined_call_operand.hbm [shape: f32[1,8], index: 5, kind: input, shape index: {}]
  %s6 = inlined_call_operand.hbm [shape: bf16[9,4,8], index: 6, kind: input, shape index: {}]
  %s7 = inlined_call_operand.hbm [shape: bf16[9,8,8], index: 7, kind: input, shape index: {}]
  %s8 = inlined_call_operand.hbm [shape: bf16[4,8], index: 8, kind: input, shape index: {}]
  %s9 = inlined_call_operand.hbm [shape: f32[2,64,8], index: 9, kind: output, shape index: {}]
  %s10 = sld [smem:[#allocation0]]
  $region105: #{basic_block_forward.1} parent=0
    _
  %s12 = ssub.s32 1, %s10
  %s13 = scalar_select 0, %s12, %s10
  $region1: #{basic_block_forward.1} parent=0
    #allocation4 [shape = 'u8[442368]{0}', space=vmem, size = 0x6c000, scoped, tag = 'input window, operand 0']
    #allocation5 [shape = 's32[2]{0}', space=sflag, size = 0x8, scoped, tag = 'scoped memory for basic_block_forward.1']
    #allocation6 [shape = 's32[2]{0}', space=sflag, size = 0x8, scoped, tag = 'scoped memory for basic_block_forward.1']
    #allocation7 [shape = 'u8[221184]{0}', space=vmem, size = 0x36000, scoped, tag = 'input window, operand 1, single buffered']
    #allocation8 [shape = 's32[1]{0}', space=sflag, size = 0x4, scoped, tag = 'scoped memory for basic_block_forward.1']
    #allocation9 [shape = 'u8[512]{0}', space=vmem, size = 0x400, scoped, tag = 'input window, operand 2, single buffered']
    #allocation10 [shape = 'u8[512]{0}', space=vmem, size = 0x400, scoped, tag = 'input window, operand 3, single buffered']
    #allocation11 [shape = 's32[1]{0}', space=sflag, size = 0x4, scoped, tag = 'scoped memory for basic_block_forward.1']
    #allocation12 [shape = 'u8[512]{0}', space=vmem, size = 0x400, scoped, tag = 'input window, operand 4, single buffered']
    #allocation13 [shape = 'u8[512]{0}', space=vmem, size = 0x400, scoped, tag = 'input window, operand 5, single buffered']
    #allocation14 [shape = 's32[1]{0}', space=sflag, size = 0x4, scoped, tag = 'scoped memory for basic_block_forward.1']
    #allocation15 [shape = 'u8[9216]{0}', space=vmem, size = 0x2400, scoped, tag = 'input window, operand 6, single buffered']
    #allocation16 [shape = 'u8[18432]{0}', space=vmem, size = 0x4800, scoped, tag = 'input window, operand 7, single buffered']
    #allocation17 [shape = 's32[1]{0}', space=sflag, size = 0x4, scoped, tag = 'scoped memory for basic_block_forward.1']
    #allocation18 [shape = 'u8[1024]{0}', space=vmem, size = 0x400, scoped, tag = 'input window, operand 8, single buffered']
    #allocation19 [shape = 'u8[65536]{0}', space=vmem, size = 0x10000, scoped, tag = 'output window, operand 0']
    %14 = vsyncpa [#allocation5], 0
    %s15 = scalar_lea.sflag [#allocation5], 1
    %16 = vsyncpa %s15, 0
    %17 = vsyncpa [#allocation8], 0
    %18 = vsyncpa [#allocation11], 0
    %19 = vsyncpa [#allocation14], 0
    %20 = vsyncpa [#allocation17], 0
    %21 = vsyncpa [#allocation6], 0
    %s22 = scalar_lea.sflag [#allocation6], 1
    %23 = vsyncpa %s22, 0
    loop: start=0, step=1, limit=4
    $region2: #{basic_block_forward.1} parent=1 // loop_pre_header
      _
    $region3: #{basic_block_forward.1} parent=1 // loop_header
      %s25 = sphi 0, %s29
      %p26 = scmp.ge.s32.totalorder %s25, 4
      %s35 = sphi 0, %s37
      %s38 = sphi 0, %s35
      %s39 = sphi 0, %s38
      %s55 = sphi 0, %s39
      %s59 = sphi 0, %s59
      %s61 = sphi 0, %s59
      %s62 = sphi 0, %s61
      %s76 = sphi 0, %s62
      %s80 = sphi 0, %s80
      %s82 = sphi 0, %s80
      %s83 = sphi 0, %s82
      %s97 = sphi 0, %s83
      %s101 = sphi 0, %s101
      %s103 = sphi 0, %s101
      %s104 = sphi 0, %s103
      %s118 = sphi 0, %s104
      %s122 = sphi 0, %s122
      %s124 = sphi 0, %s122
      %s125 = sphi 0, %s124
      %s139 = sphi 0, %s125
      %s143 = sphi 0, %s143
      %s145 = sphi 0, %s143
      %s146 = sphi 0, %s145
      %s160 = sphi 0, %s146
      %s164 = sphi 0, %s164
      %s166 = sphi 0, %s164
      %s167 = sphi 0, %s166
      %s181 = sphi 0, %s167
      %s185 = sphi 0, %s185
      %s187 = sphi 0, %s185
      %s188 = sphi 0, %s187
      %s202 = sphi 0, %s188
      %s206 = sphi 0, %s206
      %s208 = sphi 0, %s206
      %s209 = sphi 0, %s208
      %s223 = sphi 0, %s209
      %s229 = sphi 0, %s231
      %s232 = sphi 0, %s229
      %s233 = sphi 0, %s232
      %s249 = sphi 0, %s233
    $region4: #{basic_block_forward.1} parent=1 // loop_header_branch
      %28 = sbr.rel (%p26) target = $region8
    $region5: #{basic_block_forward.1} parent=1 // loop_body
      %s30 = ssub.s32 %s25, 1
      %s31 = ssub.s32 %s25, 2
      %s32 = sadd.s32 %s25, 1
      %s33 = ssub.s32 %s25, %s32
      %p34 = scmp.eq.s32.totalorder %s33, 0
      %s36 = sadd.s32 %s35, 1
      %s37 = scalar_select %p34, %s35, %s36
      %p40 = pneg %p34
      %p41 = scmp.eq.s32.totalorder %s25, 1
      %p42 = por %p40, %p41
      %p43 = scmp.ne.s32.totalorder %s35, %s38
      %p44 = scmp.eq.s32.totalorder %s25, 0
      %p45 = por %p43, %p44
      %p46 = scmp.ne.s32.totalorder %s35, %s38
      %p47 = scmp.eq.s32.totalorder %s30, 1
      %p48 = por %p46, %p47
      %p49 = scmp.ne.s32.totalorder %s38, %s39
      %p50 = scmp.eq.s32.totalorder %s30, 0
      %p51 = por %p49, %p50
      %p52 = scmp.ne.s32.totalorder %s38, %s39
      %p53 = scmp.eq.s32.totalorder %s31, 1
      %p54 = por %p52, %p53
      %p56 = scmp.ne.s32.totalorder %s39, %s55
      %p57 = scmp.eq.s32.totalorder %s31, 0
      %p58 = por %p56, %p57
      %s60 = sadd.s32 %s59, 1
      %p63 = scmp.eq.s32.totalorder %s25, 1
      %p64 = scmp.ne.s32.totalorder %s59, %s61
      %p65 = scmp.eq.s32.totalorder %s25, 0
      %p66 = por %p64, %p65
      %p67 = scmp.ne.s32.totalorder %s59, %s61
      %p68 = scmp.eq.s32.totalorder %s30, 1
      %p69 = por %p67, %p68
      %p70 = scmp.ne.s32.totalorder %s61, %s62
      %p71 = scmp.eq.s32.totalorder %s30, 0
      %p72 = por %p70, %p71
      %p73 = scmp.ne.s32.totalorder %s61, %s62
      %p74 = scmp.eq.s32.totalorder %s31, 1
      %p75 = por %p73, %p74
      %p77 = scmp.ne.s32.totalorder %s62, %s76
      %p78 = scmp.eq.s32.totalorder %s31, 0
      %p79 = por %p77, %p78
      %s81 = sadd.s32 %s80, 1
      %p84 = scmp.eq.s32.totalorder %s25, 1
      %p85 = scmp.ne.s32.totalorder %s80, %s82
      %p86 = scmp.eq.s32.totalorder %s25, 0
      %p87 = por %p85, %p86
      %p88 = scmp.ne.s32.totalorder %s80, %s82
      %p89 = scmp.eq.s32.totalorder %s30, 1
      %p90 = por %p88, %p89
      %p91 = scmp.ne.s32.totalorder %s82, %s83
      %p92 = scmp.eq.s32.totalorder %s30, 0
      %p93 = por %p91, %p92
      %p94 = scmp.ne.s32.totalorder %s82, %s83
      %p95 = scmp.eq.s32.totalorder %s31, 1
      %p96 = por %p94, %p95
      %p98 = scmp.ne.s32.totalorder %s83, %s97
      %p99 = scmp.eq.s32.totalorder %s31, 0
      %p100 = por %p98, %p99
      %s102 = sadd.s32 %s101, 1
      %p105 = scmp.eq.s32.totalorder %s25, 1
      %p106 = scmp.ne.s32.totalorder %s101, %s103
      %p107 = scmp.eq.s32.totalorder %s25, 0
      %p108 = por %p106, %p107
      %p109 = scmp.ne.s32.totalorder %s101, %s103
      %p110 = scmp.eq.s32.totalorder %s30, 1
      %p111 = por %p109, %p110
      %p112 = scmp.ne.s32.totalorder %s103, %s104
      %p113 = scmp.eq.s32.totalorder %s30, 0
      %p114 = por %p112, %p113
      %p115 = scmp.ne.s32.totalorder %s103, %s104
      %p116 = scmp.eq.s32.totalorder %s31, 1
      %p117 = por %p115, %p116
      %p119 = scmp.ne.s32.totalorder %s104, %s118
      %p120 = scmp.eq.s32.totalorder %s31, 0
      %p121 = por %p119, %p120
      %s123 = sadd.s32 %s122, 1
      %p126 = scmp.eq.s32.totalorder %s25, 1
      %p127 = scmp.ne.s32.totalorder %s122, %s124
      %p128 = scmp.eq.s32.totalorder %s25, 0
      %p129 = por %p127, %p128
      %p130 = scmp.ne.s32.totalorder %s122, %s124
      %p131 = scmp.eq.s32.totalorder %s30, 1
      %p132 = por %p130, %p131
      %p133 = scmp.ne.s32.totalorder %s124, %s125
      %p134 = scmp.eq.s32.totalorder %s30, 0
      %p135 = por %p133, %p134
      %p136 = scmp.ne.s32.totalorder %s124, %s125
      %p137 = scmp.eq.s32.totalorder %s31, 1
      %p138 = por %p136, %p137
      %p140 = scmp.ne.s32.totalorder %s125, %s139
      %p141 = scmp.eq.s32.totalorder %s31, 0
      %p142 = por %p140, %p141
      %s144 = sadd.s32 %s143, 1
      %p147 = scmp.eq.s32.totalorder %s25, 1
      %p148 = scmp.ne.s32.totalorder %s143, %s145
      %p149 = scmp.eq.s32.totalorder %s25, 0
      %p150 = por %p148, %p149
      %p151 = scmp.ne.s32.totalorder %s143, %s145
      %p152 = scmp.eq.s32.totalorder %s30, 1
      %p153 = por %p151, %p152
      %p154 = scmp.ne.s32.totalorder %s145, %s146
      %p155 = scmp.eq.s32.totalorder %s30, 0
      %p156 = por %p154, %p155
      %p157 = scmp.ne.s32.totalorder %s145, %s146
      %p158 = scmp.eq.s32.totalorder %s31, 1
      %p159 = por %p157, %p158
      %p161 = scmp.ne.s32.totalorder %s146, %s160
      %p162 = scmp.eq.s32.totalorder %s31, 0
      %p163 = por %p161, %p162
      %s165 = sadd.s32 %s164, 1
      %p168 = scmp.eq.s32.totalorder %s25, 1
      %p169 = scmp.ne.s32.totalorder %s164, %s166
      %p170 = scmp.eq.s32.totalorder %s25, 0
      %p171 = por %p169, %p170
      %p172 = scmp.ne.s32.totalorder %s164, %s166
      %p173 = scmp.eq.s32.totalorder %s30, 1
      %p174 = por %p172, %p173
      %p175 = scmp.ne.s32.totalorder %s166, %s167
      %p176 = scmp.eq.s32.totalorder %s30, 0
      %p177 = por %p175, %p176
      %p178 = scmp.ne.s32.totalorder %s166, %s167
      %p179 = scmp.eq.s32.totalorder %s31, 1
      %p180 = por %p178, %p179
      %p182 = scmp.ne.s32.totalorder %s167, %s181
      %p183 = scmp.eq.s32.totalorder %s31, 0
      %p184 = por %p182, %p183
      %s186 = sadd.s32 %s185, 1
      %p189 = scmp.eq.s32.totalorder %s25, 1
      %p190 = scmp.ne.s32.totalorder %s185, %s187
      %p191 = scmp.eq.s32.totalorder %s25, 0
      %p192 = por %p190, %p191
      %p193 = scmp.ne.s32.totalorder %s185, %s187
      %p194 = scmp.eq.s32.totalorder %s30, 1
      %p195 = por %p193, %p194
      %p196 = scmp.ne.s32.totalorder %s187, %s188
      %p197 = scmp.eq.s32.totalorder %s30, 0
      %p198 = por %p196, %p197
      %p199 = scmp.ne.s32.totalorder %s187, %s188
      %p200 = scmp.eq.s32.totalorder %s31, 1
      %p201 = por %p199, %p200
      %p203 = scmp.ne.s32.totalorder %s188, %s202
      %p204 = scmp.eq.s32.totalorder %s31, 0
      %p205 = por %p203, %p204
      %s207 = sadd.s32 %s206, 1
      %p210 = scmp.eq.s32.totalorder %s25, 1
      %p211 = scmp.ne.s32.totalorder %s206, %s208
      %p212 = scmp.eq.s32.totalorder %s25, 0
      %p213 = por %p211, %p212
      %p214 = scmp.ne.s32.totalorder %s206, %s208
      %p215 = scmp.eq.s32.totalorder %s30, 1
      %p216 = por %p214, %p215
      %p217 = scmp.ne.s32.totalorder %s208, %s209
      %p218 = scmp.eq.s32.totalorder %s30, 0
      %p219 = por %p217, %p218
      %p220 = scmp.ne.s32.totalorder %s208, %s209
      %p221 = scmp.eq.s32.totalorder %s31, 1
      %p222 = por %p220, %p221
      %p224 = scmp.ne.s32.totalorder %s209, %s223
      %p225 = scmp.eq.s32.totalorder %s31, 0
      %p226 = por %p224, %p225
      %s227 = ssub.s32 %s25, %s32
      %p228 = scmp.eq.s32.totalorder %s227, 0
      %s230 = sadd.s32 %s229, 1
      %s231 = scalar_select %p228, %s229, %s230
      %p234 = pneg %p228
      %p235 = scmp.eq.s32.totalorder %s25, 1
      %p236 = por %p234, %p235
      %p237 = scmp.ne.s32.totalorder %s229, %s232
      %p238 = scmp.eq.s32.totalorder %s25, 0
      %p239 = por %p237, %p238
      %p240 = scmp.ne.s32.totalorder %s229, %s232
      %p241 = scmp.eq.s32.totalorder %s30, 1
      %p242 = por %p240, %p241
      %p243 = scmp.ne.s32.totalorder %s232, %s233
      %p244 = scmp.eq.s32.totalorder %s30, 0
      %p245 = por %p243, %p244
      %p246 = scmp.ne.s32.totalorder %s232, %s233
      %p247 = scmp.eq.s32.totalorder %s31, 1
      %p248 = por %p246, %p247
      %p250 = scmp.ne.s32.totalorder %s233, %s249
      %p251 = scmp.eq.s32.totalorder %s31, 0
      %p252 = por %p250, %p251
      %p253 = scmp.le.s32.totalorder 1, %s25
      %p254 = scmp.lt.s32.totalorder %s25, 3
      %p255 = pnand %p253, %p254
      %p256 = pneg %p255
      // Predicated region
      $region9: #{basic_block_forward.1} parent=5 // pred_check
        _
      $region10: #{basic_block_forward.1} parent=5 // pred_check_branch
        %258 = sbr.rel (%p255) target = $region12
      $region11: #{basic_block_forward.1} parent=5 // pred_region
        %s259 = ssub.s32 %s25, 1
        // Predicated region
        $region13: #{basic_block_forward.1} parent=11 // pred_check
          %p260 = pneg %p72
        $region14: #{basic_block_forward.1} parent=11 // pred_check_branch
          %262 = sbr.rel (%p260) target = $region16
        $region15: #{basic_block_forward.1} parent=11 // pred_region
          %s264 = ssub.s32 6912, 6912
          %265 = vsyncadd [#allocation8], %s264
          %s266 = sshll.u32 [#allocation7], 4
          %s267 = int_to_ptr.vmem [resolvable:$true] %s266
          %272 = dma.hbm_to_vmem [thread:$0]  %s1, 6912, %s267, [#allocation8], 128, 128, 8
        $region16: #{basic_block_forward.1} parent=11 // pred_fallthru
          _
        // Predicated region
        $region17: #{basic_block_forward.1} parent=11 // pred_check
          %p273 = pneg %p93
        $region18: #{basic_block_forward.1} parent=11 // pred_check_branch
          %275 = sbr.rel (%p273) target = $region20
        $region19: #{basic_block_forward.1} parent=11 // pred_region
          %s277 = ssub.s32 16, 16
          %278 = vsyncadd [#allocation8], %s277
          %s280 = sshll.u32 [#allocation9], 4
          %s281 = int_to_ptr.vmem [resolvable:$true] %s280
          %283 = dma.hbm_to_vmem [thread:$0]  %s2, 16, %s281, [#allocation8]
        $region20: #{basic_block_forward.1} parent=11 // pred_fallthru
          _
        // Predicated region
        $region21: #{basic_block_forward.1} parent=11 // pred_check
          %p284 = pneg %p114
        $region22: #{basic_block_forward.1} parent=11 // pred_check_branch
          %286 = sbr.rel (%p284) target = $region24
        $region23: #{basic_block_forward.1} parent=11 // pred_region
          %s288 = ssub.s32 16, 16
          %289 = vsyncadd [#allocation11], %s288
          %s291 = sshll.u32 [#allocation10], 4
          %s292 = int_to_ptr.vmem [resolvable:$true] %s291
          %294 = dma.hbm_to_vmem [thread:$0]  %s3, 16, %s292, [#allocation11]
        $region24: #{basic_block_forward.1} parent=11 // pred_fallthru
          _
        // Predicated region
        $region25: #{basic_block_forward.1} parent=11 // pred_check
          %p295 = pneg %p135
        $region26: #{basic_block_forward.1} parent=11 // pred_check_branch
          %297 = sbr.rel (%p295) target = $region28
        $region27: #{basic_block_forward.1} parent=11 // pred_region
          %s299 = ssub.s32 16, 16
          %300 = vsyncadd [#allocation11], %s299
          %s302 = sshll.u32 [#allocation12], 4
          %s303 = int_to_ptr.vmem [resolvable:$true] %s302
          %305 = dma.hbm_to_vmem [thread:$0]  %s4, 16, %s303, [#allocation11]
        $region28: #{basic_block_forward.1} parent=11 // pred_fallthru
          _
        // Predicated region
        $region29: #{basic_block_forward.1} parent=11 // pred_check
          %p306 = pneg %p156
        $region30: #{basic_block_forward.1} parent=11 // pred_check_branch
          %308 = sbr.rel (%p306) target = $region32
        $region31: #{basic_block_forward.1} parent=11 // pred_region
          %s310 = ssub.s32 16, 16
          %311 = vsyncadd [#allocation14], %s310
          %s313 = sshll.u32 [#allocation13], 4
          %s314 = int_to_ptr.vmem [resolvable:$true] %s313
          %316 = dma.hbm_to_vmem [thread:$0]  %s5, 16, %s314, [#allocation14]
        $region32: #{basic_block_forward.1} parent=11 // pred_fallthru
          _
        // Predicated region
        $region33: #{basic_block_forward.1} parent=11 // pred_check
          %p317 = pneg %p177
        $region34: #{basic_block_forward.1} parent=11 // pred_check_branch
          %319 = sbr.rel (%p317) target = $region36
        $region35: #{basic_block_forward.1} parent=11 // pred_region
          %s321 = ssub.s32 288, 288
          %322 = vsyncadd [#allocation14], %s321
          %s323 = sshll.u32 [#allocation15], 4
          %s324 = int_to_ptr.vmem [resolvable:$true] %s323
          %329 = dma.hbm_to_vmem [thread:$0]  %s6, 288, %s324, [#allocation14], 32, 32, 2
        $region36: #{basic_block_forward.1} parent=11 // pred_fallthru
          _
        // Predicated region
        $region37: #{basic_block_forward.1} parent=11 // pred_check
          %p330 = pneg %p198
        $region38: #{basic_block_forward.1} parent=11 // pred_check_branch
          %332 = sbr.rel (%p330) target = $region40
        $region39: #{basic_block_forward.1} parent=11 // pred_region
          %s334 = ssub.s32 576, 576
          %335 = vsyncadd [#allocation17], %s334
          %s336 = sshll.u32 [#allocation16], 4
          %s337 = int_to_ptr.vmem [resolvable:$true] %s336
          %342 = dma.hbm_to_vmem [thread:$0]  %s7, 576, %s337, [#allocation17], 64, 64, 4
        $region40: #{basic_block_forward.1} parent=11 // pred_fallthru
          _
        // Predicated region
        $region41: #{basic_block_forward.1} parent=11 // pred_check
          %p343 = pneg %p219
        $region42: #{basic_block_forward.1} parent=11 // pred_check_branch
          %345 = sbr.rel (%p343) target = $region44
        $region43: #{basic_block_forward.1} parent=11 // pred_region
          %s347 = ssub.s32 32, 32
          %348 = vsyncadd [#allocation17], %s347
          %s350 = sshll.u32 [#allocation18], 4
          %s351 = int_to_ptr.vmem [resolvable:$true] %s350
          %353 = dma.hbm_to_vmem [thread:$0]  %s8, 32, %s351, [#allocation17]
        $region44: #{basic_block_forward.1} parent=11 // pred_fallthru
          _
      $region12: #{basic_block_forward.1} parent=5 // pred_fallthru
        _
      %p354 = scmp.lt.s32.totalorder %s25, 2
      // Predicated region
      $region45: #{basic_block_forward.1} parent=5 // pred_check
        %p355 = pneg %p354
      $region46: #{basic_block_forward.1} parent=5 // pred_check_branch
        %357 = sbr.rel (%p355) target = $region48
      $region47: #{basic_block_forward.1} parent=5 // pred_region
        // Predicated region
        $region49: #{basic_block_forward.1} parent=47 // pred_check
          %p358 = pneg %p45
        $region50: #{basic_block_forward.1} parent=47 // pred_check_branch
          %360 = sbr.rel (%p358) target = $region52
        $region51: #{basic_block_forward.1} parent=47 // pred_region
          %s361 = sand.u32 %s35, 1
          %s362 = scalar_lea.sflag [#allocation5], %s361
          %s363 = sand.u32 %s35, 1
          %s364 = smul.addr %s363, 432
          %s365 = scalar_lea.vmem [#allocation4], %s364
          %s367 = ssub.s32 6912, 6912
          %368 = vsyncadd %s362, %s367
          %s369 = smul.addr %s25, 54
          %s370 = smul.addr %s369, 128
          %s371 = scalar_lea.hbm %s0, %s370
          %s372 = sshll.u32 %s365, 4
          %s373 = int_to_ptr.vmem [resolvable:$true] %s372
          %378 = dma.hbm_to_vmem [thread:$0]  %s371, 6912, %s373, %s362, 128, 128, 8
        $region52: #{basic_block_forward.1} parent=47 // pred_fallthru
          _
      $region48: #{basic_block_forward.1} parent=5 // pred_fallthru
        _
      %p379 = scmp.le.s32.totalorder 1, %s25
      %p380 = scmp.lt.s32.totalorder %s25, 3
      %p381 = pnand %p379, %p380
      %p382 = pneg %p381
      // Predicated region
      $region53: #{basic_block_forward.1} parent=5 // pred_check
        _
      $region54: #{basic_block_forward.1} parent=5 // pred_check_branch
        %384 = sbr.rel (%p381) target = $region56
      $region55: #{basic_block_forward.1} parent=5 // pred_region
        %s385 = ssub.s32 %s25, 1
        %s386 = sand.u32 %s38, 1
        %s387 = scalar_lea.sflag [#allocation5], %s386
        %s388 = sand.u32 %s38, 1
        %s389 = smul.addr %s388, 432
        %s390 = scalar_lea.vmem [#allocation4], %s389
        // Predicated region
        $region57: #{basic_block_forward.1} parent=55 // pred_check
          %p391 = pneg %p51
        $region58: #{basic_block_forward.1} parent=55 // pred_check_branch
          %393 = sbr.rel (%p391) target = $region60
        $region59: #{basic_block_forward.1} parent=55 // pred_region
          %394 = dma.done %s387, 6912
        $region60: #{basic_block_forward.1} parent=55 // pred_fallthru
          _
        // Predicated region
        $region61: #{basic_block_forward.1} parent=55 // pred_check
          %p395 = pneg %p72
        $region62: #{basic_block_forward.1} parent=55 // pred_check_branch
          %397 = sbr.rel (%p395) target = $region64
        $region63: #{basic_block_forward.1} parent=55 // pred_region
          %398 = dma.done [#allocation8], 6912
        $region64: #{basic_block_forward.1} parent=55 // pred_fallthru
          _
        // Predicated region
        $region65: #{basic_block_forward.1} parent=55 // pred_check
          %p399 = pneg %p93
        $region66: #{basic_block_forward.1} parent=55 // pred_check_branch
          %401 = sbr.rel (%p399) target = $region68
        $region67: #{basic_block_forward.1} parent=55 // pred_region
          %402 = dma.done [#allocation8], 16
        $region68: #{basic_block_forward.1} parent=55 // pred_fallthru
          _
        // Predicated region
        $region69: #{basic_block_forward.1} parent=55 // pred_check
          %p403 = pneg %p114
        $region70: #{basic_block_forward.1} parent=55 // pred_check_branch
          %405 = sbr.rel (%p403) target = $region72
        $region71: #{basic_block_forward.1} parent=55 // pred_region
          %406 = dma.done [#allocation11], 16
        $region72: #{basic_block_forward.1} parent=55 // pred_fallthru
          _
        // Predicated region
        $region73: #{basic_block_forward.1} parent=55 // pred_check
          %p407 = pneg %p135
        $region74: #{basic_block_forward.1} parent=55 // pred_check_branch
          %409 = sbr.rel (%p407) target = $region76
        $region75: #{basic_block_forward.1} parent=55 // pred_region
          %410 = dma.done [#allocation11], 16
        $region76: #{basic_block_forward.1} parent=55 // pred_fallthru
          _
        // Predicated region
        $region77: #{basic_block_forward.1} parent=55 // pred_check
          %p411 = pneg %p156
        $region78: #{basic_block_forward.1} parent=55 // pred_check_branch
          %413 = sbr.rel (%p411) target = $region80
        $region79: #{basic_block_forward.1} parent=55 // pred_region
          %414 = dma.done [#allocation14], 16
        $region80: #{basic_block_forward.1} parent=55 // pred_fallthru
          _
        // Predicated region
        $region81: #{basic_block_forward.1} parent=55 // pred_check
          %p415 = pneg %p177
        $region82: #{basic_block_forward.1} parent=55 // pred_check_branch
          %417 = sbr.rel (%p415) target = $region84
        $region83: #{basic_block_forward.1} parent=55 // pred_region
          %418 = dma.done [#allocation14], 288
        $region84: #{basic_block_forward.1} parent=55 // pred_fallthru
          _
        // Predicated region
        $region85: #{basic_block_forward.1} parent=55 // pred_check
          %p419 = pneg %p198
        $region86: #{basic_block_forward.1} parent=55 // pred_check_branch
          %421 = sbr.rel (%p419) target = $region88
        $region87: #{basic_block_forward.1} parent=55 // pred_region
          %422 = dma.done [#allocation17], 576
        $region88: #{basic_block_forward.1} parent=55 // pred_fallthru
          _
        // Predicated region
        $region89: #{basic_block_forward.1} parent=55 // pred_check
          %p423 = pneg %p219
        $region90: #{basic_block_forward.1} parent=55 // pred_check_branch
          %425 = sbr.rel (%p423) target = $region92
        $region91: #{basic_block_forward.1} parent=55 // pred_region
          %426 = dma.done [#allocation17], 32
        $region92: #{basic_block_forward.1} parent=55 // pred_fallthru
          _
        %s427 = sand.u32 %s38, 1
        %s428 = scalar_lea.sflag [#allocation5], %s427
        %s429 = sand.u32 %s38, 1
        %s430 = smul.addr %s429, 432
        %s431 = scalar_lea.vmem [#allocation4], %s430
        %p432 = pneg %p51
        %p433 = pneg %p48
        %p434 = pneg %p72
        %p435 = pneg %p69
        %p436 = pneg %p93
        %p437 = pneg %p90
        %p438 = pneg %p114
        %p439 = pneg %p111
        %p440 = pneg %p135
        %p441 = pneg %p132
        %p442 = pneg %p156
        %p443 = pneg %p153
        %p444 = pneg %p177
        %p445 = pneg %p174
        %p446 = pneg %p198
        %p447 = pneg %p195
        %p448 = pneg %p219
        %p449 = pneg %p216
        %p450 = pneg %p245
        %p451 = pneg %p242
        %s452 = sand.u32 %s232, 1
        %s453 = scalar_lea.sflag [#allocation6], %s452
        %s454 = sand.u32 %s232, 1
        %s455 = smul.addr %s454, 64
        %s456 = scalar_lea.vmem [#allocation19], %s455
        %v458 = vld [vmem:[%s390] sm:$0xff]
        %v459 = vld [vmem:[%s390 + $0x8] sm:$0xff]
        %v460 = vld [vmem:[%s390 + $0x10] sm:$0x3]
        %v461 = vld [vmem:[%s390 + $0x18] sm:$0xff]
        %v462 = vld [vmem:[%s390 + $0x20] sm:$0xff]
        %v463 = vld [vmem:[%s390 + $0x28] sm:$0x3]
        %v464 = vld [vmem:[%s390 + $0x30] sm:$0xff]
        %v465 = vld [vmem:[%s390 + $0x38] sm:$0xff]
        %v466 = vld [vmem:[%s390 + $0x40] sm:$0x3]
        %v467 = vld [vmem:[%s390 + $0x48] sm:$0xff]
        %v468 = vld [vmem:[%s390 + $0x50] sm:$0xff]
        %v469 = vld [vmem:[%s390 + $0x58] sm:$0x3]
        %v470 = vld [vmem:[%s390 + $0x60] sm:$0xff]
        %v471 = vld [vmem:[%s390 + $0x68] sm:$0xff]
        %v472 = vld [vmem:[%s390 + $0x70] sm:$0x3]
        %v473 = vld [vmem:[%s390 + $0x78] sm:$0xff]
        %v474 = vld [vmem:[%s390 + $0x80] sm:$0xff]
        %v475 = vld [vmem:[%s390 + $0x88] sm:$0x3]
        %v476 = vld [vmem:[%s390 + $0x90] sm:$0xff]
        %v477 = vld [vmem:[%s390 + $0x98] sm:$0xff]
        %v478 = vld [vmem:[%s390 + $0xa0] sm:$0x3]
        %v479 = vld [vmem:[%s390 + $0xa8] sm:$0xff]
        %v480 = vld [vmem:[%s390 + $0xb0] sm:$0xff]
        %v481 = vld [vmem:[%s390 + $0xb8] sm:$0x3]
        %v482 = vld [vmem:[%s390 + $0xc0] sm:$0xff]
        %v483 = vld [vmem:[%s390 + $0xc8] sm:$0xff]
        %v484 = vld [vmem:[%s390 + $0xd0] sm:$0x3]
        %v485 = vld [vmem:[%s390 + $0xd8] sm:$0xff]
        %v486 = vld [vmem:[%s390 + $0xe0] sm:$0xff]
        %v487 = vld [vmem:[%s390 + $0xe8] sm:$0x3]
        %v488 = vld [vmem:[%s390 + $0xf0] sm:$0xff]
        %v489 = vld [vmem:[%s390 + $0xf8] sm:$0xff]
        %v490 = vld [vmem:[%s390 + $0x100] sm:$0x3]
        %v491 = vld [vmem:[%s390 + $0x108] sm:$0xff]
        %v492 = vld [vmem:[%s390 + $0x110] sm:$0xff]
        %v493 = vld [vmem:[%s390 + $0x118] sm:$0x3]
        %v494 = vld [vmem:[%s390 + $0x120] sm:$0xff]
        %v495 = vld [vmem:[%s390 + $0x128] sm:$0xff]
        %v496 = vld [vmem:[%s390 + $0x130] sm:$0x3]
        %v497 = vld [vmem:[%s390 + $0x138] sm:$0xff]
        %v498 = vld [vmem:[%s390 + $0x140] sm:$0xff]
        %v499 = vld [vmem:[%s390 + $0x148] sm:$0x3]
        %v500 = vld [vmem:[%s390 + $0x150] sm:$0xff]
        %v501 = vld [vmem:[%s390 + $0x158] sm:$0xff]
        %v502 = vld [vmem:[%s390 + $0x160] sm:$0x3]
        %v503 = vld [vmem:[%s390 + $0x168] sm:$0xff]
        %v504 = vld [vmem:[%s390 + $0x170] sm:$0xff]
        %v505 = vld [vmem:[%s390 + $0x178] sm:$0x3]
        %v506 = vld [vmem:[%s390 + $0x180] sm:$0xff]
        %v507 = vld [vmem:[%s390 + $0x188] sm:$0xff]
        %v508 = vld [vmem:[%s390 + $0x190] sm:$0x3]
        %v509 = vld [vmem:[%s390 + $0x198] sm:$0xff]
        %v510 = vld [vmem:[%s390 + $0x1a0] sm:$0xff]
        %v511 = vld [vmem:[%s390 + $0x1a8] sm:$0x3]
        %v512 = vld [vmem:[#allocation9] sm:$0x1]
        %v514 = vlaneseq
        %v515 = vshrl.u32 %v514, 7
        %v516 = vsub.s32 0, %v515
        %v517 = vrot.slane %v512, %v516
        %v519 = vmul.f32 %v458, %v517
        %v520 = vmul.f32 %v459, %v517
        %v521 = vmul.f32 %v460, %v517
        %v522 = vmul.f32 %v461, %v517
        %v523 = vmul.f32 %v462, %v517
        %v524 = vmul.f32 %v463, %v517
        %v525 = vmul.f32 %v464, %v517
        %v526 = vmul.f32 %v465, %v517
        %v527 = vmul.f32 %v466, %v517
        %v528 = vmul.f32 %v467, %v517
        %v529 = vmul.f32 %v468, %v517
        %v530 = vmul.f32 %v469, %v517
        %v531 = vmul.f32 %v470, %v517
        %v532 = vmul.f32 %v471, %v517
        %v533 = vmul.f32 %v472, %v517
        %v534 = vmul.f32 %v473, %v517
        %v535 = vmul.f32 %v474, %v517
        %v536 = vmul.f32 %v475, %v517
        %v537 = vmul.f32 %v476, %v517
        %v538 = vmul.f32 %v477, %v517
        %v539 = vmul.f32 %v478, %v517
        %v540 = vmul.f32 %v479, %v517
        %v541 = vmul.f32 %v480, %v517
        %v542 = vmul.f32 %v481, %v517
        %v543 = vmul.f32 %v482, %v517
        %v544 = vmul.f32 %v483, %v517
        %v545 = vmul.f32 %v484, %v517
        %v546 = vmul.f32 %v485, %v517
        %v547 = vmul.f32 %v486, %v517
        %v548 = vmul.f32 %v487, %v517
        %v549 = vmul.f32 %v488, %v517
        %v550 = vmul.f32 %v489, %v517
        %v551 = vmul.f32 %v490, %v517
        %v552 = vmul.f32 %v491, %v517
        %v553 = vmul.f32 %v492, %v517
        %v554 = vmul.f32 %v493, %v517
        %v555 = vmul.f32 %v494, %v517
        %v556 = vmul.f32 %v495, %v517
        %v557 = vmul.f32 %v496, %v517
        %v558 = vmul.f32 %v497, %v517
        %v559 = vmul.f32 %v498, %v517
        %v560 = vmul.f32 %v499, %v517
        %v561 = vmul.f32 %v500, %v517
        %v562 = vmul.f32 %v501, %v517
        %v563 = vmul.f32 %v502, %v517
        %v564 = vmul.f32 %v503, %v517
        %v565 = vmul.f32 %v504, %v517
        %v566 = vmul.f32 %v505, %v517
        %v567 = vmul.f32 %v506, %v517
        %v568 = vmul.f32 %v507, %v517
        %v569 = vmul.f32 %v508, %v517
        %v570 = vmul.f32 %v509, %v517
        %v571 = vmul.f32 %v510, %v517
        %v572 = vmul.f32 %v511, %v517
        %v573 = vld [vmem:[#allocation10] sm:$0x1]
        %v575 = vlaneseq
        %v576 = vshrl.u32 %v575, 7
        %v577 = vsub.s32 0, %v576
        %v578 = vrot.slane %v573, %v577
        %v580 = vadd.f32 %v519, %v578
        %v581 = vadd.f32 %v520, %v578
        %v582 = vadd.f32 %v521, %v578
        %v583 = vadd.f32 %v522, %v578
        %v584 = vadd.f32 %v523, %v578
        %v585 = vadd.f32 %v524, %v578
        %v586 = vadd.f32 %v525, %v578
        %v587 = vadd.f32 %v526, %v578
        %v588 = vadd.f32 %v527, %v578
        %v589 = vadd.f32 %v528, %v578
        %v590 = vadd.f32 %v529, %v578
        %v591 = vadd.f32 %v530, %v578
        %v592 = vadd.f32 %v531, %v578
        %v593 = vadd.f32 %v532, %v578
        %v594 = vadd.f32 %v533, %v578
        %v595 = vadd.f32 %v534, %v578
        %v596 = vadd.f32 %v535, %v578
        %v597 = vadd.f32 %v536, %v578
        %v598 = vadd.f32 %v537, %v578
        %v599 = vadd.f32 %v538, %v578
        %v600 = vadd.f32 %v539, %v578
        %v601 = vadd.f32 %v540, %v578
        %v602 = vadd.f32 %v541, %v578
        %v603 = vadd.f32 %v542, %v578
        %v604 = vadd.f32 %v543, %v578
        %v605 = vadd.f32 %v544, %v578
        %v606 = vadd.f32 %v545, %v578
        %v607 = vadd.f32 %v546, %v578
        %v608 = vadd.f32 %v547, %v578
        %v609 = vadd.f32 %v548, %v578
        %v610 = vadd.f32 %v549, %v578
        %v611 = vadd.f32 %v550, %v578
        %v612 = vadd.f32 %v551, %v578
        %v613 = vadd.f32 %v552, %v578
        %v614 = vadd.f32 %v553, %v578
        %v615 = vadd.f32 %v554, %v578
        %v616 = vadd.f32 %v555, %v578
        %v617 = vadd.f32 %v556, %v578
        %v618 = vadd.f32 %v557, %v578
        %v619 = vadd.f32 %v558, %v578
        %v620 = vadd.f32 %v559, %v578
        %v621 = vadd.f32 %v560, %v578
        %v622 = vadd.f32 %v561, %v578
        %v623 = vadd.f32 %v562, %v578
        %v624 = vadd.f32 %v563, %v578
        %v625 = vadd.f32 %v564, %v578
        %v626 = vadd.f32 %v565, %v578
        %v627 = vadd.f32 %v566, %v578
        %v628 = vadd.f32 %v567, %v578
        %v629 = vadd.f32 %v568, %v578
        %v630 = vadd.f32 %v569, %v578
        %v631 = vadd.f32 %v570, %v578
        %v632 = vadd.f32 %v571, %v578
        %v633 = vadd.f32 %v572, %v578
        %v634 = vmax.f32 %v580, 0.0
        %v635 = vmax.f32 %v581, 0.0
        %v636 = vmax.f32 %v582, 0.0
        %v637 = vmax.f32 %v583, 0.0
        %v638 = vmax.f32 %v584, 0.0
        %v639 = vmax.f32 %v585, 0.0
        %v640 = vmax.f32 %v586, 0.0
        %v641 = vmax.f32 %v587, 0.0
        %v642 = vmax.f32 %v588, 0.0
        %v643 = vmax.f32 %v589, 0.0
        %v644 = vmax.f32 %v590, 0.0
        %v645 = vmax.f32 %v591, 0.0
        %v646 = vmax.f32 %v592, 0.0
        %v647 = vmax.f32 %v593, 0.0
        %v648 = vmax.f32 %v594, 0.0
        %v649 = vmax.f32 %v595, 0.0
        %v650 = vmax.f32 %v596, 0.0
        %v651 = vmax.f32 %v597, 0.0
        %v652 = vmax.f32 %v598, 0.0
        %v653 = vmax.f32 %v599, 0.0
        %v654 = vmax.f32 %v600, 0.0
        %v655 = vmax.f32 %v601, 0.0
        %v656 = vmax.f32 %v602, 0.0
        %v657 = vmax.f32 %v603, 0.0
        %v658 = vmax.f32 %v604, 0.0
        %v659 = vmax.f32 %v605, 0.0
        %v660 = vmax.f32 %v606, 0.0
        %v661 = vmax.f32 %v607, 0.0
        %v662 = vmax.f32 %v608, 0.0
        %v663 = vmax.f32 %v609, 0.0
        %v664 = vmax.f32 %v610, 0.0
        %v665 = vmax.f32 %v611, 0.0
        %v666 = vmax.f32 %v612, 0.0
        %v667 = vmax.f32 %v613, 0.0
        %v668 = vmax.f32 %v614, 0.0
        %v669 = vmax.f32 %v615, 0.0
        %v670 = vmax.f32 %v616, 0.0
        %v671 = vmax.f32 %v617, 0.0
        %v672 = vmax.f32 %v618, 0.0
        %v673 = vmax.f32 %v619, 0.0
        %v674 = vmax.f32 %v620, 0.0
        %v675 = vmax.f32 %v621, 0.0
        %v676 = vmax.f32 %v622, 0.0
        %v677 = vmax.f32 %v623, 0.0
        %v678 = vmax.f32 %v624, 0.0
        %v679 = vmax.f32 %v625, 0.0
        %v680 = vmax.f32 %v626, 0.0
        %v681 = vmax.f32 %v627, 0.0
        %v682 = vmax.f32 %v628, 0.0
        %v683 = vmax.f32 %v629, 0.0
        %v684 = vmax.f32 %v630, 0.0
        %v685 = vmax.f32 %v631, 0.0
        %v686 = vmax.f32 %v632, 0.0
        %v687 = vmax.f32 %v633, 0.0
        %v688 = vld [vmem:[#allocation7] sm:$0xff]
        %v689 = vld [vmem:[#allocation7 + $0x8] sm:$0xff]
        %v690 = vld [vmem:[#allocation7 + $0x10] sm:$0x3]
        %v691 = vld [vmem:[#allocation7 + $0x18] sm:$0xff]
        %v692 = vld [vmem:[#allocation7 + $0x20] sm:$0xff]
        %v693 = vld [vmem:[#allocation7 + $0x28] sm:$0x3]
        %v694 = vld [vmem:[#allocation7 + $0x30] sm:$0xff]
        %v695 = vld [vmem:[#allocation7 + $0x38] sm:$0xff]
        %v696 = vld [vmem:[#allocation7 + $0x40] sm:$0x3]
        %v697 = vld [vmem:[#allocation7 + $0x48] sm:$0xff]
        %v698 = vld [vmem:[#allocation7 + $0x50] sm:$0xff]
        %v699 = vld [vmem:[#allocation7 + $0x58] sm:$0x3]
        %v700 = vld [vmem:[#allocation7 + $0x60] sm:$0xff]
        %v701 = vld [vmem:[#allocation7 + $0x68] sm:$0xff]
        %v702 = vld [vmem:[#allocation7 + $0x70] sm:$0x3]
        %v703 = vld [vmem:[#allocation7 + $0x78] sm:$0xff]
        %v704 = vld [vmem:[#allocation7 + $0x80] sm:$0xff]
        %v705 = vld [vmem:[#allocation7 + $0x88] sm:$0x3]
        %v706 = vld [vmem:[#allocation7 + $0x90] sm:$0xff]
        %v707 = vld [vmem:[#allocation7 + $0x98] sm:$0xff]
        %v708 = vld [vmem:[#allocation7 + $0xa0] sm:$0x3]
        %v709 = vld [vmem:[#allocation7 + $0xa8] sm:$0xff]
        %v710 = vld [vmem:[#allocation7 + $0xb0] sm:$0xff]
        %v711 = vld [vmem:[#allocation7 + $0xb8] sm:$0x3]
        %v712 = vld [vmem:[#allocation7 + $0xc0] sm:$0xff]
        %v713 = vld [vmem:[#allocation7 + $0xc8] sm:$0xff]
        %v714 = vld [vmem:[#allocation7 + $0xd0] sm:$0x3]
        %v715 = vld [vmem:[#allocation7 + $0xd8] sm:$0xff]
        %v716 = vld [vmem:[#allocation7 + $0xe0] sm:$0xff]
        %v717 = vld [vmem:[#allocation7 + $0xe8] sm:$0x3]
        %v718 = vld [vmem:[#allocation7 + $0xf0] sm:$0xff]
        %v719 = vld [vmem:[#allocation7 + $0xf8] sm:$0xff]
        %v720 = vld [vmem:[#allocation7 + $0x100] sm:$0x3]
        %v721 = vld [vmem:[#allocation7 + $0x108] sm:$0xff]
        %v722 = vld [vmem:[#allocation7 + $0x110] sm:$0xff]
        %v723 = vld [vmem:[#allocation7 + $0x118] sm:$0x3]
        %v724 = vld [vmem:[#allocation7 + $0x120] sm:$0xff]
        %v725 = vld [vmem:[#allocation7 + $0x128] sm:$0xff]
        %v726 = vld [vmem:[#allocation7 + $0x130] sm:$0x3]
        %v727 = vld [vmem:[#allocation7 + $0x138] sm:$0xff]
        %v728 = vld [vmem:[#allocation7 + $0x140] sm:$0xff]
        %v729 = vld [vmem:[#allocation7 + $0x148] sm:$0x3]
        %v730 = vld [vmem:[#allocation7 + $0x150] sm:$0xff]
        %v731 = vld [vmem:[#allocation7 + $0x158] sm:$0xff]
        %v732 = vld [vmem:[#allocation7 + $0x160] sm:$0x3]
        %v733 = vld [vmem:[#allocation7 + $0x168] sm:$0xff]
        %v734 = vld [vmem:[#allocation7 + $0x170] sm:$0xff]
        %v735 = vld [vmem:[#allocation7 + $0x178] sm:$0x3]
        %v736 = vld [vmem:[#allocation7 + $0x180] sm:$0xff]
        %v737 = vld [vmem:[#allocation7 + $0x188] sm:$0xff]
        %v738 = vld [vmem:[#allocation7 + $0x190] sm:$0x3]
        %v739 = vld [vmem:[#allocation7 + $0x198] sm:$0xff]
        %v740 = vld [vmem:[#allocation7 + $0x1a0] sm:$0xff]
        %v741 = vld [vmem:[#allocation7 + $0x1a8] sm:$0x3]
        %743 = vset.pattern.permute.xlu0 0
        %744 = vperm.xlu0 %743, %v688
        %v745 = vpop.permute.xlu0 %744
        %748 = vset.pattern.permute.xlu0 0
        %749 = vperm.xlu0 %748, %v689
        %v750 = vpop.permute.xlu0 %749
        %753 = vset.pattern.permute.xlu0 0
        %754 = vperm.xlu0 %753, %v690
        %v755 = vpop.permute.xlu0 %754
        %758 = vset.pattern.permute.xlu0 0
        %759 = vperm.xlu0 %758, %v691
        %v760 = vpop.permute.xlu0 %759
        %763 = vset.pattern.permute.xlu0 0
        %764 = vperm.xlu0 %763, %v692
        %v765 = vpop.permute.xlu0 %764
        %768 = vset.pattern.permute.xlu0 0
        %769 = vperm.xlu0 %768, %v693
        %v770 = vpop.permute.xlu0 %769
        %773 = vset.pattern.permute.xlu0 0
        %774 = vperm.xlu0 %773, %v694
        %v775 = vpop.permute.xlu0 %774
        %778 = vset.pattern.permute.xlu0 0
        %779 = vperm.xlu0 %778, %v695
        %v780 = vpop.permute.xlu0 %779
        %783 = vset.pattern.permute.xlu0 0
        %784 = vperm.xlu0 %783, %v696
        %v785 = vpop.permute.xlu0 %784
        %788 = vset.pattern.permute.xlu0 0
        %789 = vperm.xlu0 %788, %v697
        %v790 = vpop.permute.xlu0 %789
        %793 = vset.pattern.permute.xlu0 0
        %794 = vperm.xlu0 %793, %v698
        %v795 = vpop.permute.xlu0 %794
        %798 = vset.pattern.permute.xlu0 0
        %799 = vperm.xlu0 %798, %v699
        %v800 = vpop.permute.xlu0 %799
        %803 = vset.pattern.permute.xlu0 0
        %804 = vperm.xlu0 %803, %v700
        %v805 = vpop.permute.xlu0 %804
        %808 = vset.pattern.permute.xlu0 0
        %809 = vperm.xlu0 %808, %v701
        %v810 = vpop.permute.xlu0 %809
        %813 = vset.pattern.permute.xlu0 0
        %814 = vperm.xlu0 %813, %v702
        %v815 = vpop.permute.xlu0 %814
        %818 = vset.pattern.permute.xlu0 0
        %819 = vperm.xlu0 %818, %v703
        %v820 = vpop.permute.xlu0 %819
        %823 = vset.pattern.permute.xlu0 0
        %824 = vperm.xlu0 %823, %v704
        %v825 = vpop.permute.xlu0 %824
        %828 = vset.pattern.permute.xlu0 0
        %829 = vperm.xlu0 %828, %v705
        %v830 = vpop.permute.xlu0 %829
        %833 = vset.pattern.permute.xlu0 0
        %834 = vperm.xlu0 %833, %v706
        %v835 = vpop.permute.xlu0 %834
        %838 = vset.pattern.permute.xlu0 0
        %839 = vperm.xlu0 %838, %v707
        %v840 = vpop.permute.xlu0 %839
        %843 = vset.pattern.permute.xlu0 0
        %844 = vperm.xlu0 %843, %v708
        %v845 = vpop.permute.xlu0 %844
        %848 = vset.pattern.permute.xlu0 0
        %849 = vperm.xlu0 %848, %v709
        %v850 = vpop.permute.xlu0 %849
        %853 = vset.pattern.permute.xlu0 0
        %854 = vperm.xlu0 %853, %v710
        %v855 = vpop.permute.xlu0 %854
        %858 = vset.pattern.permute.xlu0 0
        %859 = vperm.xlu0 %858, %v711
        %v860 = vpop.permute.xlu0 %859
        %863 = vset.pattern.permute.xlu0 0
        %864 = vperm.xlu0 %863, %v712
        %v865 = vpop.permute.xlu0 %864
        %868 = vset.pattern.permute.xlu0 0
        %869 = vperm.xlu0 %868, %v713
        %v870 = vpop.permute.xlu0 %869
        %873 = vset.pattern.permute.xlu0 0
        %874 = vperm.xlu0 %873, %v714
        %v875 = vpop.permute.xlu0 %874
        %878 = vset.pattern.permute.xlu0 0
        %879 = vperm.xlu0 %878, %v715
        %v880 = vpop.permute.xlu0 %879
        %883 = vset.pattern.permute.xlu0 0
        %884 = vperm.xlu0 %883, %v716
        %v885 = vpop.permute.xlu0 %884
        %888 = vset.pattern.permute.xlu0 0
        %889 = vperm.xlu0 %888, %v717
        %v890 = vpop.permute.xlu0 %889
        %893 = vset.pattern.permute.xlu0 0
        %894 = vperm.xlu0 %893, %v718
        %v895 = vpop.permute.xlu0 %894
        %898 = vset.pattern.permute.xlu0 0
        %899 = vperm.xlu0 %898, %v719
        %v900 = vpop.permute.xlu0 %899
        %903 = vset.pattern.permute.xlu0 0
        %904 = vperm.xlu0 %903, %v720
        %v905 = vpop.permute.xlu0 %904
        %908 = vset.pattern.permute.xlu0 0
        %909 = vperm.xlu0 %908, %v721
        %v910 = vpop.permute.xlu0 %909
        %913 = vset.pattern.permute.xlu0 0
        %914 = vperm.xlu0 %913, %v722
        %v915 = vpop.permute.xlu0 %914
        %918 = vset.pattern.permute.xlu0 0
        %919 = vperm.xlu0 %918, %v723
        %v920 = vpop.permute.xlu0 %919
        %923 = vset.pattern.permute.xlu0 0
        %924 = vperm.xlu0 %923, %v724
        %v925 = vpop.permute.xlu0 %924
        %928 = vset.pattern.permute.xlu0 0
        %929 = vperm.xlu0 %928, %v725
        %v930 = vpop.permute.xlu0 %929
        %933 = vset.pattern.permute.xlu0 0
        %934 = vperm.xlu0 %933, %v726
        %v935 = vpop.permute.xlu0 %934
        %938 = vset.pattern.permute.xlu0 0
        %939 = vperm.xlu0 %938, %v727
        %v940 = vpop.permute.xlu0 %939
        %943 = vset.pattern.permute.xlu0 0
        %944 = vperm.xlu0 %943, %v728
        %v945 = vpop.permute.xlu0 %944
        %948 = vset.pattern.permute.xlu0 0
        %949 = vperm.xlu0 %948, %v729
        %v950 = vpop.permute.xlu0 %949
        %953 = vset.pattern.permute.xlu0 0
        %954 = vperm.xlu0 %953, %v730
        %v955 = vpop.permute.xlu0 %954
        %958 = vset.pattern.permute.xlu0 0
        %959 = vperm.xlu0 %958, %v731
        %v960 = vpop.permute.xlu0 %959
        %963 = vset.pattern.permute.xlu0 0
        %964 = vperm.xlu0 %963, %v732
        %v965 = vpop.permute.xlu0 %964
        %968 = vset.pattern.permute.xlu0 0
        %969 = vperm.xlu0 %968, %v733
        %v970 = vpop.permute.xlu0 %969
        %973 = vset.pattern.permute.xlu0 0
        %974 = vperm.xlu0 %973, %v734
        %v975 = vpop.permute.xlu0 %974
        %978 = vset.pattern.permute.xlu0 0
        %979 = vperm.xlu0 %978, %v735
        %v980 = vpop.permute.xlu0 %979
        %983 = vset.pattern.permute.xlu0 0
        %984 = vperm.xlu0 %983, %v736
        %v985 = vpop.permute.xlu0 %984
        %988 = vset.pattern.permute.xlu0 0
        %989 = vperm.xlu0 %988, %v737
        %v990 = vpop.permute.xlu0 %989
        %993 = vset.pattern.permute.xlu0 0
        %994 = vperm.xlu0 %993, %v738
        %v995 = vpop.permute.xlu0 %994
        %998 = vset.pattern.permute.xlu0 0
        %999 = vperm.xlu0 %998, %v739
        %v1000 = vpop.permute.xlu0 %999
        %1003 = vset.pattern.permute.xlu0 0
        %1004 = vperm.xlu0 %1003, %v740
        %v1005 = vpop.permute.xlu0 %1004
        %1008 = vset.pattern.permute.xlu0 0
        %1009 = vperm.xlu0 %1008, %v741
        %v1010 = vpop.permute.xlu0 %1009
        %v1012 = vmul.f32 %v634, %v745
        %v1013 = vmul.f32 %v635, %v750
        %v1014 = vmul.f32 %v636, %v755
        %v1015 = vmul.f32 %v637, %v760
        %v1016 = vmul.f32 %v638, %v765
        %v1017 = vmul.f32 %v639, %v770
        %v1018 = vmul.f32 %v640, %v775
        %v1019 = vmul.f32 %v641, %v780
        %v1020 = vmul.f32 %v642, %v785
        %v1021 = vmul.f32 %v643, %v790
        %v1022 = vmul.f32 %v644, %v795
        %v1023 = vmul.f32 %v645, %v800
        %v1024 = vmul.f32 %v646, %v805
        %v1025 = vmul.f32 %v647, %v810
        %v1026 = vmul.f32 %v648, %v815
        %v1027 = vmul.f32 %v649, %v820
        %v1028 = vmul.f32 %v650, %v825
        %v1029 = vmul.f32 %v651, %v830
        %v1030 = vmul.f32 %v652, %v835
        %v1031 = vmul.f32 %v653, %v840
        %v1032 = vmul.f32 %v654, %v845
        %v1033 = vmul.f32 %v655, %v850
        %v1034 = vmul.f32 %v656, %v855
        %v1035 = vmul.f32 %v657, %v860
        %v1036 = vmul.f32 %v658, %v865
        %v1037 = vmul.f32 %v659, %v870
        %v1038 = vmul.f32 %v660, %v875
        %v1039 = vmul.f32 %v661, %v880
        %v1040 = vmul.f32 %v662, %v885
        %v1041 = vmul.f32 %v663, %v890
        %v1042 = vmul.f32 %v664, %v895
        %v1043 = vmul.f32 %v665, %v900
        %v1044 = vmul.f32 %v666, %v905
        %v1045 = vmul.f32 %v667, %v910
        %v1046 = vmul.f32 %v668, %v915
        %v1047 = vmul.f32 %v669, %v920
        %v1048 = vmul.f32 %v670, %v925
        %v1049 = vmul.f32 %v671, %v930
        %v1050 = vmul.f32 %v672, %v935
        %v1051 = vmul.f32 %v673, %v940
        %v1052 = vmul.f32 %v674, %v945
        %v1053 = vmul.f32 %v675, %v950
        %v1054 = vmul.f32 %v676, %v955
        %v1055 = vmul.f32 %v677, %v960
        %v1056 = vmul.f32 %v678, %v965
        %v1057 = vmul.f32 %v679, %v970
        %v1058 = vmul.f32 %v680, %v975
        %v1059 = vmul.f32 %v681, %v980
        %v1060 = vmul.f32 %v682, %v985
        %v1061 = vmul.f32 %v683, %v990
        %v1062 = vmul.f32 %v684, %v995
        %v1063 = vmul.f32 %v685, %v1000
        %v1064 = vmul.f32 %v686, %v1005
        %v1065 = vmul.f32 %v687, %v1010
        %vm1066 = vcmask 31744
        %1067 = vst.msk [vmem:[#allocation2] sm:$0xff] %vm1066, %v1012
        %1068 = vst.msk [vmem:[#allocation2 + $0x8] sm:$0xff] %vm1066, %v1013
        %vm1069 = vcmask 25600
        %1070 = vst.msk [vmem:[#allocation2 + $0x10] sm:$0x3] %vm1069, %v1014
        %1071 = vst.msk [vmem:[#allocation2 + $0x18] sm:$0xff] %vm1066, %v1015
        %1072 = vst.msk [vmem:[#allocation2 + $0x20] sm:$0xff] %vm1066, %v1016
        %1073 = vst.msk [vmem:[#allocation2 + $0x28] sm:$0x3] %vm1069, %v1017
        %1074 = vst.msk [vmem:[#allocation2 + $0x30] sm:$0xff] %vm1066, %v1018
        %1075 = vst.msk [vmem:[#allocation2 + $0x38] sm:$0xff] %vm1066, %v1019
        %1076 = vst.msk [vmem:[#allocation2 + $0x40] sm:$0x3] %vm1069, %v1020
        %1077 = vst.msk [vmem:[#allocation2 + $0x48] sm:$0xff] %vm1066, %v1021
        %1078 = vst.msk [vmem:[#allocation2 + $0x50] sm:$0xff] %vm1066, %v1022
        %1079 = vst.msk [vmem:[#allocation2 + $0x58] sm:$0x3] %vm1069, %v1023
        %1080 = vst.msk [vmem:[#allocation2 + $0x60] sm:$0xff] %vm1066, %v1024
        %1081 = vst.msk [vmem:[#allocation2 + $0x68] sm:$0xff] %vm1066, %v1025
        %1082 = vst.msk [vmem:[#allocation2 + $0x70] sm:$0x3] %vm1069, %v1026
        %1083 = vst.msk [vmem:[#allocation2 + $0x78] sm:$0xff] %vm1066, %v1027
        %1084 = vst.msk [vmem:[#allocation2 + $0x80] sm:$0xff] %vm1066, %v1028
        %1085 = vst.msk [vmem:[#allocation2 + $0x88] sm:$0x3] %vm1069, %v1029
        %1086 = vst.msk [vmem:[#allocation2 + $0x90] sm:$0xff] %vm1066, %v1030
        %1087 = vst.msk [vmem:[#allocation2 + $0x98] sm:$0xff] %vm1066, %v1031
        %1088 = vst.msk [vmem:[#allocation2 + $0xa0] sm:$0x3] %vm1069, %v1032
        %1089 = vst.msk [vmem:[#allocation2 + $0xa8] sm:$0xff] %vm1066, %v1033
        %1090 = vst.msk [vmem:[#allocation2 + $0xb0] sm:$0xff] %vm1066, %v1034
        %1091 = vst.msk [vmem:[#allocation2 + $0xb8] sm:$0x3] %vm1069, %v1035
        %1092 = vst.msk [vmem:[#allocation2 + $0xc0] sm:$0xff] %vm1066, %v1036
        %1093 = vst.msk [vmem:[#allocation2 + $0xc8] sm:$0xff] %vm1066, %v1037
        %1094 = vst.msk [vmem:[#allocation2 + $0xd0] sm:$0x3] %vm1069, %v1038
        %1095 = vst.msk [vmem:[#allocation2 + $0xd8] sm:$0xff] %vm1066, %v1039
        %1096 = vst.msk [vmem:[#allocation2 + $0xe0] sm:$0xff] %vm1066, %v1040
        %1097 = vst.msk [vmem:[#allocation2 + $0xe8] sm:$0x3] %vm1069, %v1041
        %1098 = vst.msk [vmem:[#allocation2 + $0xf0] sm:$0xff] %vm1066, %v1042
        %1099 = vst.msk [vmem:[#allocation2 + $0xf8] sm:$0xff] %vm1066, %v1043
        %1100 = vst.msk [vmem:[#allocation2 + $0x100] sm:$0x3] %vm1069, %v1044
        %1101 = vst.msk [vmem:[#allocation2 + $0x108] sm:$0xff] %vm1066, %v1045
        %1102 = vst.msk [vmem:[#allocation2 + $0x110] sm:$0xff] %vm1066, %v1046
        %1103 = vst.msk [vmem:[#allocation2 + $0x118] sm:$0x3] %vm1069, %v1047
        %1104 = vst.msk [vmem:[#allocation2 + $0x120] sm:$0xff] %vm1066, %v1048
        %1105 = vst.msk [vmem:[#allocation2 + $0x128] sm:$0xff] %vm1066, %v1049
        %1106 = vst.msk [vmem:[#allocation2 + $0x130] sm:$0x3] %vm1069, %v1050
        %1107 = vst.msk [vmem:[#allocation2 + $0x138] sm:$0xff] %vm1066, %v1051
        %1108 = vst.msk [vmem:[#allocation2 + $0x140] sm:$0xff] %vm1066, %v1052
        %1109 = vst.msk [vmem:[#allocation2 + $0x148] sm:$0x3] %vm1069, %v1053
        %1110 = vst.msk [vmem:[#allocation2 + $0x150] sm:$0xff] %vm1066, %v1054
        %1111 = vst.msk [vmem:[#allocation2 + $0x158] sm:$0xff] %vm1066, %v1055
        %1112 = vst.msk [vmem:[#allocation2 + $0x160] sm:$0x3] %vm1069, %v1056
        %1113 = vst.msk [vmem:[#allocation2 + $0x168] sm:$0xff] %vm1066, %v1057
        %1114 = vst.msk [vmem:[#allocation2 + $0x170] sm:$0xff] %vm1066, %v1058
        %1115 = vst.msk [vmem:[#allocation2 + $0x178] sm:$0x3] %vm1069, %v1059
        %1116 = vst.msk [vmem:[#allocation2 + $0x180] sm:$0xff] %vm1066, %v1060
        %1117 = vst.msk [vmem:[#allocation2 + $0x188] sm:$0xff] %vm1066, %v1061
        %1118 = vst.msk [vmem:[#allocation2 + $0x190] sm:$0x3] %vm1069, %v1062
        %1119 = vst.msk [vmem:[#allocation2 + $0x198] sm:$0xff] %vm1066, %v1063
        %1120 = vst.msk [vmem:[#allocation2 + $0x1a0] sm:$0xff] %vm1066, %v1064
        %1121 = vst.msk [vmem:[#allocation2 + $0x1a8] sm:$0x3] %vm1069, %v1065
        %v1122 = vld [vmem:[#allocation2] sm:$0xff]
        %v1123 = vld [vmem:[#allocation2 + $0x18] sm:$0xff]
        %v1124 = vld [vmem:[#allocation2 + $0x30] sm:$0xff]
        %v1125 = vld [vmem:[#allocation2 + $0x48] sm:$0xff]
        %v1126 = vld [vmem:[#allocation2 + $0x60] sm:$0xff]
        %v1127 = vld [vmem:[#allocation2 + $0x78] sm:$0xff]
        %v1128 = vld [vmem:[#allocation2 + $0x90] sm:$0xff]
        %v1129 = vld [vmem:[#allocation2 + $0xa8] sm:$0xff]
        %v1130 = vpack.c.bf16 %v1123, %v1122
        %v1131 = vpack.c.bf16 %v1125, %v1124
        %v1132 = vpack.c.bf16 %v1127, %v1126
        %v1133 = vpack.c.bf16 %v1129, %v1128
        %v1134 = vld [vmem:[#allocation15] sm:$0x3]
        %v1135 = vld [vmem:[#allocation2 + $0x9] sm:$0xff]
        %v1136 = vld [vmem:[#allocation2 + $0x21] sm:$0xff]
        %v1137 = vld [vmem:[#allocation2 + $0x39] sm:$0xff]
        %v1138 = vld [vmem:[#allocation2 + $0x51] sm:$0xff]
        %v1139 = vld [vmem:[#allocation2 + $0x69] sm:$0xff]
        %v1140 = vld [vmem:[#allocation2 + $0x81] sm:$0xff]
        %v1141 = vld [vmem:[#allocation2 + $0x99] sm:$0xff]
        %v1142 = vld [vmem:[#allocation2 + $0xb1] sm:$0xff]
        %v1143 = vpack.c.bf16 %v1136, %v1135
        %v1144 = vpack.c.bf16 %v1138, %v1137
        %v1145 = vpack.c.bf16 %v1140, %v1139
        %v1146 = vpack.c.bf16 %v1142, %v1141
        %s1147 = scalar_lea.vmem [#allocation15], 2
        %v1148 = vld [vmem:[%s1147] sm:$0x3]
        %v1150 = vsel %vm1066, %v1143, 0
        %v1153 = vsel %vm1066, %v1144, 0
        %v1156 = vsel %vm1066, %v1145, 0
        %v1159 = vsel %vm1066, %v1146, 0
        %vm1161 = vcmask 1041408
        %v1163 = vsel %vm1161, %v1148, 0
        %1165 = vmatprep.subr.bf16.mxu0 0
        %1166 = vmatpush1.bf16.msra.mxu0 %v1163
        %1167 = vmatprep.subr.bf16.mxu0 0
        %1168 = vmatpush1.bf16.msra.mxu0 0
        %1169 = vmatprep.subr.bf16.mxu0 0
        %1170 = vmatpush1.bf16.msra.mxu0 0
        %1171 = vmatprep.subr.bf16.mxu0 0
        %1172 = vmatpush1.bf16.msra.mxu0 0
        %1173 = vmatprep.subr.bf16.mxu0 0
        %1174 = vmatpush1.bf16.msra.mxu0 0
        %1175 = vmatprep.subr.bf16.mxu0 0
        %1176 = vmatpush1.bf16.msra.mxu0 0
        %1177 = vmatprep.subr.bf16.mxu0 0
        %1178 = vmatpush1.bf16.msra.mxu0 0
        %1179 = vmatprep.subr.bf16.mxu0 0
        %1180 = vmatpush1.bf16.msra.mxu0 0
        %1181 = vmatprep.subr.bf16.mxu0 0
        %1182 = vmatpush1.bf16.msra.mxu0 0
        %1183 = vmatprep.subr.bf16.mxu0 0
        %1184 = vmatpush1.bf16.msra.mxu0 0
        %1185 = vmatprep.subr.bf16.mxu0 0
        %1186 = vmatpush1.bf16.msra.mxu0 0
        %1187 = vmatprep.subr.bf16.mxu0 0
        %1188 = vmatpush1.bf16.msra.mxu0 0
        %1189 = vmatprep.subr.bf16.mxu0 0
        %1190 = vmatpush1.bf16.msra.mxu0 0
        %1191 = vmatprep.subr.bf16.mxu0 0
        %1192 = vmatpush1.bf16.msra.mxu0 0
        %1193 = vmatprep.subr.bf16.mxu0 0
        %1194 = vmatpush1.bf16.msra.mxu0 0
        %1195 = vmatprep.subr.bf16.mxu0 0
        %1196 = vmatpush1.bf16.msra.mxu0 0
        %1197 = vmatprep.mubr.bf16.mxu0 0
        %1198 = vmatmul.mubr.bf16.gmra.mrb[0].mxu0 %v1150
        %v1199 = vpop.f32.mrb[0].mxu0
        %v1200 = vadd.f32 0.0, %v1199
        %v1201 = vpop.f32.mrb[0].mxu0
        %v1202 = vpop.f32.mrb[0].mxu0
        %v1203 = vadd.f32 0.0, %v1202
        %v1204 = vpop.f32.mrb[0].mxu0
        %1205 = vmatprep.mubr.bf16.mxu0 0
        %1206 = vmatmul.mubr.bf16.gmra.mrb[0].mxu0 %v1153
        %v1207 = vpop.f32.mrb[0].mxu0
        %v1208 = vadd.f32 0.0, %v1207
        %v1209 = vpop.f32.mrb[0].mxu0
        %v1210 = vpop.f32.mrb[0].mxu0
        %v1211 = vadd.f32 0.0, %v1210
        %v1212 = vpop.f32.mrb[0].mxu0
        %1213 = vmatprep.mubr.bf16.mxu0 0
        %1214 = vmatmul.mubr.bf16.gmra.mrb[0].mxu0 %v1156
        %v1215 = vpop.f32.mrb[0].mxu0
        %v1216 = vadd.f32 0.0, %v1215
        %v1217 = vpop.f32.mrb[0].mxu0
        %v1218 = vpop.f32.mrb[0].mxu0
        %v1219 = vadd.f32 0.0, %v1218
        %v1220 = vpop.f32.mrb[0].mxu0
        %1221 = vmatprep.mubr.bf16.mxu0 0
        %1222 = vmatmul.mubr.bf16.gmra.mrb[0].mxu0 %v1159
        %v1223 = vpop.f32.mrb[0].mxu0
        %v1224 = vadd.f32 0.0, %v1223
        %v1225 = vpop.f32.mrb[0].mxu0
        %v1226 = vpop.f32.mrb[0].mxu0
        %v1227 = vadd.f32 0.0, %v1226
        %v1228 = vpop.f32.mrb[0].mxu0
        %1229 = vdwg.mxu0
        %v1231 = vsel %vm1066, %v1130, 0
        %v1234 = vsel %vm1066, %v1131, 0
        %v1237 = vsel %vm1066, %v1132, 0
        %v1240 = vsel %vm1066, %v1133, 0
        %v1243 = vsel %vm1161, %v1134, 0
        %1245 = vmatprep.subr.bf16.mxu0 0
        %1246 = vmatpush1.bf16.msra.mxu0 %v1243
        %1247 = vmatprep.subr.bf16.mxu0 0
        %1248 = vmatpush1.bf16.msra.mxu0 0
        %1249 = vmatprep.subr.bf16.mxu0 0
        %1250 = vmatpush1.bf16.msra.mxu0 0
        %1251 = vmatprep.subr.bf16.mxu0 0
        %1252 = vmatpush1.bf16.msra.mxu0 0
        %1253 = vmatprep.subr.bf16.mxu0 0
        %1254 = vmatpush1.bf16.msra.mxu0 0
        %1255 = vmatprep.subr.bf16.mxu0 0
        %1256 = vmatpush1.bf16.msra.mxu0 0
        %1257 = vmatprep.subr.bf16.mxu0 0
        %1258 = vmatpush1.bf16.msra.mxu0 0
        %1259 = vmatprep.subr.bf16.mxu0 0
        %1260 = vmatpush1.bf16.msra.mxu0 0
        %1261 = vmatprep.subr.bf16.mxu0 0
        %1262 = vmatpush1.bf16.msra.mxu0 0
        %1263 = vmatprep.subr.bf16.mxu0 0
        %1264 = vmatpush1.bf16.msra.mxu0 0
        %1265 = vmatprep.subr.bf16.mxu0 0
        %1266 = vmatpush1.bf16.msra.mxu0 0
        %1267 = vmatprep.subr.bf16.mxu0 0
        %1268 = vmatpush1.bf16.msra.mxu0 0
        %1269 = vmatprep.subr.bf16.mxu0 0
        %1270 = vmatpush1.bf16.msra.mxu0 0
        %1271 = vmatprep.subr.bf16.mxu0 0
        %1272 = vmatpush1.bf16.msra.mxu0 0
        %1273 = vmatprep.subr.bf16.mxu0 0
        %1274 = vmatpush1.bf16.msra.mxu0 0
        %1275 = vmatprep.subr.bf16.mxu0 0
        %1276 = vmatpush1.bf16.msra.mxu0 0
        %1277 = vmatprep.mubr.bf16.mxu0 0
        %1278 = vmatmul.mubr.bf16.gmra.mrb[0].mxu0 %v1231
        %v1279 = vpop.f32.mrb[0].mxu0
        %v1280 = vadd.f32 %v1200, %v1279
        %v1281 = vpop.f32.mrb[0].mxu0
        %v1282 = vpop.f32.mrb[0].mxu0
        %v1283 = vadd.f32 %v1203, %v1282
        %v1284 = vpop.f32.mrb[0].mxu0
        %1285 = vmatprep.mubr.bf16.mxu0 0
        %1286 = vmatmul.mubr.bf16.gmra.mrb[0].mxu0 %v1234
        %v1287 = vpop.f32.mrb[0].mxu0
        %v1288 = vadd.f32 %v1208, %v1287
        %v1289 = vpop.f32.mrb[0].mxu0
        %v1290 = vpop.f32.mrb[0].mxu0
        %v1291 = vadd.f32 %v1211, %v1290
        %v1292 = vpop.f32.mrb[0].mxu0
        %1293 = vmatprep.mubr.bf16.mxu0 0
        %1294 = vmatmul.mubr.bf16.gmra.mrb[0].mxu0 %v1237
        %v1295 = vpop.f32.mrb[0].mxu0
        %v1296 = vadd.f32 %v1216, %v1295
        %v1297 = vpop.f32.mrb[0].mxu0
        %v1298 = vpop.f32.mrb[0].mxu0
        %v1299 = vadd.f32 %v1219, %v1298
        %v1300 = vpop.f32.mrb[0].mxu0
        %1301 = vmatprep.mubr.bf16.mxu0 0
        %1302 = vmatmul.mubr.bf16.gmra.mrb[0].mxu0 %v1240
        %v1303 = vpop.f32.mrb[0].mxu0
        %v1304 = vadd.f32 %v1224, %v1303
        %v1305 = vpop.f32.mrb[0].mxu0
        %v1306 = vpop.f32.mrb[0].mxu0
        %v1307 = vadd.f32 %v1227, %v1306
        %v1308 = vpop.f32.mrb[0].mxu0
        %1309 = vdwg.mxu0
        %v1310 = vld [vmem:[#allocation2 + $0x1] sm:$0xff]
        %v1311 = vld [vmem:[#allocation2 + $0x19] sm:$0xff]
        %v1312 = vld [vmem:[#allocation2 + $0x31] sm:$0xff]
        %v1313 = vld [vmem:[#allocation2 + $0x49] sm:$0xff]
        %v1314 = vld [vmem:[#allocation2 + $0x61] sm:$0xff]
        %v1315 = vld [vmem:[#allocation2 + $0x79] sm:$0xff]
        %v1316 = vld [vmem:[#allocation2 + $0x91] sm:$0xff]
        %v1317 = vld [vmem:[#allocation2 + $0xa9] sm:$0xff]
        %v1318 = vpack.c.bf16 %v1311, %v1310
        %v1319 = vpack.c.bf16 %v1313, %v1312
        %v1320 = vpack.c.bf16 %v1315, %v1314
        %v1321 = vpack.c.bf16 %v1317, %v1316
        %s1322 = scalar_lea.vmem [#allocation15], 4
        %v1323 = vld [vmem:[%s1322] sm:$0x3]
        %v1325 = vsel %vm1066, %v1318, 0
        %v1328 = vsel %vm1066, %v1319, 0
        %v1331 = vsel %vm1066, %v1320, 0
        %v1334 = vsel %vm1066, %v1321, 0
        %v1337 = vsel %vm1161, %v1323, 0
        %1339 = vmatprep.subr.bf16.mxu0 0
        %1340 = vmatpush1.bf16.msra.mxu0 %v1337
        %1341 = vmatprep.subr.bf16.mxu0 0
        %1342 = vmatpush1.bf16.msra.mxu0 0
        %1343 = vmatprep.subr.bf16.mxu0 0
        %1344 = vmatpush1.bf16.msra.mxu0 0
        %1345 = vmatprep.subr.bf16.mxu0 0
        %1346 = vmatpush1.bf16.msra.mxu0 0
        %1347 = vmatprep.subr.bf16.mxu0 0
        %1348 = vmatpush1.bf16.msra.mxu0 0
        %1349 = vmatprep.subr.bf16.mxu0 0
        %1350 = vmatpush1.bf16.msra.mxu0 0
        %1351 = vmatprep.subr.bf16.mxu0 0
        %1352 = vmatpush1.bf16.msra.mxu0 0
        %1353 = vmatprep.subr.bf16.mxu0 0
        %1354 = vmatpush1.bf16.msra.mxu0 0
        %1355 = vmatprep.subr.bf16.mxu0 0
        %1356 = vmatpush1.bf16.msra.mxu0 0
        %1357 = vmatprep.subr.bf16.mxu0 0
        %1358 = vmatpush1.bf16.msra.mxu0 0
        %1359 = vmatprep.subr.bf16.mxu0 0
        %1360 = vmatpush1.bf16.msra.mxu0 0
        %1361 = vmatprep.subr.bf16.mxu0 0
        %1362 = vmatpush1.bf16.msra.mxu0 0
        %1363 = vmatprep.subr.bf16.mxu0 0
        %1364 = vmatpush1.bf16.msra.mxu0 0
        %1365 = vmatprep.subr.bf16.mxu0 0
        %1366 = vmatpush1.bf16.msra.mxu0 0
        %1367 = vmatprep.subr.bf16.mxu0 0
        %1368 = vmatpush1.bf16.msra.mxu0 0
        %1369 = vmatprep.subr.bf16.mxu0 0
        %1370 = vmatpush1.bf16.msra.mxu0 0
        %1371 = vmatprep.mubr.bf16.mxu0 0
        %1372 = vmatmul.mubr.bf16.gmra.mrb[0].mxu0 %v1325
        %v1373 = vpop.f32.mrb[0].mxu0
        %v1374 = vadd.f32 0.0, %v1373
        %v1375 = vpop.f32.mrb[0].mxu0
        %v1376 = vpop.f32.mrb[0].mxu0
        %v1377 = vadd.f32 0.0, %v1376
        %v1378 = vpop.f32.mrb[0].mxu0
        %1379 = vmatprep.mubr.bf16.mxu0 0
        %1380 = vmatmul.mubr.bf16.gmra.mrb[0].mxu0 %v1328
        %v1381 = vpop.f32.mrb[0].mxu0
        %v1382 = vadd.f32 0.0, %v1381
        %v1383 = vpop.f32.mrb[0].mxu0
        %v1384 = vpop.f32.mrb[0].mxu0
        %v1385 = vadd.f32 0.0, %v1384
        %v1386 = vpop.f32.mrb[0].mxu0
        %1387 = vmatprep.mubr.bf16.mxu0 0
        %1388 = vmatmul.mubr.bf16.gmra.mrb[0].mxu0 %v1331
        %v1389 = vpop.f32.mrb[0].mxu0
        %v1390 = vadd.f32 0.0, %v1389
        %v1391 = vpop.f32.mrb[0].mxu0
        %v1392 = vpop.f32.mrb[0].mxu0
        %v1393 = vadd.f32 0.0, %v1392
        %v1394 = vpop.f32.mrb[0].mxu0
        %1395 = vmatprep.mubr.bf16.mxu0 0
        %1396 = vmatmul.mubr.bf16.gmra.mrb[0].mxu0 %v1334
        %v1397 = vpop.f32.mrb[0].mxu0
        %v1398 = vadd.f32 0.0, %v1397
        %v1399 = vpop.f32.mrb[0].mxu0
        %v1400 = vpop.f32.mrb[0].mxu0
        %v1401 = vadd.f32 0.0, %v1400
        %v1402 = vpop.f32.mrb[0].mxu0
        %1403 = vdwg.mxu0
        %v1404 = vadd.f32 %v1280, %v1374
        %v1405 = vadd.f32 %v1283, %v1377
        %v1406 = vadd.f32 %v1288, %v1382
        %v1407 = vadd.f32 %v1291, %v1385
        %v1408 = vadd.f32 %v1296, %v1390
        %v1409 = vadd.f32 %v1299, %v1393
        %v1410 = vadd.f32 %v1304, %v1398
        %v1411 = vadd.f32 %v1307, %v1401
        %s1412 = scalar_lea.vmem [#allocation2], 216
        %v1413 = vld [vmem:[%s1412] sm:$0xff]
        %v1414 = vld [vmem:[%s1412 + $0x18] sm:$0xff]
        %v1415 = vld [vmem:[%s1412 + $0x30] sm:$0xff]
        %v1416 = vld [vmem:[%s1412 + $0x48] sm:$0xff]
        %v1417 = vld [vmem:[%s1412 + $0x60] sm:$0xff]
        %v1418 = vld [vmem:[%s1412 + $0x78] sm:$0xff]
        %v1419 = vld [vmem:[%s1412 + $0x90] sm:$0xff]
        %v1420 = vld [vmem:[%s1412 + $0xa8] sm:$0xff]
        %v1421 = vpack.c.bf16 %v1414, %v1413
        %v1422 = vpack.c.bf16 %v1416, %v1415
        %v1423 = vpack.c.bf16 %v1418, %v1417
        %v1424 = vpack.c.bf16 %v1420, %v1419
        %s1425 = scalar_lea.vmem [#allocation15], 6
        %v1426 = vld [vmem:[%s1425] sm:$0x3]
        %v1428 = vsel %vm1066, %v1421, 0
        %v1431 = vsel %vm1066, %v1422, 0
        %v1434 = vsel %vm1066, %v1423, 0
        %v1437 = vsel %vm1066, %v1424, 0
        %v1440 = vsel %vm1161, %v1426, 0
        %1442 = vmatprep.subr.bf16.mxu0 0
        %1443 = vmatpush1.bf16.msra.mxu0 %v1440
        %1444 = vmatprep.subr.bf16.mxu0 0
        %1445 = vmatpush1.bf16.msra.mxu0 0
        %1446 = vmatprep.subr.bf16.mxu0 0
        %1447 = vmatpush1.bf16.msra.mxu0 0
        %1448 = vmatprep.subr.bf16.mxu0 0
        %1449 = vmatpush1.bf16.msra.mxu0 0
        %1450 = vmatprep.subr.bf16.mxu0 0
        %1451 = vmatpush1.bf16.msra.mxu0 0
        %1452 = vmatprep.subr.bf16.mxu0 0
        %1453 = vmatpush1.bf16.msra.mxu0 0
        %1454 = vmatprep.subr.bf16.mxu0 0
        %1455 = vmatpush1.bf16.msra.mxu0 0
        %1456 = vmatprep.subr.bf16.mxu0 0
        %1457 = vmatpush1.bf16.msra.mxu0 0
        %1458 = vmatprep.subr.bf16.mxu0 0
        %1459 = vmatpush1.bf16.msra.mxu0 0
        %1460 = vmatprep.subr.bf16.mxu0 0
        %1461 = vmatpush1.bf16.msra.mxu0 0
        %1462 = vmatprep.subr.bf16.mxu0 0
        %1463 = vmatpush1.bf16.msra.mxu0 0
        %1464 = vmatprep.subr.bf16.mxu0 0
        %1465 = vmatpush1.bf16.msra.mxu0 0
        %1466 = vmatprep.subr.bf16.mxu0 0
        %1467 = vmatpush1.bf16.msra.mxu0 0
        %1468 = vmatprep.subr.bf16.mxu0 0
        %1469 = vmatpush1.bf16.msra.mxu0 0
        %1470 = vmatprep.subr.bf16.mxu0 0
        %1471 = vmatpush1.bf16.msra.mxu0 0
        %1472 = vmatprep.subr.bf16.mxu0 0
        %1473 = vmatpush1.bf16.msra.mxu0 0
        %1474 = vmatprep.mubr.bf16.mxu0 0
        %1475 = vmatmul.mubr.bf16.gmra.mrb[0].mxu0 %v1428
        %v1476 = vpop.f32.mrb[0].mxu0
        %v1477 = vadd.f32 0.0, %v1476
        %v1478 = vpop.f32.mrb[0].mxu0
        %v1479 = vpop.f32.mrb[0].mxu0
        %v1480 = vadd.f32 0.0, %v1479
        %v1481 = vpop.f32.mrb[0].mxu0
        %1482 = vmatprep.mubr.bf16.mxu0 0
        %1483 = vmatmul.mubr.bf16.gmra.mrb[0].mxu0 %v1431
        %v1484 = vpop.f32.mrb[0].mxu0
        %v1485 = vadd.f32 0.0, %v1484
        %v1486 = vpop.f32.mrb[0].mxu0
        %v1487 = vpop.f32.mrb[0].mxu0
        %v1488 = vadd.f32 0.0, %v1487
        %v1489 = vpop.f32.mrb[0].mxu0
        %1490 = vmatprep.mubr.bf16.mxu0 0
        %1491 = vmatmul.mubr.bf16.gmra.mrb[0].mxu0 %v1434
        %v1492 = vpop.f32.mrb[0].mxu0
        %v1493 = vadd.f32 0.0, %v1492
        %v1494 = vpop.f32.mrb[0].mxu0
        %v1495 = vpop.f32.mrb[0].mxu0
        %v1496 = vadd.f32 0.0, %v1495
        %v1497 = vpop.f32.mrb[0].mxu0
        %1498 = vmatprep.mubr.bf16.mxu0 0
        %1499 = vmatmul.mubr.bf16.gmra.mrb[0].mxu0 %v1437
        %v1500 = vpop.f32.mrb[0].mxu0
        %v1501 = vadd.f32 0.0, %v1500
        %v1502 = vpop.f32.mrb[0].mxu0
        %v1503 = vpop.f32.mrb[0].mxu0
        %v1504 = vadd.f32 0.0, %v1503
        %v1505 = vpop.f32.mrb[0].mxu0
        %1506 = vdwg.mxu0
        %v1507 = vadd.f32 %v1404, %v1477
        %v1508 = vadd.f32 %v1405, %v1480
        %v1509 = vadd.f32 %v1406, %v1485
        %v1510 = vadd.f32 %v1407, %v1488
        %v1511 = vadd.f32 %v1408, %v1493
        %v1512 = vadd.f32 %v1409, %v1496
        %v1513 = vadd.f32 %v1410, %v1501
        %v1514 = vadd.f32 %v1411, %v1504
        %v1515 = vld [vmem:[%s1412 + $0x9] sm:$0xff]
        %v1516 = vld [vmem:[%s1412 + $0x21] sm:$0xff]
        %v1517 = vld [vmem:[%s1412 + $0x39] sm:$0xff]
        %v1518 = vld [vmem:[%s1412 + $0x51] sm:$0xff]
        %v1519 = vld [vmem:[%s1412 + $0x69] sm:$0xff]
        %v1520 = vld [vmem:[%s1412 + $0x81] sm:$0xff]
        %v1521 = vld [vmem:[%s1412 + $0x99] sm:$0xff]
        %v1522 = vld [vmem:[%s1412 + $0xb1] sm:$0xff]
        %v1523 = vpack.c.bf16 %v1516, %v1515
        %v1524 = vpack.c.bf16 %v1518, %v1517
        %v1525 = vpack.c.bf16 %v1520, %v1519
        %v1526 = vpack.c.bf16 %v1522, %v1521
        %s1527 = scalar_lea.vmem [#allocation15], 8
        %v1528 = vld [vmem:[%s1527] sm:$0x3]
        %v1530 = vsel %vm1066, %v1523, 0
        %v1533 = vsel %vm1066, %v1524, 0
        %v1536 = vsel %vm1066, %v1525, 0
        %v1539 = vsel %vm1066, %v1526, 0
        %v1542 = vsel %vm1161, %v1528, 0
        %1544 = vmatprep.subr.bf16.mxu0 0
        %1545 = vmatpush1.bf16.msra.mxu0 %v1542
        %1546 = vmatprep.subr.bf16.mxu0 0
        %1547 = vmatpush1.bf16.msra.mxu0 0
        %1548 = vmatprep.subr.bf16.mxu0 0
        %1549 = vmatpush1.bf16.msra.mxu0 0
        %1550 = vmatprep.subr.bf16.mxu0 0
        %1551 = vmatpush1.bf16.msra.mxu0 0
        %1552 = vmatprep.subr.bf16.mxu0 0
        %1553 = vmatpush1.bf16.msra.mxu0 0
        %1554 = vmatprep.subr.bf16.mxu0 0
        %1555 = vmatpush1.bf16.msra.mxu0 0
        %1556 = vmatprep.subr.bf16.mxu0 0
        %1557 = vmatpush1.bf16.msra.mxu0 0
        %1558 = vmatprep.subr.bf16.mxu0 0
        %1559 = vmatpush1.bf16.msra.mxu0 0
        %1560 = vmatprep.subr.bf16.mxu0 0
        %1561 = vmatpush1.bf16.msra.mxu0 0
        %1562 = vmatprep.subr.bf16.mxu0 0
        %1563 = vmatpush1.bf16.msra.mxu0 0
        %1564 = vmatprep.subr.bf16.mxu0 0
        %1565 = vmatpush1.bf16.msra.mxu0 0
        %1566 = vmatprep.subr.bf16.mxu0 0
        %1567 = vmatpush1.bf16.msra.mxu0 0
        %1568 = vmatprep.subr.bf16.mxu0 0
        %1569 = vmatpush1.bf16.msra.mxu0 0
        %1570 = vmatprep.subr.bf16.mxu0 0
        %1571 = vmatpush1.bf16.msra.mxu0 0
        %1572 = vmatprep.subr.bf16.mxu0 0
        %1573 = vmatpush1.bf16.msra.mxu0 0
        %1574 = vmatprep.subr.bf16.mxu0 0
        %1575 = vmatpush1.bf16.msra.mxu0 0
        %1576 = vmatprep.mubr.bf16.mxu0 0
        %1577 = vmatmul.mubr.bf16.gmra.mrb[0].mxu0 %v1530
        %v1578 = vpop.f32.mrb[0].mxu0
        %v1579 = vadd.f32 0.0, %v1578
        %v1580 = vpop.f32.mrb[0].mxu0
        %v1581 = vpop.f32.mrb[0].mxu0
        %v1582 = vadd.f32 0.0, %v1581
        %v1583 = vpop.f32.mrb[0].mxu0
        %1584 = vmatprep.mubr.bf16.mxu0 0
        %1585 = vmatmul.mubr.bf16.gmra.mrb[0].mxu0 %v1533
        %v1586 = vpop.f32.mrb[0].mxu0
        %v1587 = vadd.f32 0.0, %v1586
        %v1588 = vpop.f32.mrb[0].mxu0
        %v1589 = vpop.f32.mrb[0].mxu0
        %v1590 = vadd.f32 0.0, %v1589
        %v1591 = vpop.f32.mrb[0].mxu0
        %1592 = vmatprep.mubr.bf16.mxu0 0
        %1593 = vmatmul.mubr.bf16.gmra.mrb[0].mxu0 %v1536
        %v1594 = vpop.f32.mrb[0].mxu0
        %v1595 = vadd.f32 0.0, %v1594
        %v1596 = vpop.f32.mrb[0].mxu0
        %v1597 = vpop.f32.mrb[0].mxu0
        %v1598 = vadd.f32 0.0, %v1597
        %v1599 = vpop.f32.mrb[0].mxu0
        %1600 = vmatprep.mubr.bf16.mxu0 0
        %1601 = vmatmul.mubr.bf16.gmra.mrb[0].mxu0 %v1539
        %v1602 = vpop.f32.mrb[0].mxu0
        %v1603 = vadd.f32 0.0, %v1602
        %v1604 = vpop.f32.mrb[0].mxu0
        %v1605 = vpop.f32.mrb[0].mxu0
        %v1606 = vadd.f32 0.0, %v1605
        %v1607 = vpop.f32.mrb[0].mxu0
        %1608 = vdwg.mxu0
        %v1609 = vadd.f32 %v1507, %v1579
        %v1610 = vadd.f32 %v1508, %v1582
        %v1611 = vadd.f32 %v1509, %v1587
        %v1612 = vadd.f32 %v1510, %v1590
        %v1613 = vadd.f32 %v1511, %v1595
        %v1614 = vadd.f32 %v1512, %v1598
        %v1615 = vadd.f32 %v1513, %v1603
        %v1616 = vadd.f32 %v1514, %v1606
        %v1617 = vld [vmem:[#allocation18] sm:$0x3]
        %v1619 = vsel %vm1161, %v1617, 0
        %1621 = vmatprep.subr.bf16.mxu0 0
        %1622 = vmatpush1.bf16.msra.mxu0 %v1619
        %1623 = vmatprep.subr.bf16.mxu0 0
        %1624 = vmatpush1.bf16.msra.mxu0 0
        %1625 = vmatprep.subr.bf16.mxu0 0
        %1626 = vmatpush1.bf16.msra.mxu0 0
        %1627 = vmatprep.subr.bf16.mxu0 0
        %1628 = vmatpush1.bf16.msra.mxu0 0
        %1629 = vmatprep.subr.bf16.mxu0 0
        %1630 = vmatpush1.bf16.msra.mxu0 0
        %1631 = vmatprep.subr.bf16.mxu0 0
        %1632 = vmatpush1.bf16.msra.mxu0 0
        %1633 = vmatprep.subr.bf16.mxu0 0
        %1634 = vmatpush1.bf16.msra.mxu0 0
        %1635 = vmatprep.subr.bf16.mxu0 0
        %1636 = vmatpush1.bf16.msra.mxu0 0
        %1637 = vmatprep.subr.bf16.mxu0 0
        %1638 = vmatpush1.bf16.msra.mxu0 0
        %1639 = vmatprep.subr.bf16.mxu0 0
        %1640 = vmatpush1.bf16.msra.mxu0 0
        %1641 = vmatprep.subr.bf16.mxu0 0
        %1642 = vmatpush1.bf16.msra.mxu0 0
        %1643 = vmatprep.subr.bf16.mxu0 0
        %1644 = vmatpush1.bf16.msra.mxu0 0
        %1645 = vmatprep.subr.bf16.mxu0 0
        %1646 = vmatpush1.bf16.msra.mxu0 0
        %1647 = vmatprep.subr.bf16.mxu0 0
        %1648 = vmatpush1.bf16.msra.mxu0 0
        %1649 = vmatprep.subr.bf16.mxu0 0
        %1650 = vmatpush1.bf16.msra.mxu0 0
        %1651 = vmatprep.subr.bf16.mxu0 0
        %1652 = vmatpush1.bf16.msra.mxu0 0
        %1653 = vmatprep.mubr.bf16.mxu0 0
        %1654 = vmatmul.mubr.bf16.gmra.mrb[0].mxu0 %v1530
        %v1655 = vpop.f32.mrb[0].mxu0
        %v1656 = vadd.f32 0.0, %v1655
        %v1657 = vpop.f32.mrb[0].mxu0
        %v1658 = vpop.f32.mrb[0].mxu0
        %v1659 = vadd.f32 0.0, %v1658
        %v1660 = vpop.f32.mrb[0].mxu0
        %1661 = vmatprep.mubr.bf16.mxu0 0
        %1662 = vmatmul.mubr.bf16.gmra.mrb[0].mxu0 %v1533
        %v1663 = vpop.f32.mrb[0].mxu0
        %v1664 = vadd.f32 0.0, %v1663
        %v1665 = vpop.f32.mrb[0].mxu0
        %v1666 = vpop.f32.mrb[0].mxu0
        %v1667 = vadd.f32 0.0, %v1666
        %v1668 = vpop.f32.mrb[0].mxu0
        %1669 = vmatprep.mubr.bf16.mxu0 0
        %1670 = vmatmul.mubr.bf16.gmra.mrb[0].mxu0 %v1536
        %v1671 = vpop.f32.mrb[0].mxu0
        %v1672 = vadd.f32 0.0, %v1671
        %v1673 = vpop.f32.mrb[0].mxu0
        %v1674 = vpop.f32.mrb[0].mxu0
        %v1675 = vadd.f32 0.0, %v1674
        %v1676 = vpop.f32.mrb[0].mxu0
        %1677 = vmatprep.mubr.bf16.mxu0 0
        %1678 = vmatmul.mubr.bf16.gmra.mrb[0].mxu0 %v1539
        %v1679 = vpop.f32.mrb[0].mxu0
        %v1680 = vadd.f32 0.0, %v1679
        %v1681 = vpop.f32.mrb[0].mxu0
        %v1682 = vpop.f32.mrb[0].mxu0
        %v1683 = vadd.f32 0.0, %v1682
        %v1684 = vpop.f32.mrb[0].mxu0
        %1685 = vdwg.mxu0
        %v1686 = vld [vmem:[%s1412 + $0x1] sm:$0xff]
        %v1687 = vld [vmem:[%s1412 + $0x19] sm:$0xff]
        %v1688 = vld [vmem:[%s1412 + $0x31] sm:$0xff]
        %v1689 = vld [vmem:[%s1412 + $0x49] sm:$0xff]
        %v1690 = vld [vmem:[%s1412 + $0x61] sm:$0xff]
        %v1691 = vld [vmem:[%s1412 + $0x79] sm:$0xff]
        %v1692 = vld [vmem:[%s1412 + $0x91] sm:$0xff]
        %v1693 = vld [vmem:[%s1412 + $0xa9] sm:$0xff]
        %v1694 = vpack.c.bf16 %v1687, %v1686
        %v1695 = vpack.c.bf16 %v1689, %v1688
        %v1696 = vpack.c.bf16 %v1691, %v1690
        %v1697 = vpack.c.bf16 %v1693, %v1692
        %s1698 = scalar_lea.vmem [#allocation15], 10
        %v1699 = vld [vmem:[%s1698] sm:$0x3]
        %v1701 = vsel %vm1066, %v1694, 0
        %v1704 = vsel %vm1066, %v1695, 0
        %v1707 = vsel %vm1066, %v1696, 0
        %v1710 = vsel %vm1066, %v1697, 0
        %v1713 = vsel %vm1161, %v1699, 0
        %1715 = vmatprep.subr.bf16.mxu0 0
        %1716 = vmatpush1.bf16.msra.mxu0 %v1713
        %1717 = vmatprep.subr.bf16.mxu0 0
        %1718 = vmatpush1.bf16.msra.mxu0 0
        %1719 = vmatprep.subr.bf16.mxu0 0
        %1720 = vmatpush1.bf16.msra.mxu0 0
        %1721 = vmatprep.subr.bf16.mxu0 0
        %1722 = vmatpush1.bf16.msra.mxu0 0
        %1723 = vmatprep.subr.bf16.mxu0 0
        %1724 = vmatpush1.bf16.msra.mxu0 0
        %1725 = vmatprep.subr.bf16.mxu0 0
        %1726 = vmatpush1.bf16.msra.mxu0 0
        %1727 = vmatprep.subr.bf16.mxu0 0
        %1728 = vmatpush1.bf16.msra.mxu0 0
        %1729 = vmatprep.subr.bf16.mxu0 0
        %1730 = vmatpush1.bf16.msra.mxu0 0
        %1731 = vmatprep.subr.bf16.mxu0 0
        %1732 = vmatpush1.bf16.msra.mxu0 0
        %1733 = vmatprep.subr.bf16.mxu0 0
        %1734 = vmatpush1.bf16.msra.mxu0 0
        %1735 = vmatprep.subr.bf16.mxu0 0
        %1736 = vmatpush1.bf16.msra.mxu0 0
        %1737 = vmatprep.subr.bf16.mxu0 0
        %1738 = vmatpush1.bf16.msra.mxu0 0
        %1739 = vmatprep.subr.bf16.mxu0 0
        %1740 = vmatpush1.bf16.msra.mxu0 0
        %1741 = vmatprep.subr.bf16.mxu0 0
        %1742 = vmatpush1.bf16.msra.mxu0 0
        %1743 = vmatprep.subr.bf16.mxu0 0
        %1744 = vmatpush1.bf16.msra.mxu0 0
        %1745 = vmatprep.subr.bf16.mxu0 0
        %1746 = vmatpush1.bf16.msra.mxu0 0
        %1747 = vmatprep.mubr.bf16.mxu0 0
        %1748 = vmatmul.mubr.bf16.gmra.mrb[0].mxu0 %v1701
        %v1749 = vpop.f32.mrb[0].mxu0
        %v1750 = vadd.f32 0.0, %v1749
        %v1751 = vpop.f32.mrb[0].mxu0
        %v1752 = vpop.f32.mrb[0].mxu0
        %v1753 = vadd.f32 0.0, %v1752
        %v1754 = vpop.f32.mrb[0].mxu0
        %1755 = vmatprep.mubr.bf16.mxu0 0
        %1756 = vmatmul.mubr.bf16.gmra.mrb[0].mxu0 %v1704
        %v1757 = vpop.f32.mrb[0].mxu0
        %v1758 = vadd.f32 0.0, %v1757
        %v1759 = vpop.f32.mrb[0].mxu0
        %v1760 = vpop.f32.mrb[0].mxu0
        %v1761 = vadd.f32 0.0, %v1760
        %v1762 = vpop.f32.mrb[0].mxu0
        %1763 = vmatprep.mubr.bf16.mxu0 0
        %1764 = vmatmul.mubr.bf16.gmra.mrb[0].mxu0 %v1707
        %v1765 = vpop.f32.mrb[0].mxu0
        %v1766 = vadd.f32 0.0, %v1765
        %v1767 = vpop.f32.mrb[0].mxu0
        %v1768 = vpop.f32.mrb[0].mxu0
        %v1769 = vadd.f32 0.0, %v1768
        %v1770 = vpop.f32.mrb[0].mxu0
        %1771 = vmatprep.mubr.bf16.mxu0 0
        %1772 = vmatmul.mubr.bf16.gmra.mrb[0].mxu0 %v1710
        %v1773 = vpop.f32.mrb[0].mxu0
        %v1774 = vadd.f32 0.0, %v1773
        %v1775 = vpop.f32.mrb[0].mxu0
        %v1776 = vpop.f32.mrb[0].mxu0
        %v1777 = vadd.f32 0.0, %v1776
        %v1778 = vpop.f32.mrb[0].mxu0
        %1779 = vdwg.mxu0
        %v1780 = vadd.f32 %v1609, %v1750
        %v1781 = vadd.f32 %v1610, %v1753
        %v1782 = vadd.f32 %v1611, %v1758
        %v1783 = vadd.f32 %v1612, %v1761
        %v1784 = vadd.f32 %v1613, %v1766
        %v1785 = vadd.f32 %v1614, %v1769
        %v1786 = vadd.f32 %v1615, %v1774
        %v1787 = vadd.f32 %v1616, %v1777
        %s1788 = scalar_lea.vmem [#allocation2], 24
        %v1789 = vld [vmem:[%s1788] sm:$0xff]
        %v1790 = vld [vmem:[%s1788 + $0x18] sm:$0xff]
        %v1791 = vld [vmem:[%s1788 + $0x30] sm:$0xff]
        %v1792 = vld [vmem:[%s1788 + $0x48] sm:$0xff]
        %v1793 = vld [vmem:[%s1788 + $0x60] sm:$0xff]
        %v1794 = vld [vmem:[%s1788 + $0x78] sm:$0xff]
        %v1795 = vld [vmem:[%s1788 + $0x90] sm:$0xff]
        %v1796 = vld [vmem:[%s1788 + $0xa8] sm:$0xff]
        %v1797 = vpack.c.bf16 %v1790, %v1789
        %v1798 = vpack.c.bf16 %v1792, %v1791
        %v1799 = vpack.c.bf16 %v1794, %v1793
        %v1800 = vpack.c.bf16 %v1796, %v1795
        %s1801 = scalar_lea.vmem [#allocation15], 12
        %v1802 = vld [vmem:[%s1801] sm:$0x3]
        %v1804 = vsel %vm1066, %v1797, 0
        %v1807 = vsel %vm1066, %v1798, 0
        %v1810 = vsel %vm1066, %v1799, 0
        %v1813 = vsel %vm1066, %v1800, 0
        %v1816 = vsel %vm1161, %v1802, 0
        %1818 = vmatprep.subr.bf16.mxu0 0
        %1819 = vmatpush1.bf16.msra.mxu0 %v1816
        %1820 = vmatprep.subr.bf16.mxu0 0
        %1821 = vmatpush1.bf16.msra.mxu0 0
        %1822 = vmatprep.subr.bf16.mxu0 0
        %1823 = vmatpush1.bf16.msra.mxu0 0
        %1824 = vmatprep.subr.bf16.mxu0 0
        %1825 = vmatpush1.bf16.msra.mxu0 0
        %1826 = vmatprep.subr.bf16.mxu0 0
        %1827 = vmatpush1.bf16.msra.mxu0 0
        %1828 = vmatprep.subr.bf16.mxu0 0
        %1829 = vmatpush1.bf16.msra.mxu0 0
        %1830 = vmatprep.subr.bf16.mxu0 0
        %1831 = vmatpush1.bf16.msra.mxu0 0
        %1832 = vmatprep.subr.bf16.mxu0 0
        %1833 = vmatpush1.bf16.msra.mxu0 0
        %1834 = vmatprep.subr.bf16.mxu0 0
        %1835 = vmatpush1.bf16.msra.mxu0 0
        %1836 = vmatprep.subr.bf16.mxu0 0
        %1837 = vmatpush1.bf16.msra.mxu0 0
        %1838 = vmatprep.subr.bf16.mxu0 0
        %1839 = vmatpush1.bf16.msra.mxu0 0
        %1840 = vmatprep.subr.bf16.mxu0 0
        %1841 = vmatpush1.bf16.msra.mxu0 0
        %1842 = vmatprep.subr.bf16.mxu0 0
        %1843 = vmatpush1.bf16.msra.mxu0 0
        %1844 = vmatprep.subr.bf16.mxu0 0
        %1845 = vmatpush1.bf16.msra.mxu0 0
        %1846 = vmatprep.subr.bf16.mxu0 0
        %1847 = vmatpush1.bf16.msra.mxu0 0
        %1848 = vmatprep.subr.bf16.mxu0 0
        %1849 = vmatpush1.bf16.msra.mxu0 0
        %1850 = vmatprep.mubr.bf16.mxu0 0
        %1851 = vmatmul.mubr.bf16.gmra.mrb[0].mxu0 %v1804
        %v1852 = vpop.f32.mrb[0].mxu0
        %v1853 = vadd.f32 0.0, %v1852
        %v1854 = vpop.f32.mrb[0].mxu0
        %v1855 = vpop.f32.mrb[0].mxu0
        %v1856 = vadd.f32 0.0, %v1855
        %v1857 = vpop.f32.mrb[0].mxu0
        %1858 = vmatprep.mubr.bf16.mxu0 0
        %1859 = vmatmul.mubr.bf16.gmra.mrb[0].mxu0 %v1807
        %v1860 = vpop.f32.mrb[0].mxu0
        %v1861 = vadd.f32 0.0, %v1860
        %v1862 = vpop.f32.mrb[0].mxu0
        %v1863 = vpop.f32.mrb[0].mxu0
        %v1864 = vadd.f32 0.0, %v1863
        %v1865 = vpop.f32.mrb[0].mxu0
        %1866 = vmatprep.mubr.bf16.mxu0 0
        %1867 = vmatmul.mubr.bf16.gmra.mrb[0].mxu0 %v1810
        %v1868 = vpop.f32.mrb[0].mxu0
        %v1869 = vadd.f32 0.0, %v1868
        %v1870 = vpop.f32.mrb[0].mxu0
        %v1871 = vpop.f32.mrb[0].mxu0
        %v1872 = vadd.f32 0.0, %v1871
        %v1873 = vpop.f32.mrb[0].mxu0
        %1874 = vmatprep.mubr.bf16.mxu0 0
        %1875 = vmatmul.mubr.bf16.gmra.mrb[0].mxu0 %v1813
        %v1876 = vpop.f32.mrb[0].mxu0
        %v1877 = vadd.f32 0.0, %v1876
        %v1878 = vpop.f32.mrb[0].mxu0
        %v1879 = vpop.f32.mrb[0].mxu0
        %v1880 = vadd.f32 0.0, %v1879
        %v1881 = vpop.f32.mrb[0].mxu0
        %1882 = vdwg.mxu0
        %v1883 = vadd.f32 %v1780, %v1853
        %v1884 = vadd.f32 %v1781, %v1856
        %v1885 = vadd.f32 %v1782, %v1861
        %v1886 = vadd.f32 %v1783, %v1864
        %v1887 = vadd.f32 %v1784, %v1869
        %v1888 = vadd.f32 %v1785, %v1872
        %v1889 = vadd.f32 %v1786, %v1877
        %v1890 = vadd.f32 %v1787, %v1880
        %v1891 = vld [vmem:[%s1788 + $0x9] sm:$0xff]
        %v1892 = vld [vmem:[%s1788 + $0x21] sm:$0xff]
        %v1893 = vld [vmem:[%s1788 + $0x39] sm:$0xff]
        %v1894 = vld [vmem:[%s1788 + $0x51] sm:$0xff]
        %v1895 = vld [vmem:[%s1788 + $0x69] sm:$0xff]
        %v1896 = vld [vmem:[%s1788 + $0x81] sm:$0xff]
        %v1897 = vld [vmem:[%s1788 + $0x99] sm:$0xff]
        %v1898 = vld [vmem:[%s1788 + $0xb1] sm:$0xff]
        %v1899 = vpack.c.bf16 %v1892, %v1891
        %v1900 = vpack.c.bf16 %v1894, %v1893
        %v1901 = vpack.c.bf16 %v1896, %v1895
        %v1902 = vpack.c.bf16 %v1898, %v1897
        %s1903 = scalar_lea.vmem [#allocation15], 14
        %v1904 = vld [vmem:[%s1903] sm:$0x3]
        %v1906 = vsel %vm1066, %v1899, 0
        %v1909 = vsel %vm1066, %v1900, 0
        %v1912 = vsel %vm1066, %v1901, 0
        %v1915 = vsel %vm1066, %v1902, 0
        %v1918 = vsel %vm1161, %v1904, 0
        %1920 = vmatprep.subr.bf16.mxu0 0
        %1921 = vmatpush1.bf16.msra.mxu0 %v1918
        %1922 = vmatprep.subr.bf16.mxu0 0
        %1923 = vmatpush1.bf16.msra.mxu0 0
        %1924 = vmatprep.subr.bf16.mxu0 0
        %1925 = vmatpush1.bf16.msra.mxu0 0
        %1926 = vmatprep.subr.bf16.mxu0 0
        %1927 = vmatpush1.bf16.msra.mxu0 0
        %1928 = vmatprep.subr.bf16.mxu0 0
        %1929 = vmatpush1.bf16.msra.mxu0 0
        %1930 = vmatprep.subr.bf16.mxu0 0
        %1931 = vmatpush1.bf16.msra.mxu0 0
        %1932 = vmatprep.subr.bf16.mxu0 0
        %1933 = vmatpush1.bf16.msra.mxu0 0
        %1934 = vmatprep.subr.bf16.mxu0 0
        %1935 = vmatpush1.bf16.msra.mxu0 0
        %1936 = vmatprep.subr.bf16.mxu0 0
        %1937 = vmatpush1.bf16.msra.mxu0 0
        %1938 = vmatprep.subr.bf16.mxu0 0
        %1939 = vmatpush1.bf16.msra.mxu0 0
        %1940 = vmatprep.subr.bf16.mxu0 0
        %1941 = vmatpush1.bf16.msra.mxu0 0
        %1942 = vmatprep.subr.bf16.mxu0 0
        %1943 = vmatpush1.bf16.msra.mxu0 0
        %1944 = vmatprep.subr.bf16.mxu0 0
        %1945 = vmatpush1.bf16.msra.mxu0 0
        %1946 = vmatprep.subr.bf16.mxu0 0
        %1947 = vmatpush1.bf16.msra.mxu0 0
        %1948 = vmatprep.subr.bf16.mxu0 0
        %1949 = vmatpush1.bf16.msra.mxu0 0
        %1950 = vmatprep.subr.bf16.mxu0 0
        %1951 = vmatpush1.bf16.msra.mxu0 0
        %1952 = vmatprep.mubr.bf16.mxu0 0
        %1953 = vmatmul.mubr.bf16.gmra.mrb[0].mxu0 %v1906
        %v1954 = vpop.f32.mrb[0].mxu0
        %v1955 = vadd.f32 0.0, %v1954
        %v1956 = vpop.f32.mrb[0].mxu0
        %v1957 = vpop.f32.mrb[0].mxu0
        %v1958 = vadd.f32 0.0, %v1957
        %v1959 = vpop.f32.mrb[0].mxu0
        %1960 = vmatprep.mubr.bf16.mxu0 0
        %1961 = vmatmul.mubr.bf16.gmra.mrb[0].mxu0 %v1909
        %v1962 = vpop.f32.mrb[0].mxu0
        %v1963 = vadd.f32 0.0, %v1962
        %v1964 = vpop.f32.mrb[0].mxu0
        %v1965 = vpop.f32.mrb[0].mxu0
        %v1966 = vadd.f32 0.0, %v1965
        %v1967 = vpop.f32.mrb[0].mxu0
        %1968 = vmatprep.mubr.bf16.mxu0 0
        %1969 = vmatmul.mubr.bf16.gmra.mrb[0].mxu0 %v1912
        %v1970 = vpop.f32.mrb[0].mxu0
        %v1971 = vadd.f32 0.0, %v1970
        %v1972 = vpop.f32.mrb[0].mxu0
        %v1973 = vpop.f32.mrb[0].mxu0
        %v1974 = vadd.f32 0.0, %v1973
        %v1975 = vpop.f32.mrb[0].mxu0
        %1976 = vmatprep.mubr.bf16.mxu0 0
        %1977 = vmatmul.mubr.bf16.gmra.mrb[0].mxu0 %v1915
        %v1978 = vpop.f32.mrb[0].mxu0
        %v1979 = vadd.f32 0.0, %v1978
        %v1980 = vpop.f32.mrb[0].mxu0
        %v1981 = vpop.f32.mrb[0].mxu0
        %v1982 = vadd.f32 0.0, %v1981
        %v1983 = vpop.f32.mrb[0].mxu0
        %1984 = vdwg.mxu0
        %v1985 = vadd.f32 %v1883, %v1955
        %v1986 = vadd.f32 %v1884, %v1958
        %v1987 = vadd.f32 %v1885, %v1963
        %v1988 = vadd.f32 %v1886, %v1966
        %v1989 = vadd.f32 %v1887, %v1971
        %v1990 = vadd.f32 %v1888, %v1974
        %v1991 = vadd.f32 %v1889, %v1979
        %v1992 = vadd.f32 %v1890, %v1982
        %v1993 = vld [vmem:[%s1788 + $0x1] sm:$0xff]
        %v1994 = vld [vmem:[%s1788 + $0x19] sm:$0xff]
        %v1995 = vld [vmem:[%s1788 + $0x31] sm:$0xff]
        %v1996 = vld [vmem:[%s1788 + $0x49] sm:$0xff]
        %v1997 = vld [vmem:[%s1788 + $0x61] sm:$0xff]
        %v1998 = vld [vmem:[%s1788 + $0x79] sm:$0xff]
        %v1999 = vld [vmem:[%s1788 + $0x91] sm:$0xff]
        %v2000 = vld [vmem:[%s1788 + $0xa9] sm:$0xff]
        %v2001 = vpack.c.bf16 %v1994, %v1993
        %v2002 = vpack.c.bf16 %v1996, %v1995
        %v2003 = vpack.c.bf16 %v1998, %v1997
        %v2004 = vpack.c.bf16 %v2000, %v1999
        %s2005 = scalar_lea.vmem [#allocation15], 16
        %v2006 = vld [vmem:[%s2005] sm:$0x3]
        %v2008 = vsel %vm1066, %v2001, 0
        %v2011 = vsel %vm1066, %v2002, 0
        %v2014 = vsel %vm1066, %v2003, 0
        %v2017 = vsel %vm1066, %v2004, 0
        %v2020 = vsel %vm1161, %v2006, 0
        %2022 = vmatprep.subr.bf16.mxu0 0
        %2023 = vmatpush1.bf16.msra.mxu0 %v2020
        %2024 = vmatprep.subr.bf16.mxu0 0
        %2025 = vmatpush1.bf16.msra.mxu0 0
        %2026 = vmatprep.subr.bf16.mxu0 0
        %2027 = vmatpush1.bf16.msra.mxu0 0
        %2028 = vmatprep.subr.bf16.mxu0 0
        %2029 = vmatpush1.bf16.msra.mxu0 0
        %2030 = vmatprep.subr.bf16.mxu0 0
        %2031 = vmatpush1.bf16.msra.mxu0 0
        %2032 = vmatprep.subr.bf16.mxu0 0
        %2033 = vmatpush1.bf16.msra.mxu0 0
        %2034 = vmatprep.subr.bf16.mxu0 0
        %2035 = vmatpush1.bf16.msra.mxu0 0
        %2036 = vmatprep.subr.bf16.mxu0 0
        %2037 = vmatpush1.bf16.msra.mxu0 0
        %2038 = vmatprep.subr.bf16.mxu0 0
        %2039 = vmatpush1.bf16.msra.mxu0 0
        %2040 = vmatprep.subr.bf16.mxu0 0
        %2041 = vmatpush1.bf16.msra.mxu0 0
        %2042 = vmatprep.subr.bf16.mxu0 0
        %2043 = vmatpush1.bf16.msra.mxu0 0
        %2044 = vmatprep.subr.bf16.mxu0 0
        %2045 = vmatpush1.bf16.msra.mxu0 0
        %2046 = vmatprep.subr.bf16.mxu0 0
        %2047 = vmatpush1.bf16.msra.mxu0 0
        %2048 = vmatprep.subr.bf16.mxu0 0
        %2049 = vmatpush1.bf16.msra.mxu0 0
        %2050 = vmatprep.subr.bf16.mxu0 0
        %2051 = vmatpush1.bf16.msra.mxu0 0
        %2052 = vmatprep.subr.bf16.mxu0 0
        %2053 = vmatpush1.bf16.msra.mxu0 0
        %2054 = vmatprep.mubr.bf16.mxu0 0
        %2055 = vmatmul.mubr.bf16.gmra.mrb[0].mxu0 %v2008
        %v2056 = vpop.f32.mrb[0].mxu0
        %v2057 = vadd.f32 0.0, %v2056
        %v2058 = vpop.f32.mrb[0].mxu0
        %v2059 = vpop.f32.mrb[0].mxu0
        %v2060 = vadd.f32 0.0, %v2059
        %v2061 = vpop.f32.mrb[0].mxu0
        %2062 = vmatprep.mubr.bf16.mxu0 0
        %2063 = vmatmul.mubr.bf16.gmra.mrb[0].mxu0 %v2011
        %v2064 = vpop.f32.mrb[0].mxu0
        %v2065 = vadd.f32 0.0, %v2064
        %v2066 = vpop.f32.mrb[0].mxu0
        %v2067 = vpop.f32.mrb[0].mxu0
        %v2068 = vadd.f32 0.0, %v2067
        %v2069 = vpop.f32.mrb[0].mxu0
        %2070 = vmatprep.mubr.bf16.mxu0 0
        %2071 = vmatmul.mubr.bf16.gmra.mrb[0].mxu0 %v2014
        %v2072 = vpop.f32.mrb[0].mxu0
        %v2073 = vadd.f32 0.0, %v2072
        %v2074 = vpop.f32.mrb[0].mxu0
        %v2075 = vpop.f32.mrb[0].mxu0
        %v2076 = vadd.f32 0.0, %v2075
        %v2077 = vpop.f32.mrb[0].mxu0
        %2078 = vmatprep.mubr.bf16.mxu0 0
        %2079 = vmatmul.mubr.bf16.gmra.mrb[0].mxu0 %v2017
        %v2080 = vpop.f32.mrb[0].mxu0
        %v2081 = vadd.f32 0.0, %v2080
        %v2082 = vpop.f32.mrb[0].mxu0
        %v2083 = vpop.f32.mrb[0].mxu0
        %v2084 = vadd.f32 0.0, %v2083
        %v2085 = vpop.f32.mrb[0].mxu0
        %2086 = vdwg.mxu0
        %v2087 = vadd.f32 %v1985, %v2057
        %v2088 = vadd.f32 %v1986, %v2060
        %v2089 = vadd.f32 %v1987, %v2065
        %v2090 = vadd.f32 %v1988, %v2068
        %v2091 = vadd.f32 %v1989, %v2073
        %v2092 = vadd.f32 %v1990, %v2076
        %v2093 = vadd.f32 %v1991, %v2081
        %v2094 = vadd.f32 %v1992, %v2084
        %v2095 = vld [vmem:[#allocation12] sm:$0x1]
        %v2097 = vlaneseq
        %v2098 = vshrl.u32 %v2097, 7
        %v2099 = vsub.s32 0, %v2098
        %v2100 = vrot.slane %v2095, %v2099
        %v2102 = vmul.f32 %v2087, %v2100
        %v2103 = vmul.f32 %v2088, %v2100
        %v2104 = vmul.f32 %v2089, %v2100
        %v2105 = vmul.f32 %v2090, %v2100
        %v2106 = vmul.f32 %v2091, %v2100
        %v2107 = vmul.f32 %v2092, %v2100
        %v2108 = vmul.f32 %v2093, %v2100
        %v2109 = vmul.f32 %v2094, %v2100
        %v2110 = vld [vmem:[#allocation13] sm:$0x1]
        %v2112 = vlaneseq
        %v2113 = vshrl.u32 %v2112, 7
        %v2114 = vsub.s32 0, %v2113
        %v2115 = vrot.slane %v2110, %v2114
        %v2117 = vadd.f32 %v2102, %v2115
        %v2118 = vadd.f32 %v2103, %v2115
        %v2119 = vadd.f32 %v2104, %v2115
        %v2120 = vadd.f32 %v2105, %v2115
        %v2121 = vadd.f32 %v2106, %v2115
        %v2122 = vadd.f32 %v2107, %v2115
        %v2123 = vadd.f32 %v2108, %v2115
        %v2124 = vadd.f32 %v2109, %v2115
        %v2125 = vmax.f32 %v2117, 0.0
        %v2126 = vmax.f32 %v2118, 0.0
        %v2127 = vmax.f32 %v2119, 0.0
        %v2128 = vmax.f32 %v2120, 0.0
        %v2129 = vmax.f32 %v2121, 0.0
        %v2130 = vmax.f32 %v2122, 0.0
        %v2131 = vmax.f32 %v2123, 0.0
        %v2132 = vmax.f32 %v2124, 0.0
        %vm2133 = vcmask 64512
        %2134 = vst.msk [vmem:[#allocation3] sm:$0xff] %vm2133, 0.0
        %vm2135 = vcmask 58368
        %2136 = vst.msk [vmem:[#allocation3 + $0x8] sm:$0x3] %vm2135, 0.0
        %2137 = vst.msk [vmem:[#allocation3 + $0x10] sm:$0xff] %vm2133, 0.0
        %2138 = vst.msk [vmem:[#allocation3 + $0x18] sm:$0x3] %vm2135, 0.0
        %2139 = vst.msk [vmem:[#allocation3 + $0x20] sm:$0xff] %vm2133, 0.0
        %2140 = vst.msk [vmem:[#allocation3 + $0x28] sm:$0x3] %vm2135, 0.0
        %2141 = vst.msk [vmem:[#allocation3 + $0x30] sm:$0xff] %vm2133, 0.0
        %2142 = vst.msk [vmem:[#allocation3 + $0x38] sm:$0x3] %vm2135, 0.0
        %2143 = vst.msk [vmem:[#allocation3 + $0x40] sm:$0xff] %vm2133, 0.0
        %2144 = vst.msk [vmem:[#allocation3 + $0x48] sm:$0x3] %vm2135, 0.0
        %2145 = vst.msk [vmem:[#allocation3 + $0x50] sm:$0xff] %vm2133, 0.0
        %2146 = vst.msk [vmem:[#allocation3 + $0x58] sm:$0x3] %vm2135, 0.0
        %2147 = vst.msk [vmem:[#allocation3 + $0x60] sm:$0xff] %vm2133, 0.0
        %2148 = vst.msk [vmem:[#allocation3 + $0x68] sm:$0x3] %vm2135, 0.0
        %2149 = vst.msk [vmem:[#allocation3 + $0x70] sm:$0xff] %vm2133, 0.0
        %2150 = vst.msk [vmem:[#allocation3 + $0x78] sm:$0x3] %vm2135, 0.0
        %2151 = vst.msk [vmem:[#allocation3 + $0x80] sm:$0xff] %vm2133, 0.0
        %2152 = vst.msk [vmem:[#allocation3 + $0x88] sm:$0x3] %vm2135, 0.0
        %2153 = vst.msk [vmem:[#allocation3 + $0x90] sm:$0xff] %vm2133, 0.0
        %2154 = vst.msk [vmem:[#allocation3 + $0x98] sm:$0x3] %vm2135, 0.0
        %s2155 = scalar_lea.vmem [#allocation3], 16
        %2156 = vst.msk [vmem:[%s2155 + $0x1] sm:$0xff] %vm2133, %v2125
        %2157 = vst.msk [vmem:[%s2155 + $0x11] sm:$0xff] %vm2133, %v2126
        %2158 = vst.msk [vmem:[%s2155 + $0x21] sm:$0xff] %vm2133, %v2127
        %2159 = vst.msk [vmem:[%s2155 + $0x31] sm:$0xff] %vm2133, %v2128
        %2160 = vst.msk [vmem:[%s2155 + $0x41] sm:$0xff] %vm2133, %v2129
        %2161 = vst.msk [vmem:[%s2155 + $0x51] sm:$0xff] %vm2133, %v2130
        %2162 = vst.msk [vmem:[%s2155 + $0x61] sm:$0xff] %vm2133, %v2131
        %2163 = vst.msk [vmem:[%s2155 + $0x71] sm:$0xff] %vm2133, %v2132
        %v2164 = vld [vmem:[#allocation3] sm:$0xff]
        %v2165 = vld [vmem:[#allocation3 + $0x10] sm:$0xff]
        %v2166 = vld [vmem:[#allocation3 + $0x20] sm:$0xff]
        %v2167 = vld [vmem:[#allocation3 + $0x30] sm:$0xff]
        %v2168 = vld [vmem:[#allocation3 + $0x40] sm:$0xff]
        %v2169 = vld [vmem:[#allocation3 + $0x50] sm:$0xff]
        %v2170 = vld [vmem:[#allocation3 + $0x60] sm:$0xff]
        %v2171 = vld [vmem:[#allocation3 + $0x70] sm:$0xff]
        %v2172 = vpack.c.bf16 %v2165, %v2164
        %v2173 = vpack.c.bf16 %v2167, %v2166
        %v2174 = vpack.c.bf16 %v2169, %v2168
        %v2175 = vpack.c.bf16 %v2171, %v2170
        %v2176 = vld [vmem:[#allocation16] sm:$0xf]
        %v2177 = vld [vmem:[#allocation3 + $0x1] sm:$0xff]
        %v2178 = vld [vmem:[#allocation3 + $0x11] sm:$0xff]
        %v2179 = vld [vmem:[#allocation3 + $0x21] sm:$0xff]
        %v2180 = vld [vmem:[#allocation3 + $0x31] sm:$0xff]
        %v2181 = vld [vmem:[#allocation3 + $0x41] sm:$0xff]
        %v2182 = vld [vmem:[#allocation3 + $0x51] sm:$0xff]
        %v2183 = vld [vmem:[#allocation3 + $0x61] sm:$0xff]
        %v2184 = vld [vmem:[#allocation3 + $0x71] sm:$0xff]
        %v2185 = vpack.c.bf16 %v2178, %v2177
        %v2186 = vpack.c.bf16 %v2180, %v2179
        %v2187 = vpack.c.bf16 %v2182, %v2181
        %v2188 = vpack.c.bf16 %v2184, %v2183
        %s2189 = scalar_lea.vmem [#allocation16], 4
        %v2190 = vld [vmem:[%s2189] sm:$0xf]
        %v2192 = vsel %vm2133, %v2185, 0
        %v2195 = vsel %vm2133, %v2186, 0
        %v2198 = vsel %vm2133, %v2187, 0
        %v2201 = vsel %vm2133, %v2188, 0
        %vm2203 = vcmask 1043456
        %v2205 = vsel %vm2203, %v2190, 0
        %2207 = vmatprep.subr.bf16.mxu0 0
        %2208 = vmatpush1.bf16.msra.mxu0 %v2205
        %2209 = vmatprep.subr.bf16.mxu0 0
        %2210 = vmatpush1.bf16.msra.mxu0 0
        %2211 = vmatprep.subr.bf16.mxu0 0
        %2212 = vmatpush1.bf16.msra.mxu0 0
        %2213 = vmatprep.subr.bf16.mxu0 0
        %2214 = vmatpush1.bf16.msra.mxu0 0
        %2215 = vmatprep.subr.bf16.mxu0 0
        %2216 = vmatpush1.bf16.msra.mxu0 0
        %2217 = vmatprep.subr.bf16.mxu0 0
        %2218 = vmatpush1.bf16.msra.mxu0 0
        %2219 = vmatprep.subr.bf16.mxu0 0
        %2220 = vmatpush1.bf16.msra.mxu0 0
        %2221 = vmatprep.subr.bf16.mxu0 0
        %2222 = vmatpush1.bf16.msra.mxu0 0
        %2223 = vmatprep.subr.bf16.mxu0 0
        %2224 = vmatpush1.bf16.msra.mxu0 0
        %2225 = vmatprep.subr.bf16.mxu0 0
        %2226 = vmatpush1.bf16.msra.mxu0 0
        %2227 = vmatprep.subr.bf16.mxu0 0
        %2228 = vmatpush1.bf16.msra.mxu0 0
        %2229 = vmatprep.subr.bf16.mxu0 0
        %2230 = vmatpush1.bf16.msra.mxu0 0
        %2231 = vmatprep.subr.bf16.mxu0 0
        %2232 = vmatpush1.bf16.msra.mxu0 0
        %2233 = vmatprep.subr.bf16.mxu0 0
        %2234 = vmatpush1.bf16.msra.mxu0 0
        %2235 = vmatprep.subr.bf16.mxu0 0
        %2236 = vmatpush1.bf16.msra.mxu0 0
        %2237 = vmatprep.subr.bf16.mxu0 0
        %2238 = vmatpush1.bf16.msra.mxu0 0
        %2239 = vmatprep.mubr.bf16.mxu0 0
        %2240 = vmatmul.mubr.bf16.gmra.mrb[0].mxu0 %v2192
        %v2241 = vpop.f32.mrb[0].mxu0
        %v2242 = vadd.f32 0.0, %v2241
        %v2243 = vpop.f32.mrb[0].mxu0
        %v2244 = vpop.f32.mrb[0].mxu0
        %v2245 = vadd.f32 0.0, %v2244
        %v2246 = vpop.f32.mrb[0].mxu0
        %2247 = vmatprep.mubr.bf16.mxu0 0
        %2248 = vmatmul.mubr.bf16.gmra.mrb[0].mxu0 %v2195
        %v2249 = vpop.f32.mrb[0].mxu0
        %v2250 = vadd.f32 0.0, %v2249
        %v2251 = vpop.f32.mrb[0].mxu0
        %v2252 = vpop.f32.mrb[0].mxu0
        %v2253 = vadd.f32 0.0, %v2252
        %v2254 = vpop.f32.mrb[0].mxu0
        %2255 = vmatprep.mubr.bf16.mxu0 0
        %2256 = vmatmul.mubr.bf16.gmra.mrb[0].mxu0 %v2198
        %v2257 = vpop.f32.mrb[0].mxu0
        %v2258 = vadd.f32 0.0, %v2257
        %v2259 = vpop.f32.mrb[0].mxu0
        %v2260 = vpop.f32.mrb[0].mxu0
        %v2261 = vadd.f32 0.0, %v2260
        %v2262 = vpop.f32.mrb[0].mxu0
        %2263 = vmatprep.mubr.bf16.mxu0 0
        %2264 = vmatmul.mubr.bf16.gmra.mrb[0].mxu0 %v2201
        %v2265 = vpop.f32.mrb[0].mxu0
        %v2266 = vadd.f32 0.0, %v2265
        %v2267 = vpop.f32.mrb[0].mxu0
        %v2268 = vpop.f32.mrb[0].mxu0
        %v2269 = vadd.f32 0.0, %v2268
        %v2270 = vpop.f32.mrb[0].mxu0
        %2271 = vdwg.mxu0
        %v2273 = vsel %vm2133, %v2172, 0
        %v2276 = vsel %vm2133, %v2173, 0
        %v2279 = vsel %vm2133, %v2174, 0
        %v2282 = vsel %vm2133, %v2175, 0
        %v2285 = vsel %vm2203, %v2176, 0
        %2287 = vmatprep.subr.bf16.mxu0 0
        %2288 = vmatpush1.bf16.msra.mxu0 %v2285
        %2289 = vmatprep.subr.bf16.mxu0 0
        %2290 = vmatpush1.bf16.msra.mxu0 0
        %2291 = vmatprep.subr.bf16.mxu0 0
        %2292 = vmatpush1.bf16.msra.mxu0 0
        %2293 = vmatprep.subr.bf16.mxu0 0
        %2294 = vmatpush1.bf16.msra.mxu0 0
        %2295 = vmatprep.subr.bf16.mxu0 0
        %2296 = vmatpush1.bf16.msra.mxu0 0
        %2297 = vmatprep.subr.bf16.mxu0 0
        %2298 = vmatpush1.bf16.msra.mxu0 0
        %2299 = vmatprep.subr.bf16.mxu0 0
        %2300 = vmatpush1.bf16.msra.mxu0 0
        %2301 = vmatprep.subr.bf16.mxu0 0
        %2302 = vmatpush1.bf16.msra.mxu0 0
        %2303 = vmatprep.subr.bf16.mxu0 0
        %2304 = vmatpush1.bf16.msra.mxu0 0
        %2305 = vmatprep.subr.bf16.mxu0 0
        %2306 = vmatpush1.bf16.msra.mxu0 0
        %2307 = vmatprep.subr.bf16.mxu0 0
        %2308 = vmatpush1.bf16.msra.mxu0 0
        %2309 = vmatprep.subr.bf16.mxu0 0
        %2310 = vmatpush1.bf16.msra.mxu0 0
        %2311 = vmatprep.subr.bf16.mxu0 0
        %2312 = vmatpush1.bf16.msra.mxu0 0
        %2313 = vmatprep.subr.bf16.mxu0 0
        %2314 = vmatpush1.bf16.msra.mxu0 0
        %2315 = vmatprep.subr.bf16.mxu0 0
        %2316 = vmatpush1.bf16.msra.mxu0 0
        %2317 = vmatprep.subr.bf16.mxu0 0
        %2318 = vmatpush1.bf16.msra.mxu0 0
        %2319 = vmatprep.mubr.bf16.mxu0 0
        %2320 = vmatmul.mubr.bf16.gmra.mrb[0].mxu0 %v2273
        %v2321 = vpop.f32.mrb[0].mxu0
        %v2322 = vadd.f32 %v2242, %v2321
        %v2323 = vpop.f32.mrb[0].mxu0
        %v2324 = vpop.f32.mrb[0].mxu0
        %v2325 = vadd.f32 %v2245, %v2324
        %v2326 = vpop.f32.mrb[0].mxu0
        %2327 = vmatprep.mubr.bf16.mxu0 0
        %2328 = vmatmul.mubr.bf16.gmra.mrb[0].mxu0 %v2276
        %v2329 = vpop.f32.mrb[0].mxu0
        %v2330 = vadd.f32 %v2250, %v2329
        %v2331 = vpop.f32.mrb[0].mxu0
        %v2332 = vpop.f32.mrb[0].mxu0
        %v2333 = vadd.f32 %v2253, %v2332
        %v2334 = vpop.f32.mrb[0].mxu0
        %2335 = vmatprep.mubr.bf16.mxu0 0
        %2336 = vmatmul.mubr.bf16.gmra.mrb[0].mxu0 %v2279
        %v2337 = vpop.f32.mrb[0].mxu0
        %v2338 = vadd.f32 %v2258, %v2337
        %v2339 = vpop.f32.mrb[0].mxu0
        %v2340 = vpop.f32.mrb[0].mxu0
        %v2341 = vadd.f32 %v2261, %v2340
        %v2342 = vpop.f32.mrb[0].mxu0
        %2343 = vmatprep.mubr.bf16.mxu0 0
        %2344 = vmatmul.mubr.bf16.gmra.mrb[0].mxu0 %v2282
        %v2345 = vpop.f32.mrb[0].mxu0
        %v2346 = vadd.f32 %v2266, %v2345
        %v2347 = vpop.f32.mrb[0].mxu0
        %v2348 = vpop.f32.mrb[0].mxu0
        %v2349 = vadd.f32 %v2269, %v2348
        %v2350 = vpop.f32.mrb[0].mxu0
        %2351 = vdwg.mxu0
        %v2352 = vld [vmem:[#allocation3 + $0x2] sm:$0xff]
        %v2353 = vld [vmem:[#allocation3 + $0x12] sm:$0xff]
        %v2354 = vld [vmem:[#allocation3 + $0x22] sm:$0xff]
        %v2355 = vld [vmem:[#allocation3 + $0x32] sm:$0xff]
        %v2356 = vld [vmem:[#allocation3 + $0x42] sm:$0xff]
        %v2357 = vld [vmem:[#allocation3 + $0x52] sm:$0xff]
        %v2358 = vld [vmem:[#allocation3 + $0x62] sm:$0xff]
        %v2359 = vld [vmem:[#allocation3 + $0x72] sm:$0xff]
        %v2360 = vpack.c.bf16 %v2353, %v2352
        %v2361 = vpack.c.bf16 %v2355, %v2354
        %v2362 = vpack.c.bf16 %v2357, %v2356
        %v2363 = vpack.c.bf16 %v2359, %v2358
        %s2364 = scalar_lea.vmem [#allocation16], 8
        %v2365 = vld [vmem:[%s2364] sm:$0xf]
        %v2367 = vsel %vm2133, %v2360, 0
        %v2370 = vsel %vm2133, %v2361, 0
        %v2373 = vsel %vm2133, %v2362, 0
        %v2376 = vsel %vm2133, %v2363, 0
        %v2379 = vsel %vm2203, %v2365, 0
        %2381 = vmatprep.subr.bf16.mxu0 0
        %2382 = vmatpush1.bf16.msra.mxu0 %v2379
        %2383 = vmatprep.subr.bf16.mxu0 0
        %2384 = vmatpush1.bf16.msra.mxu0 0
        %2385 = vmatprep.subr.bf16.mxu0 0
        %2386 = vmatpush1.bf16.msra.mxu0 0
        %2387 = vmatprep.subr.bf16.mxu0 0
        %2388 = vmatpush1.bf16.msra.mxu0 0
        %2389 = vmatprep.subr.bf16.mxu0 0
        %2390 = vmatpush1.bf16.msra.mxu0 0
        %2391 = vmatprep.subr.bf16.mxu0 0
        %2392 = vmatpush1.bf16.msra.mxu0 0
        %2393 = vmatprep.subr.bf16.mxu0 0
        %2394 = vmatpush1.bf16.msra.mxu0 0
        %2395 = vmatprep.subr.bf16.mxu0 0
        %2396 = vmatpush1.bf16.msra.mxu0 0
        %2397 = vmatprep.subr.bf16.mxu0 0
        %2398 = vmatpush1.bf16.msra.mxu0 0
        %2399 = vmatprep.subr.bf16.mxu0 0
        %2400 = vmatpush1.bf16.msra.mxu0 0
        %2401 = vmatprep.subr.bf16.mxu0 0
        %2402 = vmatpush1.bf16.msra.mxu0 0
        %2403 = vmatprep.subr.bf16.mxu0 0
        %2404 = vmatpush1.bf16.msra.mxu0 0
        %2405 = vmatprep.subr.bf16.mxu0 0
        %2406 = vmatpush1.bf16.msra.mxu0 0
        %2407 = vmatprep.subr.bf16.mxu0 0
        %2408 = vmatpush1.bf16.msra.mxu0 0
        %2409 = vmatprep.subr.bf16.mxu0 0
        %2410 = vmatpush1.bf16.msra.mxu0 0
        %2411 = vmatprep.subr.bf16.mxu0 0
        %2412 = vmatpush1.bf16.msra.mxu0 0
        %2413 = vmatprep.mubr.bf16.mxu0 0
        %2414 = vmatmul.mubr.bf16.gmra.mrb[0].mxu0 %v2367
        %v2415 = vpop.f32.mrb[0].mxu0
        %v2416 = vadd.f32 0.0, %v2415
        %v2417 = vpop.f32.mrb[0].mxu0
        %v2418 = vpop.f32.mrb[0].mxu0
        %v2419 = vadd.f32 0.0, %v2418
        %v2420 = vpop.f32.mrb[0].mxu0
        %2421 = vmatprep.mubr.bf16.mxu0 0
        %2422 = vmatmul.mubr.bf16.gmra.mrb[0].mxu0 %v2370
        %v2423 = vpop.f32.mrb[0].mxu0
        %v2424 = vadd.f32 0.0, %v2423
        %v2425 = vpop.f32.mrb[0].mxu0
        %v2426 = vpop.f32.mrb[0].mxu0
        %v2427 = vadd.f32 0.0, %v2426
        %v2428 = vpop.f32.mrb[0].mxu0
        %2429 = vmatprep.mubr.bf16.mxu0 0
        %2430 = vmatmul.mubr.bf16.gmra.mrb[0].mxu0 %v2373
        %v2431 = vpop.f32.mrb[0].mxu0
        %v2432 = vadd.f32 0.0, %v2431
        %v2433 = vpop.f32.mrb[0].mxu0
        %v2434 = vpop.f32.mrb[0].mxu0
        %v2435 = vadd.f32 0.0, %v2434
        %v2436 = vpop.f32.mrb[0].mxu0
        %2437 = vmatprep.mubr.bf16.mxu0 0
        %2438 = vmatmul.mubr.bf16.gmra.mrb[0].mxu0 %v2376
        %v2439 = vpop.f32.mrb[0].mxu0
        %v2440 = vadd.f32 0.0, %v2439
        %v2441 = vpop.f32.mrb[0].mxu0
        %v2442 = vpop.f32.mrb[0].mxu0
        %v2443 = vadd.f32 0.0, %v2442
        %v2444 = vpop.f32.mrb[0].mxu0
        %2445 = vdwg.mxu0
        %v2446 = vadd.f32 %v2322, %v2416
        %v2447 = vadd.f32 %v2325, %v2419
        %v2448 = vadd.f32 %v2330, %v2424
        %v2449 = vadd.f32 %v2333, %v2427
        %v2450 = vadd.f32 %v2338, %v2432
        %v2451 = vadd.f32 %v2341, %v2435
        %v2452 = vadd.f32 %v2346, %v2440
        %v2453 = vadd.f32 %v2349, %v2443
        %v2454 = vld [vmem:[%s2155] sm:$0xff]
        %v2455 = vld [vmem:[%s2155 + $0x10] sm:$0xff]
        %v2456 = vld [vmem:[%s2155 + $0x20] sm:$0xff]
        %v2457 = vld [vmem:[%s2155 + $0x30] sm:$0xff]
        %v2458 = vld [vmem:[%s2155 + $0x40] sm:$0xff]
        %v2459 = vld [vmem:[%s2155 + $0x50] sm:$0xff]
        %v2460 = vld [vmem:[%s2155 + $0x60] sm:$0xff]
        %v2461 = vld [vmem:[%s2155 + $0x70] sm:$0xff]
        %v2462 = vpack.c.bf16 %v2455, %v2454
        %v2463 = vpack.c.bf16 %v2457, %v2456
        %v2464 = vpack.c.bf16 %v2459, %v2458
        %v2465 = vpack.c.bf16 %v2461, %v2460
        %s2466 = scalar_lea.vmem [#allocation16], 12
        %v2467 = vld [vmem:[%s2466] sm:$0xf]
        %v2469 = vsel %vm2133, %v2462, 0
        %v2472 = vsel %vm2133, %v2463, 0
        %v2475 = vsel %vm2133, %v2464, 0
        %v2478 = vsel %vm2133, %v2465, 0
        %v2481 = vsel %vm2203, %v2467, 0
        %2483 = vmatprep.subr.bf16.mxu0 0
        %2484 = vmatpush1.bf16.msra.mxu0 %v2481
        %2485 = vmatprep.subr.bf16.mxu0 0
        %2486 = vmatpush1.bf16.msra.mxu0 0
        %2487 = vmatprep.subr.bf16.mxu0 0
        %2488 = vmatpush1.bf16.msra.mxu0 0
        %2489 = vmatprep.subr.bf16.mxu0 0
        %2490 = vmatpush1.bf16.msra.mxu0 0
        %2491 = vmatprep.subr.bf16.mxu0 0
        %2492 = vmatpush1.bf16.msra.mxu0 0
        %2493 = vmatprep.subr.bf16.mxu0 0
        %2494 = vmatpush1.bf16.msra.mxu0 0
        %2495 = vmatprep.subr.bf16.mxu0 0
        %2496 = vmatpush1.bf16.msra.mxu0 0
        %2497 = vmatprep.subr.bf16.mxu0 0
        %2498 = vmatpush1.bf16.msra.mxu0 0
        %2499 = vmatprep.subr.bf16.mxu0 0
        %2500 = vmatpush1.bf16.msra.mxu0 0
        %2501 = vmatprep.subr.bf16.mxu0 0
        %2502 = vmatpush1.bf16.msra.mxu0 0
        %2503 = vmatprep.subr.bf16.mxu0 0
        %2504 = vmatpush1.bf16.msra.mxu0 0
        %2505 = vmatprep.subr.bf16.mxu0 0
        %2506 = vmatpush1.bf16.msra.mxu0 0
        %2507 = vmatprep.subr.bf16.mxu0 0
        %2508 = vmatpush1.bf16.msra.mxu0 0
        %2509 = vmatprep.subr.bf16.mxu0 0
        %2510 = vmatpush1.bf16.msra.mxu0 0
        %2511 = vmatprep.subr.bf16.mxu0 0
        %2512 = vmatpush1.bf16.msra.mxu0 0
        %2513 = vmatprep.subr.bf16.mxu0 0
        %2514 = vmatpush1.bf16.msra.mxu0 0
        %2515 = vmatprep.mubr.bf16.mxu0 0
        %2516 = vmatmul.mubr.bf16.gmra.mrb[0].mxu0 %v2469
        %v2517 = vpop.f32.mrb[0].mxu0
        %v2518 = vadd.f32 0.0, %v2517
        %v2519 = vpop.f32.mrb[0].mxu0
        %v2520 = vpop.f32.mrb[0].mxu0
        %v2521 = vadd.f32 0.0, %v2520
        %v2522 = vpop.f32.mrb[0].mxu0
        %2523 = vmatprep.mubr.bf16.mxu0 0
        %2524 = vmatmul.mubr.bf16.gmra.mrb[0].mxu0 %v2472
        %v2525 = vpop.f32.mrb[0].mxu0
        %v2526 = vadd.f32 0.0, %v2525
        %v2527 = vpop.f32.mrb[0].mxu0
        %v2528 = vpop.f32.mrb[0].mxu0
        %v2529 = vadd.f32 0.0, %v2528
        %v2530 = vpop.f32.mrb[0].mxu0
        %2531 = vmatprep.mubr.bf16.mxu0 0
        %2532 = vmatmul.mubr.bf16.gmra.mrb[0].mxu0 %v2475
        %v2533 = vpop.f32.mrb[0].mxu0
        %v2534 = vadd.f32 0.0, %v2533
        %v2535 = vpop.f32.mrb[0].mxu0
        %v2536 = vpop.f32.mrb[0].mxu0
        %v2537 = vadd.f32 0.0, %v2536
        %v2538 = vpop.f32.mrb[0].mxu0
        %2539 = vmatprep.mubr.bf16.mxu0 0
        %2540 = vmatmul.mubr.bf16.gmra.mrb[0].mxu0 %v2478
        %v2541 = vpop.f32.mrb[0].mxu0
        %v2542 = vadd.f32 0.0, %v2541
        %v2543 = vpop.f32.mrb[0].mxu0
        %v2544 = vpop.f32.mrb[0].mxu0
        %v2545 = vadd.f32 0.0, %v2544
        %v2546 = vpop.f32.mrb[0].mxu0
        %2547 = vdwg.mxu0
        %v2548 = vadd.f32 %v2446, %v2518
        %v2549 = vadd.f32 %v2447, %v2521
        %v2550 = vadd.f32 %v2448, %v2526
        %v2551 = vadd.f32 %v2449, %v2529
        %v2552 = vadd.f32 %v2450, %v2534
        %v2553 = vadd.f32 %v2451, %v2537
        %v2554 = vadd.f32 %v2452, %v2542
        %v2555 = vadd.f32 %v2453, %v2545
        %v2556 = vld [vmem:[%s2155 + $0x1] sm:$0xff]
        %v2557 = vld [vmem:[%s2155 + $0x11] sm:$0xff]
        %v2558 = vld [vmem:[%s2155 + $0x21] sm:$0xff]
        %v2559 = vld [vmem:[%s2155 + $0x31] sm:$0xff]
        %v2560 = vld [vmem:[%s2155 + $0x41] sm:$0xff]
        %v2561 = vld [vmem:[%s2155 + $0x51] sm:$0xff]
        %v2562 = vld [vmem:[%s2155 + $0x61] sm:$0xff]
        %v2563 = vld [vmem:[%s2155 + $0x71] sm:$0xff]
        %v2564 = vpack.c.bf16 %v2557, %v2556
        %v2565 = vpack.c.bf16 %v2559, %v2558
        %v2566 = vpack.c.bf16 %v2561, %v2560
        %v2567 = vpack.c.bf16 %v2563, %v2562
        %s2568 = scalar_lea.vmem [#allocation16], 16
        %v2569 = vld [vmem:[%s2568] sm:$0xf]
        %v2571 = vsel %vm2133, %v2564, 0
        %v2574 = vsel %vm2133, %v2565, 0
        %v2577 = vsel %vm2133, %v2566, 0
        %v2580 = vsel %vm2133, %v2567, 0
        %v2583 = vsel %vm2203, %v2569, 0
        %2585 = vmatprep.subr.bf16.mxu0 0
        %2586 = vmatpush1.bf16.msra.mxu0 %v2583
        %2587 = vmatprep.subr.bf16.mxu0 0
        %2588 = vmatpush1.bf16.msra.mxu0 0
        %2589 = vmatprep.subr.bf16.mxu0 0
        %2590 = vmatpush1.bf16.msra.mxu0 0
        %2591 = vmatprep.subr.bf16.mxu0 0
        %2592 = vmatpush1.bf16.msra.mxu0 0
        %2593 = vmatprep.subr.bf16.mxu0 0
        %2594 = vmatpush1.bf16.msra.mxu0 0
        %2595 = vmatprep.subr.bf16.mxu0 0
        %2596 = vmatpush1.bf16.msra.mxu0 0
        %2597 = vmatprep.subr.bf16.mxu0 0
        %2598 = vmatpush1.bf16.msra.mxu0 0
        %2599 = vmatprep.subr.bf16.mxu0 0
        %2600 = vmatpush1.bf16.msra.mxu0 0
        %2601 = vmatprep.subr.bf16.mxu0 0
        %2602 = vmatpush1.bf16.msra.mxu0 0
        %2603 = vmatprep.subr.bf16.mxu0 0
        %2604 = vmatpush1.bf16.msra.mxu0 0
        %2605 = vmatprep.subr.bf16.mxu0 0
        %2606 = vmatpush1.bf16.msra.mxu0 0
        %2607 = vmatprep.subr.bf16.mxu0 0
        %2608 = vmatpush1.bf16.msra.mxu0 0
        %2609 = vmatprep.subr.bf16.mxu0 0
        %2610 = vmatpush1.bf16.msra.mxu0 0
        %2611 = vmatprep.subr.bf16.mxu0 0
        %2612 = vmatpush1.bf16.msra.mxu0 0
        %2613 = vmatprep.subr.bf16.mxu0 0
        %2614 = vmatpush1.bf16.msra.mxu0 0
        %2615 = vmatprep.subr.bf16.mxu0 0
        %2616 = vmatpush1.bf16.msra.mxu0 0
        %2617 = vmatprep.mubr.bf16.mxu0 0
        %2618 = vmatmul.mubr.bf16.gmra.mrb[0].mxu0 %v2571
        %v2619 = vpop.f32.mrb[0].mxu0
        %v2620 = vadd.f32 0.0, %v2619
        %v2621 = vpop.f32.mrb[0].mxu0
        %v2622 = vpop.f32.mrb[0].mxu0
        %v2623 = vadd.f32 0.0, %v2622
        %v2624 = vpop.f32.mrb[0].mxu0
        %2625 = vmatprep.mubr.bf16.mxu0 0
        %2626 = vmatmul.mubr.bf16.gmra.mrb[0].mxu0 %v2574
        %v2627 = vpop.f32.mrb[0].mxu0
        %v2628 = vadd.f32 0.0, %v2627
        %v2629 = vpop.f32.mrb[0].mxu0
        %v2630 = vpop.f32.mrb[0].mxu0
        %v2631 = vadd.f32 0.0, %v2630
        %v2632 = vpop.f32.mrb[0].mxu0
        %2633 = vmatprep.mubr.bf16.mxu0 0
        %2634 = vmatmul.mubr.bf16.gmra.mrb[0].mxu0 %v2577
        %v2635 = vpop.f32.mrb[0].mxu0
        %v2636 = vadd.f32 0.0, %v2635
        %v2637 = vpop.f32.mrb[0].mxu0
        %v2638 = vpop.f32.mrb[0].mxu0
        %v2639 = vadd.f32 0.0, %v2638
        %v2640 = vpop.f32.mrb[0].mxu0
        %2641 = vmatprep.mubr.bf16.mxu0 0
        %2642 = vmatmul.mubr.bf16.gmra.mrb[0].mxu0 %v2580
        %v2643 = vpop.f32.mrb[0].mxu0
        %v2644 = vadd.f32 0.0, %v2643
        %v2645 = vpop.f32.mrb[0].mxu0
        %v2646 = vpop.f32.mrb[0].mxu0
        %v2647 = vadd.f32 0.0, %v2646
        %v2648 = vpop.f32.mrb[0].mxu0
        %2649 = vdwg.mxu0
        %v2650 = vadd.f32 %v2548, %v2620
        %v2651 = vadd.f32 %v2549, %v2623
        %v2652 = vadd.f32 %v2550, %v2628
        %v2653 = vadd.f32 %v2551, %v2631
        %v2654 = vadd.f32 %v2552, %v2636
        %v2655 = vadd.f32 %v2553, %v2639
        %v2656 = vadd.f32 %v2554, %v2644
        %v2657 = vadd.f32 %v2555, %v2647
        %v2658 = vld [vmem:[%s2155 + $0x2] sm:$0xff]
        %v2659 = vld [vmem:[%s2155 + $0x12] sm:$0xff]
        %v2660 = vld [vmem:[%s2155 + $0x22] sm:$0xff]
        %v2661 = vld [vmem:[%s2155 + $0x32] sm:$0xff]
        %v2662 = vld [vmem:[%s2155 + $0x42] sm:$0xff]
        %v2663 = vld [vmem:[%s2155 + $0x52] sm:$0xff]
        %v2664 = vld [vmem:[%s2155 + $0x62] sm:$0xff]
        %v2665 = vld [vmem:[%s2155 + $0x72] sm:$0xff]
        %v2666 = vpack.c.bf16 %v2659, %v2658
        %v2667 = vpack.c.bf16 %v2661, %v2660
        %v2668 = vpack.c.bf16 %v2663, %v2662
        %v2669 = vpack.c.bf16 %v2665, %v2664
        %s2670 = scalar_lea.vmem [#allocation16], 20
        %v2671 = vld [vmem:[%s2670] sm:$0xf]
        %v2673 = vsel %vm2133, %v2666, 0
        %v2676 = vsel %vm2133, %v2667, 0
        %v2679 = vsel %vm2133, %v2668, 0
        %v2682 = vsel %vm2133, %v2669, 0
        %v2685 = vsel %vm2203, %v2671, 0
        %2687 = vmatprep.subr.bf16.mxu0 0
        %2688 = vmatpush1.bf16.msra.mxu0 %v2685
        %2689 = vmatprep.subr.bf16.mxu0 0
        %2690 = vmatpush1.bf16.msra.mxu0 0
        %2691 = vmatprep.subr.bf16.mxu0 0
        %2692 = vmatpush1.bf16.msra.mxu0 0
        %2693 = vmatprep.subr.bf16.mxu0 0
        %2694 = vmatpush1.bf16.msra.mxu0 0
        %2695 = vmatprep.subr.bf16.mxu0 0
        %2696 = vmatpush1.bf16.msra.mxu0 0
        %2697 = vmatprep.subr.bf16.mxu0 0
        %2698 = vmatpush1.bf16.msra.mxu0 0
        %2699 = vmatprep.subr.bf16.mxu0 0
        %2700 = vmatpush1.bf16.msra.mxu0 0
        %2701 = vmatprep.subr.bf16.mxu0 0
        %2702 = vmatpush1.bf16.msra.mxu0 0
        %2703 = vmatprep.subr.bf16.mxu0 0
        %2704 = vmatpush1.bf16.msra.mxu0 0
        %2705 = vmatprep.subr.bf16.mxu0 0
        %2706 = vmatpush1.bf16.msra.mxu0 0
        %2707 = vmatprep.subr.bf16.mxu0 0
        %2708 = vmatpush1.bf16.msra.mxu0 0
        %2709 = vmatprep.subr.bf16.mxu0 0
        %2710 = vmatpush1.bf16.msra.mxu0 0
        %2711 = vmatprep.subr.bf16.mxu0 0
        %2712 = vmatpush1.bf16.msra.mxu0 0
        %2713 = vmatprep.subr.bf16.mxu0 0
        %2714 = vmatpush1.bf16.msra.mxu0 0
        %2715 = vmatprep.subr.bf16.mxu0 0
        %2716 = vmatpush1.bf16.msra.mxu0 0
        %2717 = vmatprep.subr.bf16.mxu0 0
        %2718 = vmatpush1.bf16.msra.mxu0 0
        %2719 = vmatprep.mubr.bf16.mxu0 0
        %2720 = vmatmul.mubr.bf16.gmra.mrb[0].mxu0 %v2673
        %v2721 = vpop.f32.mrb[0].mxu0
        %v2722 = vadd.f32 0.0, %v2721
        %v2723 = vpop.f32.mrb[0].mxu0
        %v2724 = vpop.f32.mrb[0].mxu0
        %v2725 = vadd.f32 0.0, %v2724
        %v2726 = vpop.f32.mrb[0].mxu0
        %2727 = vmatprep.mubr.bf16.mxu0 0
        %2728 = vmatmul.mubr.bf16.gmra.mrb[0].mxu0 %v2676
        %v2729 = vpop.f32.mrb[0].mxu0
        %v2730 = vadd.f32 0.0, %v2729
        %v2731 = vpop.f32.mrb[0].mxu0
        %v2732 = vpop.f32.mrb[0].mxu0
        %v2733 = vadd.f32 0.0, %v2732
        %v2734 = vpop.f32.mrb[0].mxu0
        %2735 = vmatprep.mubr.bf16.mxu0 0
        %2736 = vmatmul.mubr.bf16.gmra.mrb[0].mxu0 %v2679
        %v2737 = vpop.f32.mrb[0].mxu0
        %v2738 = vadd.f32 0.0, %v2737
        %v2739 = vpop.f32.mrb[0].mxu0
        %v2740 = vpop.f32.mrb[0].mxu0
        %v2741 = vadd.f32 0.0, %v2740
        %v2742 = vpop.f32.mrb[0].mxu0
        %2743 = vmatprep.mubr.bf16.mxu0 0
        %2744 = vmatmul.mubr.bf16.gmra.mrb[0].mxu0 %v2682
        %v2745 = vpop.f32.mrb[0].mxu0
        %v2746 = vadd.f32 0.0, %v2745
        %v2747 = vpop.f32.mrb[0].mxu0
        %v2748 = vpop.f32.mrb[0].mxu0
        %v2749 = vadd.f32 0.0, %v2748
        %v2750 = vpop.f32.mrb[0].mxu0
        %2751 = vdwg.mxu0
        %v2752 = vadd.f32 %v2650, %v2722
        %v2753 = vadd.f32 %v2651, %v2725
        %v2754 = vadd.f32 %v2652, %v2730
        %v2755 = vadd.f32 %v2653, %v2733
        %v2756 = vadd.f32 %v2654, %v2738
        %v2757 = vadd.f32 %v2655, %v2741
        %v2758 = vadd.f32 %v2656, %v2746
        %v2759 = vadd.f32 %v2657, %v2749
        %s2760 = scalar_lea.vmem [#allocation3], 32
        %v2761 = vld [vmem:[%s2760] sm:$0xff]
        %v2762 = vld [vmem:[%s2760 + $0x10] sm:$0xff]
        %v2763 = vld [vmem:[%s2760 + $0x20] sm:$0xff]
        %v2764 = vld [vmem:[%s2760 + $0x30] sm:$0xff]
        %v2765 = vld [vmem:[%s2760 + $0x40] sm:$0xff]
        %v2766 = vld [vmem:[%s2760 + $0x50] sm:$0xff]
        %v2767 = vld [vmem:[%s2760 + $0x60] sm:$0xff]
        %v2768 = vld [vmem:[%s2760 + $0x70] sm:$0xff]
        %v2769 = vpack.c.bf16 %v2762, %v2761
        %v2770 = vpack.c.bf16 %v2764, %v2763
        %v2771 = vpack.c.bf16 %v2766, %v2765
        %v2772 = vpack.c.bf16 %v2768, %v2767
        %s2773 = scalar_lea.vmem [#allocation16], 24
        %v2774 = vld [vmem:[%s2773] sm:$0xf]
        %v2776 = vsel %vm2133, %v2769, 0
        %v2779 = vsel %vm2133, %v2770, 0
        %v2782 = vsel %vm2133, %v2771, 0
        %v2785 = vsel %vm2133, %v2772, 0
        %v2788 = vsel %vm2203, %v2774, 0
        %2790 = vmatprep.subr.bf16.mxu0 0
        %2791 = vmatpush1.bf16.msra.mxu0 %v2788
        %2792 = vmatprep.subr.bf16.mxu0 0
        %2793 = vmatpush1.bf16.msra.mxu0 0
        %2794 = vmatprep.subr.bf16.mxu0 0
        %2795 = vmatpush1.bf16.msra.mxu0 0
        %2796 = vmatprep.subr.bf16.mxu0 0
        %2797 = vmatpush1.bf16.msra.mxu0 0
        %2798 = vmatprep.subr.bf16.mxu0 0
        %2799 = vmatpush1.bf16.msra.mxu0 0
        %2800 = vmatprep.subr.bf16.mxu0 0
        %2801 = vmatpush1.bf16.msra.mxu0 0
        %2802 = vmatprep.subr.bf16.mxu0 0
        %2803 = vmatpush1.bf16.msra.mxu0 0
        %2804 = vmatprep.subr.bf16.mxu0 0
        %2805 = vmatpush1.bf16.msra.mxu0 0
        %2806 = vmatprep.subr.bf16.mxu0 0
        %2807 = vmatpush1.bf16.msra.mxu0 0
        %2808 = vmatprep.subr.bf16.mxu0 0
        %2809 = vmatpush1.bf16.msra.mxu0 0
        %2810 = vmatprep.subr.bf16.mxu0 0
        %2811 = vmatpush1.bf16.msra.mxu0 0
        %2812 = vmatprep.subr.bf16.mxu0 0
        %2813 = vmatpush1.bf16.msra.mxu0 0
        %2814 = vmatprep.subr.bf16.mxu0 0
        %2815 = vmatpush1.bf16.msra.mxu0 0
        %2816 = vmatprep.subr.bf16.mxu0 0
        %2817 = vmatpush1.bf16.msra.mxu0 0
        %2818 = vmatprep.subr.bf16.mxu0 0
        %2819 = vmatpush1.bf16.msra.mxu0 0
        %2820 = vmatprep.subr.bf16.mxu0 0
        %2821 = vmatpush1.bf16.msra.mxu0 0
        %2822 = vmatprep.mubr.bf16.mxu0 0
        %2823 = vmatmul.mubr.bf16.gmra.mrb[0].mxu0 %v2776
        %v2824 = vpop.f32.mrb[0].mxu0
        %v2825 = vadd.f32 0.0, %v2824
        %v2826 = vpop.f32.mrb[0].mxu0
        %v2827 = vpop.f32.mrb[0].mxu0
        %v2828 = vadd.f32 0.0, %v2827
        %v2829 = vpop.f32.mrb[0].mxu0
        %2830 = vmatprep.mubr.bf16.mxu0 0
        %2831 = vmatmul.mubr.bf16.gmra.mrb[0].mxu0 %v2779
        %v2832 = vpop.f32.mrb[0].mxu0
        %v2833 = vadd.f32 0.0, %v2832
        %v2834 = vpop.f32.mrb[0].mxu0
        %v2835 = vpop.f32.mrb[0].mxu0
        %v2836 = vadd.f32 0.0, %v2835
        %v2837 = vpop.f32.mrb[0].mxu0
        %2838 = vmatprep.mubr.bf16.mxu0 0
        %2839 = vmatmul.mubr.bf16.gmra.mrb[0].mxu0 %v2782
        %v2840 = vpop.f32.mrb[0].mxu0
        %v2841 = vadd.f32 0.0, %v2840
        %v2842 = vpop.f32.mrb[0].mxu0
        %v2843 = vpop.f32.mrb[0].mxu0
        %v2844 = vadd.f32 0.0, %v2843
        %v2845 = vpop.f32.mrb[0].mxu0
        %2846 = vmatprep.mubr.bf16.mxu0 0
        %2847 = vmatmul.mubr.bf16.gmra.mrb[0].mxu0 %v2785
        %v2848 = vpop.f32.mrb[0].mxu0
        %v2849 = vadd.f32 0.0, %v2848
        %v2850 = vpop.f32.mrb[0].mxu0
        %v2851 = vpop.f32.mrb[0].mxu0
        %v2852 = vadd.f32 0.0, %v2851
        %v2853 = vpop.f32.mrb[0].mxu0
        %2854 = vdwg.mxu0
        %v2855 = vadd.f32 %v2752, %v2825
        %v2856 = vadd.f32 %v2753, %v2828
        %v2857 = vadd.f32 %v2754, %v2833
        %v2858 = vadd.f32 %v2755, %v2836
        %v2859 = vadd.f32 %v2756, %v2841
        %v2860 = vadd.f32 %v2757, %v2844
        %v2861 = vadd.f32 %v2758, %v2849
        %v2862 = vadd.f32 %v2759, %v2852
        %v2863 = vld [vmem:[%s2760 + $0x1] sm:$0xff]
        %v2864 = vld [vmem:[%s2760 + $0x11] sm:$0xff]
        %v2865 = vld [vmem:[%s2760 + $0x21] sm:$0xff]
        %v2866 = vld [vmem:[%s2760 + $0x31] sm:$0xff]
        %v2867 = vld [vmem:[%s2760 + $0x41] sm:$0xff]
        %v2868 = vld [vmem:[%s2760 + $0x51] sm:$0xff]
        %v2869 = vld [vmem:[%s2760 + $0x61] sm:$0xff]
        %v2870 = vld [vmem:[%s2760 + $0x71] sm:$0xff]
        %v2871 = vpack.c.bf16 %v2864, %v2863
        %v2872 = vpack.c.bf16 %v2866, %v2865
        %v2873 = vpack.c.bf16 %v2868, %v2867
        %v2874 = vpack.c.bf16 %v2870, %v2869
        %s2875 = scalar_lea.vmem [#allocation16], 28
        %v2876 = vld [vmem:[%s2875] sm:$0xf]
        %v2878 = vsel %vm2133, %v2871, 0
        %v2881 = vsel %vm2133, %v2872, 0
        %v2884 = vsel %vm2133, %v2873, 0
        %v2887 = vsel %vm2133, %v2874, 0
        %v2890 = vsel %vm2203, %v2876, 0
        %2892 = vmatprep.subr.bf16.mxu0 0
        %2893 = vmatpush1.bf16.msra.mxu0 %v2890
        %2894 = vmatprep.subr.bf16.mxu0 0
        %2895 = vmatpush1.bf16.msra.mxu0 0
        %2896 = vmatprep.subr.bf16.mxu0 0
        %2897 = vmatpush1.bf16.msra.mxu0 0
        %2898 = vmatprep.subr.bf16.mxu0 0
        %2899 = vmatpush1.bf16.msra.mxu0 0
        %2900 = vmatprep.subr.bf16.mxu0 0
        %2901 = vmatpush1.bf16.msra.mxu0 0
        %2902 = vmatprep.subr.bf16.mxu0 0
        %2903 = vmatpush1.bf16.msra.mxu0 0
        %2904 = vmatprep.subr.bf16.mxu0 0
        %2905 = vmatpush1.bf16.msra.mxu0 0
        %2906 = vmatprep.subr.bf16.mxu0 0
        %2907 = vmatpush1.bf16.msra.mxu0 0
        %2908 = vmatprep.subr.bf16.mxu0 0
        %2909 = vmatpush1.bf16.msra.mxu0 0
        %2910 = vmatprep.subr.bf16.mxu0 0
        %2911 = vmatpush1.bf16.msra.mxu0 0
        %2912 = vmatprep.subr.bf16.mxu0 0
        %2913 = vmatpush1.bf16.msra.mxu0 0
        %2914 = vmatprep.subr.bf16.mxu0 0
        %2915 = vmatpush1.bf16.msra.mxu0 0
        %2916 = vmatprep.subr.bf16.mxu0 0
        %2917 = vmatpush1.bf16.msra.mxu0 0
        %2918 = vmatprep.subr.bf16.mxu0 0
        %2919 = vmatpush1.bf16.msra.mxu0 0
        %2920 = vmatprep.subr.bf16.mxu0 0
        %2921 = vmatpush1.bf16.msra.mxu0 0
        %2922 = vmatprep.subr.bf16.mxu0 0
        %2923 = vmatpush1.bf16.msra.mxu0 0
        %2924 = vmatprep.mubr.bf16.mxu0 0
        %2925 = vmatmul.mubr.bf16.gmra.mrb[0].mxu0 %v2878
        %v2926 = vpop.f32.mrb[0].mxu0
        %v2927 = vadd.f32 0.0, %v2926
        %v2928 = vpop.f32.mrb[0].mxu0
        %v2929 = vpop.f32.mrb[0].mxu0
        %v2930 = vadd.f32 0.0, %v2929
        %v2931 = vpop.f32.mrb[0].mxu0
        %2932 = vmatprep.mubr.bf16.mxu0 0
        %2933 = vmatmul.mubr.bf16.gmra.mrb[0].mxu0 %v2881
        %v2934 = vpop.f32.mrb[0].mxu0
        %v2935 = vadd.f32 0.0, %v2934
        %v2936 = vpop.f32.mrb[0].mxu0
        %v2937 = vpop.f32.mrb[0].mxu0
        %v2938 = vadd.f32 0.0, %v2937
        %v2939 = vpop.f32.mrb[0].mxu0
        %2940 = vmatprep.mubr.bf16.mxu0 0
        %2941 = vmatmul.mubr.bf16.gmra.mrb[0].mxu0 %v2884
        %v2942 = vpop.f32.mrb[0].mxu0
        %v2943 = vadd.f32 0.0, %v2942
        %v2944 = vpop.f32.mrb[0].mxu0
        %v2945 = vpop.f32.mrb[0].mxu0
        %v2946 = vadd.f32 0.0, %v2945
        %v2947 = vpop.f32.mrb[0].mxu0
        %2948 = vmatprep.mubr.bf16.mxu0 0
        %2949 = vmatmul.mubr.bf16.gmra.mrb[0].mxu0 %v2887
        %v2950 = vpop.f32.mrb[0].mxu0
        %v2951 = vadd.f32 0.0, %v2950
        %v2952 = vpop.f32.mrb[0].mxu0
        %v2953 = vpop.f32.mrb[0].mxu0
        %v2954 = vadd.f32 0.0, %v2953
        %v2955 = vpop.f32.mrb[0].mxu0
        %2956 = vdwg.mxu0
        %v2957 = vadd.f32 %v2855, %v2927
        %v2958 = vadd.f32 %v2856, %v2930
        %v2959 = vadd.f32 %v2857, %v2935
        %v2960 = vadd.f32 %v2858, %v2938
        %v2961 = vadd.f32 %v2859, %v2943
        %v2962 = vadd.f32 %v2860, %v2946
        %v2963 = vadd.f32 %v2861, %v2951
        %v2964 = vadd.f32 %v2862, %v2954
        %v2965 = vld [vmem:[%s2760 + $0x2] sm:$0xff]
        %v2966 = vld [vmem:[%s2760 + $0x12] sm:$0xff]
        %v2967 = vld [vmem:[%s2760 + $0x22] sm:$0xff]
        %v2968 = vld [vmem:[%s2760 + $0x32] sm:$0xff]
        %v2969 = vld [vmem:[%s2760 + $0x42] sm:$0xff]
        %v2970 = vld [vmem:[%s2760 + $0x52] sm:$0xff]
        %v2971 = vld [vmem:[%s2760 + $0x62] sm:$0xff]
        %v2972 = vld [vmem:[%s2760 + $0x72] sm:$0xff]
        %v2973 = vpack.c.bf16 %v2966, %v2965
        %v2974 = vpack.c.bf16 %v2968, %v2967
        %v2975 = vpack.c.bf16 %v2970, %v2969
        %v2976 = vpack.c.bf16 %v2972, %v2971
        %s2977 = scalar_lea.vmem [#allocation16], 32
        %v2978 = vld [vmem:[%s2977] sm:$0xf]
        %v2980 = vsel %vm2133, %v2973, 0
        %v2983 = vsel %vm2133, %v2974, 0
        %v2986 = vsel %vm2133, %v2975, 0
        %v2989 = vsel %vm2133, %v2976, 0
        %v2992 = vsel %vm2203, %v2978, 0
        %2994 = vmatprep.subr.bf16.mxu0 0
        %2995 = vmatpush1.bf16.msra.mxu0 %v2992
        %2996 = vmatprep.subr.bf16.mxu0 0
        %2997 = vmatpush1.bf16.msra.mxu0 0
        %2998 = vmatprep.subr.bf16.mxu0 0
        %2999 = vmatpush1.bf16.msra.mxu0 0
        %3000 = vmatprep.subr.bf16.mxu0 0
        %3001 = vmatpush1.bf16.msra.mxu0 0
        %3002 = vmatprep.subr.bf16.mxu0 0
        %3003 = vmatpush1.bf16.msra.mxu0 0
        %3004 = vmatprep.subr.bf16.mxu0 0
        %3005 = vmatpush1.bf16.msra.mxu0 0
        %3006 = vmatprep.subr.bf16.mxu0 0
        %3007 = vmatpush1.bf16.msra.mxu0 0
        %3008 = vmatprep.subr.bf16.mxu0 0
        %3009 = vmatpush1.bf16.msra.mxu0 0
        %3010 = vmatprep.subr.bf16.mxu0 0
        %3011 = vmatpush1.bf16.msra.mxu0 0
        %3012 = vmatprep.subr.bf16.mxu0 0
        %3013 = vmatpush1.bf16.msra.mxu0 0
        %3014 = vmatprep.subr.bf16.mxu0 0
        %3015 = vmatpush1.bf16.msra.mxu0 0
        %3016 = vmatprep.subr.bf16.mxu0 0
        %3017 = vmatpush1.bf16.msra.mxu0 0
        %3018 = vmatprep.subr.bf16.mxu0 0
        %3019 = vmatpush1.bf16.msra.mxu0 0
        %3020 = vmatprep.subr.bf16.mxu0 0
        %3021 = vmatpush1.bf16.msra.mxu0 0
        %3022 = vmatprep.subr.bf16.mxu0 0
        %3023 = vmatpush1.bf16.msra.mxu0 0
        %3024 = vmatprep.subr.bf16.mxu0 0
        %3025 = vmatpush1.bf16.msra.mxu0 0
        %3026 = vmatprep.mubr.bf16.mxu0 0
        %3027 = vmatmul.mubr.bf16.gmra.mrb[0].mxu0 %v2980
        %v3028 = vpop.f32.mrb[0].mxu0
        %v3029 = vadd.f32 0.0, %v3028
        %v3030 = vpop.f32.mrb[0].mxu0
        %v3031 = vpop.f32.mrb[0].mxu0
        %v3032 = vadd.f32 0.0, %v3031
        %v3033 = vpop.f32.mrb[0].mxu0
        %3034 = vmatprep.mubr.bf16.mxu0 0
        %3035 = vmatmul.mubr.bf16.gmra.mrb[0].mxu0 %v2983
        %v3036 = vpop.f32.mrb[0].mxu0
        %v3037 = vadd.f32 0.0, %v3036
        %v3038 = vpop.f32.mrb[0].mxu0
        %v3039 = vpop.f32.mrb[0].mxu0
        %v3040 = vadd.f32 0.0, %v3039
        %v3041 = vpop.f32.mrb[0].mxu0
        %3042 = vmatprep.mubr.bf16.mxu0 0
        %3043 = vmatmul.mubr.bf16.gmra.mrb[0].mxu0 %v2986
        %v3044 = vpop.f32.mrb[0].mxu0
        %v3045 = vadd.f32 0.0, %v3044
        %v3046 = vpop.f32.mrb[0].mxu0
        %v3047 = vpop.f32.mrb[0].mxu0
        %v3048 = vadd.f32 0.0, %v3047
        %v3049 = vpop.f32.mrb[0].mxu0
        %3050 = vmatprep.mubr.bf16.mxu0 0
        %3051 = vmatmul.mubr.bf16.gmra.mrb[0].mxu0 %v2989
        %v3052 = vpop.f32.mrb[0].mxu0
        %v3053 = vadd.f32 0.0, %v3052
        %v3054 = vpop.f32.mrb[0].mxu0
        %v3055 = vpop.f32.mrb[0].mxu0
        %v3056 = vadd.f32 0.0, %v3055
        %v3057 = vpop.f32.mrb[0].mxu0
        %3058 = vdwg.mxu0
        %v3059 = vadd.f32 %v2957, %v3029
        %v3060 = vadd.f32 %v2958, %v3032
        %v3061 = vadd.f32 %v2959, %v3037
        %v3062 = vadd.f32 %v2960, %v3040
        %v3063 = vadd.f32 %v2961, %v3045
        %v3064 = vadd.f32 %v2962, %v3048
        %v3065 = vadd.f32 %v2963, %v3053
        %v3066 = vadd.f32 %v2964, %v3056
        %v3067 = vadd.f32 %v3059, %v1656
        %v3068 = vadd.f32 %v3060, %v1659
        %v3069 = vadd.f32 %v3061, %v1664
        %v3070 = vadd.f32 %v3062, %v1667
        %v3071 = vadd.f32 %v3063, %v1672
        %v3072 = vadd.f32 %v3064, %v1675
        %v3073 = vadd.f32 %v3065, %v1680
        %v3074 = vadd.f32 %v3066, %v1683
        %3075 = vst.msk [vmem:[%s456] sm:$0xff] %vm2133, %v3067
        %3076 = vst.msk [vmem:[%s456 + $0x8] sm:$0xff] %vm2133, %v3068
        %3077 = vst.msk [vmem:[%s456 + $0x10] sm:$0xff] %vm2133, %v3069
        %3078 = vst.msk [vmem:[%s456 + $0x18] sm:$0xff] %vm2133, %v3070
        %3079 = vst.msk [vmem:[%s456 + $0x20] sm:$0xff] %vm2133, %v3071
        %3080 = vst.msk [vmem:[%s456 + $0x28] sm:$0xff] %vm2133, %v3072
        %3081 = vst.msk [vmem:[%s456 + $0x30] sm:$0xff] %vm2133, %v3073
        %3082 = vst.msk [vmem:[%s456 + $0x38] sm:$0xff] %vm2133, %v3074
        %s3083 = sand.u32 %s232, 1
        %s3084 = scalar_lea.sflag [#allocation6], %s3083
        %s3085 = sand.u32 %s232, 1
        %s3086 = smul.addr %s3085, 64
        %s3087 = scalar_lea.vmem [#allocation19], %s3086
        // Predicated region
        $region93: #{basic_block_forward.1} parent=55 // pred_check
          %p3088 = pneg %p242
        $region94: #{basic_block_forward.1} parent=55 // pred_check_branch
          %3090 = sbr.rel (%p3088) target = $region96
        $region95: #{basic_block_forward.1} parent=55 // pred_region
          %s3092 = ssub.s32 1024, 1024
          %3093 = vsyncadd %s3084, %s3092
          %s3094 = smul.addr %s30, 8
          %s3095 = smul.addr %s3094, 128
          %s3096 = scalar_lea.hbm %s9, %s3095
          %s3097 = sshll.u32 %s3087, 4
          %s3098 = int_to_ptr.vmem [resolvable:$true] %s3097
          %3103 = dma.vmem_to_hbm [thread:$0]  %s3098, 1024, %s3096, %s3084, 128, 128, 8
        $region96: #{basic_block_forward.1} parent=55 // pred_fallthru
          _
      $region56: #{basic_block_forward.1} parent=5 // pred_fallthru
        _
      %p3104 = scmp.le.s32.totalorder 2, %s25
      // Predicated region
      $region97: #{basic_block_forward.1} parent=5 // pred_check
        %p3105 = pneg %p3104
      $region98: #{basic_block_forward.1} parent=5 // pred_check_branch
        %3107 = sbr.rel (%p3105) target = $region100
      $region99: #{basic_block_forward.1} parent=5 // pred_region
        %s3108 = ssub.s32 %s25, 2
        // Predicated region
        $region101: #{basic_block_forward.1} parent=99 // pred_check
          %p3109 = pneg %p248
        $region102: #{basic_block_forward.1} parent=99 // pred_check_branch
          %3111 = sbr.rel (%p3109) target = $region104
        $region103: #{basic_block_forward.1} parent=99 // pred_region
          %s3112 = sand.u32 %s233, 1
          %s3113 = scalar_lea.sflag [#allocation6], %s3112
          %s3114 = sand.u32 %s233, 1
          %s3115 = smul.addr %s3114, 64
          %s3116 = scalar_lea.vmem [#allocation19], %s3115
          %3117 = dma.done %s3113, 1024
        $region104: #{basic_block_forward.1} parent=99 // pred_fallthru
          _
      $region100: #{basic_block_forward.1} parent=5 // pred_fallthru
        _
    $region6: #{basic_block_forward.1} parent=1 // loop_footer
      %s29 = sadd.s32 1, %s25
    $region7: #{basic_block_forward.1} parent=1 // loop_footer_branch
      %24 = sbr.rel target = $region3
    $region8: #{basic_block_forward.1} parent=1 // loop_exit
      _
    %3118 = vsyncpa [#allocation5], 1
    %s3119 = scalar_lea.sflag [#allocation5], 1
    %3120 = vsyncpa %s3119, 1
    %3121 = vsyncpa [#allocation8], 1
    %3122 = vsyncpa [#allocation11], 1
    %3123 = vsyncpa [#allocation14], 1
    %3124 = vsyncpa [#allocation17], 1
    %3125 = vsyncpa [#allocation6], 1
    %s3126 = scalar_lea.sflag [#allocation6], 1
    %3127 = vsyncpa %s3126, 1

</llo_original>
